<compile_context>
chip_gen: v7x
topology: tpu7x:2x2x1
jax: 0.10.0
libtpu: 0.0.40
codegen_flags: <defaults>
</compile_context>

<pallas_src>
import functools

import jax
import jax.numpy as jnp
from jax import lax
from jax.experimental import pallas as pl
from jax.experimental.pallas import tpu as pltpu


def film_res_block_kernel(x_ref, y_ref, wcat_ref, wfilm_ref, bcat_ref, o_ref,
                          *, kernel_size):
    # x_ref    : (B, C, L)        one step's activations (NCL; L on lanes)
    # y_ref    : (Y, B)           conditioning, pre-transposed (resident)
    # wcat_ref : (C, (K+1)*C)     [:, :C]=W1 (1x1 conv), [:, C:]=Wk_flat (tap-major)
    # wfilm_ref: (2C, Y)          rows [0:C]=gammas.weight, [C:2C]=betas.weight
    # bcat_ref : (4, C, 1)        b1, bk, gammas.bias+1, betas.bias
    # o_ref    : (B, C, L)
    B, C, L = x_ref.shape
    K = kernel_size
    pad = K // 2

    # Static parameter slices (weights are VMEM-resident across the grid).
    w1 = wcat_ref[:, :C]                       # (C, C)
    wk = wcat_ref[:, C:]                       # (C, K*C)
    b1 = bcat_ref[0]                           # (C, 1)
    bk = bcat_ref[1]                           # (C, 1)
    bg1 = bcat_ref[2]                          # (C, 1) gammas bias with +1 folded
    bb = bcat_ref[3]                           # (C, 1)

    # FiLM gamma/beta via one MXU dot, kept in (C, B) layout so the per-batch
    # value is a static lane slice (no transpose needed).
    gb = jnp.dot(wfilm_ref[...], y_ref[...],
                 preferred_element_type=jnp.float32,
                 precision=lax.Precision.HIGHEST)          # (2C, B)
    gamma = gb[:C, :] + bg1                                # (C, B)
    beta = gb[C:, :] + bb                                  # (C, B)

    pos = lax.broadcasted_iota(jnp.int32, (1, L), 1)       # lane index, hoisted

    # ---- pass 1: input_proj (MXU) + ReLU, conv1 (roll + MXU), per-channel sums
    hs, outs = [], []
    s1 = None
    for b in range(B):                                     # static unroll, B small
        xb = x_ref[b]                                      # (C, L)
        hb = jnp.dot(w1, xb, preferred_element_type=jnp.float32,
                     precision=lax.Precision.HIGHEST) + b1
        hb = jnp.maximum(hb, 0.0)                          # (C, L)
        hs.append(hb)

        # conv1: stack the K shifted copies along channels, one MXU dot.
        taps = []
        for t in range(K):                                 # static unroll over taps
            d = t - pad                                    # out[l] += W_t @ h[l+d]
            if d == 0:
                taps.append(hb)
            else:
                sh = pltpu.roll(hb, shift=(-d) % L, axis=1)     # lane rotate (XLU)
                valid = (pos + d >= 0) & (pos + d < L)          # (1, L) edge mask
                taps.append(jnp.where(valid, sh, 0.0))
        stack = jnp.concatenate(taps, axis=0)              # (K*C, L)
        ob = jnp.dot(wk, stack, preferred_element_type=jnp.float32,
                     precision=lax.Precision.HIGHEST) + bk
        outs.append(ob)

        ps1 = jnp.sum(ob, axis=1, keepdims=True)           # (C, 1)
        s1 = ps1 if s1 is None else s1 + ps1

    inv_n = 1.0 / float(B * L)
    mean = s1 * inv_n                                      # (C, 1)

    # ---- pass 2: centered sums of squares (two-pass variance, biased, eps=1e-5)
    cents = []
    s2 = None
    for b in range(B):
        cb = outs[b] - mean
        cents.append(cb)
        ps2 = jnp.sum(cb * cb, axis=1, keepdims=True)
        s2 = ps2 if s2 is None else s2 + ps2
    inv_std = lax.rsqrt(s2 * inv_n + 1e-5)                 # (C, 1)

    # TODO(synk): dropout > 0 would need pltpu.prng_seed/prng_random_bits;
    # this module instance uses dropout = 0 (drop is the identity).

    # ---- pass 3: FiLM + ReLU + residual; lane-dense unmasked per-batch stores.
    for b in range(B):
        ob = cents[b] * inv_std
        ob = gamma[:, b:b + 1] * ob + beta[:, b:b + 1]
        o_ref[b] = (hs[b] + jnp.maximum(ob, 0.0)).astype(o_ref.dtype)


def prepare_params(params):
    """One-time re-layout: pack the 10 PyTorch tensors into 3 kernel arrays."""
    C = params['input_proj_b'].shape[0]
    K = params['conv1_w'].shape[2]
    f32 = jnp.float32
    w1 = params['input_proj_w'][:, :, 0].astype(f32)                     # (C, C)
    # Wk_flat[:, t*C + c] = conv1_w[o=:, c, t]  (tap-major column blocks)
    wk = jnp.transpose(params['conv1_w'], (0, 2, 1)).reshape(C, K * C).astype(f32)
    wcat = jnp.concatenate([w1, wk], axis=1)                             # (C, (K+1)*C)
    wfilm = jnp.concatenate([params['gammas_w'], params['betas_w']],
                            axis=0).astype(f32)                          # (2C, Y)
    bcat = jnp.stack([params['input_proj_b'],
                      params['conv1_b'],
                      params['gammas_b'] + 1.0,          # fold FiLM "+1"
                      params['betas_b']], axis=0).astype(f32)[:, :, None]  # (4, C, 1)
    return {'wcat': wcat, 'wfilm': wfilm, 'bcat': bcat, 'kernel_size': K}


def filmed_res_block_steps(x_steps, y, prepped):
    """Apply the cell to T stacked steps in one pallas_call.

    x_steps: (T, B, C, L) float32 (NCL per step), y: (B, Y) shared conditioning.
    Weights (and y) are DMA'd once and stay VMEM-resident across the grid; the
    per-step activation blocks are auto double-buffered by the pipeline.
    """
    T, B, C, L = x_steps.shape
    Y = y.shape[1]
    K = prepped['kernel_size']
    y_t = jnp.transpose(y).astype(jnp.float32)             # (Y, B)

    grid_spec = pltpu.PrefetchScalarGridSpec(
        num_scalar_prefetch=0,
        grid=(T,),
        in_specs=[
            pl.BlockSpec((None, B, C, L), lambda t: (t, 0, 0, 0)),   # per-step x
            pl.BlockSpec((Y, B), lambda t: (0, 0)),                  # resident
            pl.BlockSpec((C, (K + 1) * C), lambda t: (0, 0)),        # resident
            pl.BlockSpec((2 * C, Y), lambda t: (0, 0)),              # resident
            pl.BlockSpec((4, C, 1), lambda t: (0, 0, 0)),            # resident
        ],
        out_specs=pl.BlockSpec((None, B, C, L), lambda t: (t, 0, 0, 0)),
    )
    return pl.pallas_call(
        functools.partial(film_res_block_kernel, kernel_size=K),
        out_shape=jax.ShapeDtypeStruct((T, B, C, L), jnp.float32),
        grid_spec=grid_spec,
        compiler_params=pltpu.CompilerParams(
            dimension_semantics=("parallel",)),   # independent steps -> megacore on v7x
    )(x_steps.astype(jnp.float32), y_t,
      prepped['wcat'], prepped['wfilm'], prepped['bcat'])


def filmed_res_block(x_ncl, y, prepped):
    """Single forward (matches the PyTorch module): x (B, C, L), y (B, Y)."""
    return filmed_res_block_steps(x_ncl[None], y, prepped)[0]


def reference_forward(x, y, params, kernel_size):
    """Pure-JAX reference in NCL layout, exact f32 (no MXU precision ambiguity)."""
    B, C, L = x.shape
    pad = kernel_size // 2
    w1 = params['input_proj_w'][:, :, 0]                     # (Cout, Cin)
    h = jnp.sum(w1[None, :, :, None] * x[:, None, :, :], axis=2)
    h = jnp.maximum(h + params['input_proj_b'][None, :, None], 0.0)
    hp = jnp.pad(h, ((0, 0), (0, 0), (pad, pad)))
    out = jnp.zeros((B, C, L), jnp.float32) + params['conv1_b'][None, :, None]
    for t in range(kernel_size):
        wt = params['conv1_w'][:, :, t]                      # (Cout, Cin)
        out = out + jnp.sum(wt[None, :, :, None] * hp[:, None, :, t:t + L], axis=2)
    mean = out.mean(axis=(0, 2), keepdims=True)
    var = ((out - mean) ** 2).mean(axis=(0, 2), keepdims=True)
    out = (out - mean) / jnp.sqrt(var + 1e-5)
    gamma = jnp.sum(params['gammas_w'][None, :, :] * y[:, None, :], axis=-1) \
        + params['gammas_b'] + 1.0
    beta = jnp.sum(params['betas_w'][None, :, :] * y[:, None, :], axis=-1) \
        + params['betas_b']
    out = gamma[:, :, None] * out + beta[:, :, None]
    out = jnp.maximum(out, 0.0)
    return h + out


if __name__ == "__main__":
    # x_dim=8, y_dim=16, kernel_size=3; T fused steps to exercise the grid path.
    B, C, L, Y, K, T = 4, 8, 128, 16, 3, 3
    key = jax.random.PRNGKey(0)
    keys = jax.random.split(key, 10)

    def kaiming_uniform(k, shape, fan_in):
        bound = (6.0 / fan_in) ** 0.5
        return jax.random.uniform(k, shape, jnp.float32, -bound, bound)

    def default_uniform(k, shape, fan_in):
        bound = 1.0 / (fan_in ** 0.5)
        return jax.random.uniform(k, shape, jnp.float32, -bound, bound)

    params = {
        'gammas_w':     default_uniform(keys[0], (C, Y), Y),
        'gammas_b':     default_uniform(keys[1], (C,), Y),
        'betas_w':      default_uniform(keys[2], (C, Y), Y),
        'betas_b':      default_uniform(keys[3], (C,), Y),
        'input_proj_w': kaiming_uniform(keys[4], (C, C, 1), C * 1),
        'input_proj_b': default_uniform(keys[5], (C,), C * 1),
        'conv1_w':      kaiming_uniform(keys[6], (C, C, K), C * K),
        'conv1_b':      default_uniform(keys[7], (C,), C * K),
    }

    x_steps = jax.random.normal(keys[8], (T, B, C, L), jnp.float32)   # NCL per step
    y = jax.random.normal(keys[9], (B, Y), jnp.float32)

    prepped = prepare_params(params)          # one-time weight packing/re-layout

    # Single-step call (matches the PyTorch forward exactly).
    out1 = jax.block_until_ready(filmed_res_block(x_steps[0], y, prepped))
    ref1 = reference_forward(x_steps[0], y, params, K)
    assert out1.shape == (B, C, L)
    err1 = float(jnp.max(jnp.abs(out1 - ref1)))
    assert err1 < 1e-3, err1    # precision=HIGHEST keeps this ~1e-6; margin left

    # Fused multi-step call (grid over T, weights resident).
    outs = jax.block_until_ready(filmed_res_block_steps(x_steps, y, prepped))
    assert outs.shape == (T, B, C, L)
    for t in range(T):
        reft = reference_forward(x_steps[t], y, params, K)
        errt = float(jnp.max(jnp.abs(outs[t] - reft)))
        assert errt < 1e-3, (t, errt)

    print("KERNEL_OK")
</pallas_src>

<mosaic_0001>
module attributes {stable_mosaic.version = 11 : i64} {
  func.func @film_res_block_kernel(%arg0: i32, %arg1: memref<1x4x8x128xf32, #tpu.memory_space<vmem>>, %arg2: memref<16x4xf32, #tpu.memory_space<vmem>>, %arg3: memref<8x32xf32, #tpu.memory_space<vmem>>, %arg4: memref<16x16xf32, #tpu.memory_space<vmem>>, %arg5: memref<4x8x1xf32, #tpu.memory_space<vmem>>, %arg6: memref<1x4x8x128xf32, #tpu.memory_space<vmem>>) attributes {dimension_semantics = [#tpu.dimension_semantics<parallel>], iteration_bounds = array<i64: 1>, scalar_prefetch = 0 : i64, scratch_operands = 0 : i64, tpu.core_type = #tpu.core_type<tc>, window_params = [{transform_indices = @transform_0, window_bounds = array<i64: 1, 4, 8, 128>}, {pipeline_mode = #tpu.pipeline_mode<synchronous>, transform_indices = @transform_1, window_bounds = array<i64: 16, 4>}, {pipeline_mode = #tpu.pipeline_mode<synchronous>, transform_indices = @transform_2, window_bounds = array<i64: 8, 32>}, {pipeline_mode = #tpu.pipeline_mode<synchronous>, transform_indices = @transform_3, window_bounds = array<i64: 16, 16>}, {pipeline_mode = #tpu.pipeline_mode<synchronous>, transform_indices = @transform_4, window_bounds = array<i64: 4, 8, 1>}, {transform_indices = @transform_5, window_bounds = array<i64: 1, 4, 8, 128>}]} {
    %c0 = arith.constant 0 : index
    %c0_0 = arith.constant 0 : index
    %0 = vector.load %arg3[%c0, %c0_0] : memref<8x32xf32, #tpu.memory_space<vmem>>, vector<8x8xf32>
    %c0_1 = arith.constant 0 : index
    %c8 = arith.constant 8 : index
    %1 = vector.load %arg3[%c0_1, %c8] : memref<8x32xf32, #tpu.memory_space<vmem>>, vector<8x24xf32>
    %c0_2 = arith.constant 0 : index
    %c0_3 = arith.constant 0 : index
    %c0_4 = arith.constant 0 : index
    %2 = vector.load %arg5[%c0_2, %c0_3, %c0_4] : memref<4x8x1xf32, #tpu.memory_space<vmem>>, vector<1x8x1xf32>
    %3 = vector.shape_cast %2 : vector<1x8x1xf32> to vector<8x1xf32>
    %c1 = arith.constant 1 : index
    %c0_5 = arith.constant 0 : index
    %c0_6 = arith.constant 0 : index
    %4 = vector.load %arg5[%c1, %c0_5, %c0_6] : memref<4x8x1xf32, #tpu.memory_space<vmem>>, vector<1x8x1xf32>
    %5 = vector.shape_cast %4 : vector<1x8x1xf32> to vector<8x1xf32>
    %c2 = arith.constant 2 : index
    %c0_7 = arith.constant 0 : index
    %c0_8 = arith.constant 0 : index
    %6 = vector.load %arg5[%c2, %c0_7, %c0_8] : memref<4x8x1xf32, #tpu.memory_space<vmem>>, vector<1x8x1xf32>
    %7 = vector.shape_cast %6 : vector<1x8x1xf32> to vector<8x1xf32>
    %c3 = arith.constant 3 : index
    %c0_9 = arith.constant 0 : index
    %c0_10 = arith.constant 0 : index
    %8 = vector.load %arg5[%c3, %c0_9, %c0_10] : memref<4x8x1xf32, #tpu.memory_space<vmem>>, vector<1x8x1xf32>
    %9 = vector.shape_cast %8 : vector<1x8x1xf32> to vector<8x1xf32>
    %c0_11 = arith.constant 0 : index
    %c0_12 = arith.constant 0 : index
    %10 = vector.load %arg4[%c0_11, %c0_12] : memref<16x16xf32, #tpu.memory_space<vmem>>, vector<16x16xf32>
    %c0_13 = arith.constant 0 : index
    %c0_14 = arith.constant 0 : index
    %11 = vector.load %arg2[%c0_13, %c0_14] : memref<16x4xf32, #tpu.memory_space<vmem>>, vector<16x4xf32>
    %cst = arith.constant dense<0.000000e+00> : vector<16x4xf32>
    %12 = tpu.matmul %10, %11, %cst {dimension_numbers = #tpu.dot_dimension_numbers<[1], [0], [0], [1], [0, 0, 1, 1], [], []>, precision = #tpu.contract_precision<fp32>} : vector<16x16xf32>, vector<16x4xf32>, vector<16x4xf32> -> vector<16x4xf32>
    %13 = vector.extract_strided_slice %12 {offsets = [0, 0], sizes = [8, 4], strides = [1, 1]} : vector<16x4xf32> to vector<8x4xf32>
    %14 = vector.broadcast %7 : vector<8x1xf32> to vector<8x4xf32>
    %15 = arith.addf %13, %14 : vector<8x4xf32>
    %16 = vector.extract_strided_slice %12 {offsets = [8, 0], sizes = [8, 4], strides = [1, 1]} : vector<16x4xf32> to vector<8x4xf32>
    %17 = vector.broadcast %9 : vector<8x1xf32> to vector<8x4xf32>
    %18 = arith.addf %16, %17 : vector<8x4xf32>
    %19 = tpu.iota {dimensions = array<i32: 1>} : vector<1x128xi32>
    %c0_15 = arith.constant 0 : index
    %c0_16 = arith.constant 0 : index
    %c0_17 = arith.constant 0 : index
    %c0_18 = arith.constant 0 : index
    %20 = vector.load %arg1[%c0_15, %c0_16, %c0_17, %c0_18] : memref<1x4x8x128xf32, #tpu.memory_space<vmem>>, vector<1x1x8x128xf32>
    %21 = vector.shape_cast %20 : vector<1x1x8x128xf32> to vector<8x128xf32>
    %cst_19 = arith.constant dense<0.000000e+00> : vector<8x128xf32>
    %22 = tpu.matmul %0, %21, %cst_19 {dimension_numbers = #tpu.dot_dimension_numbers<[1], [0], [0], [1], [0, 0, 1, 1], [], []>, precision = #tpu.contract_precision<fp32>} : vector<8x8xf32>, vector<8x128xf32>, vector<8x128xf32> -> vector<8x128xf32>
    %23 = vector.broadcast %3 : vector<8x1xf32> to vector<8x128xf32>
    %24 = arith.addf %22, %23 : vector<8x128xf32>
    %cst_20 = arith.constant 0.000000e+00 : f32
    %25 = vector.broadcast %cst_20 : f32 to vector<8x128xf32>
    %26 = arith.maximumf %24, %25 : vector<8x128xf32>
    %c1_i32 = arith.constant 1 : i32
    %27 = tpu.dynamic_rotate %26 by %c1_i32 dim 1 : vector<8x128xf32>, i32 -> vector<8x128xf32>
    %c-1_i32 = arith.constant -1 : i32
    %28 = vector.broadcast %c-1_i32 : i32 to vector<1x128xi32>
    %29 = arith.addi %19, %28 : vector<1x128xi32>
    %c0_i32 = arith.constant 0 : i32
    %30 = vector.broadcast %c0_i32 : i32 to vector<1x128xi32>
    %31 = arith.cmpi sge, %29, %30 : vector<1x128xi32>
    %c-1_i32_21 = arith.constant -1 : i32
    %32 = vector.broadcast %c-1_i32_21 : i32 to vector<1x128xi32>
    %33 = arith.addi %19, %32 : vector<1x128xi32>
    %c128_i32 = arith.constant 128 : i32
    %34 = vector.broadcast %c128_i32 : i32 to vector<1x128xi32>
    %35 = arith.cmpi slt, %33, %34 : vector<1x128xi32>
    %36 = arith.andi %31, %35 : vector<1x128xi1>
    %cst_22 = arith.constant 0.000000e+00 : f32
    %37 = vector.shape_cast %36 : vector<1x128xi1> to vector<1x128xi1>
    %38 = vector.broadcast %37 : vector<1x128xi1> to vector<8x128xi1>
    %39 = vector.broadcast %cst_22 : f32 to vector<8x128xf32>
    %40 = arith.select %38, %27, %39 : vector<8x128xi1>, vector<8x128xf32>
    %c127_i32 = arith.constant 127 : i32
    %41 = tpu.dynamic_rotate %26 by %c127_i32 dim 1 : vector<8x128xf32>, i32 -> vector<8x128xf32>
    %c1_i32_23 = arith.constant 1 : i32
    %42 = vector.broadcast %c1_i32_23 : i32 to vector<1x128xi32>
    %43 = arith.addi %19, %42 : vector<1x128xi32>
    %c0_i32_24 = arith.constant 0 : i32
    %44 = vector.broadcast %c0_i32_24 : i32 to vector<1x128xi32>
    %45 = arith.cmpi sge, %43, %44 : vector<1x128xi32>
    %c1_i32_25 = arith.constant 1 : i32
    %46 = vector.broadcast %c1_i32_25 : i32 to vector<1x128xi32>
    %47 = arith.addi %19, %46 : vector<1x128xi32>
    %c128_i32_26 = arith.constant 128 : i32
    %48 = vector.broadcast %c128_i32_26 : i32 to vector<1x128xi32>
    %49 = arith.cmpi slt, %47, %48 : vector<1x128xi32>
    %50 = arith.andi %45, %49 : vector<1x128xi1>
    %cst_27 = arith.constant 0.000000e+00 : f32
    %51 = vector.shape_cast %50 : vector<1x128xi1> to vector<1x128xi1>
    %52 = vector.broadcast %51 : vector<1x128xi1> to vector<8x128xi1>
    %53 = vector.broadcast %cst_27 : f32 to vector<8x128xf32>
    %54 = arith.select %52, %41, %53 : vector<8x128xi1>, vector<8x128xf32>
    %55 = tpu.concatenate %40, %26, %54 in 0 : vector<8x128xf32>, vector<8x128xf32>, vector<8x128xf32> -> vector<24x128xf32>
    %cst_28 = arith.constant dense<0.000000e+00> : vector<8x128xf32>
    %56 = tpu.matmul %1, %55, %cst_28 {dimension_numbers = #tpu.dot_dimension_numbers<[1], [0], [0], [1], [0, 0, 1, 1], [], []>, precision = #tpu.contract_precision<fp32>} : vector<8x24xf32>, vector<24x128xf32>, vector<8x128xf32> -> vector<8x128xf32>
    %57 = vector.broadcast %5 : vector<8x1xf32> to vector<8x128xf32>
    %58 = arith.addf %56, %57 : vector<8x128xf32>
    %cst_29 = arith.constant dense<0.000000e+00> : vector<8xf32>
    %59 = vector.multi_reduction <add>, %58, %cst_29 [1] : vector<8x128xf32> to vector<8xf32>
    %60 = vector.shape_cast %59 : vector<8xf32> to vector<8x1xf32>
    %c0_30 = arith.constant 0 : index
    %c1_31 = arith.constant 1 : index
    %c0_32 = arith.constant 0 : index
    %c0_33 = arith.constant 0 : index
    %61 = vector.load %arg1[%c0_30, %c1_31, %c0_32, %c0_33] : memref<1x4x8x128xf32, #tpu.memory_space<vmem>>, vector<1x1x8x128xf32>
    %62 = vector.shape_cast %61 : vector<1x1x8x128xf32> to vector<8x128xf32>
    %cst_34 = arith.constant dense<0.000000e+00> : vector<8x128xf32>
    %63 = tpu.matmul %0, %62, %cst_34 {dimension_numbers = #tpu.dot_dimension_numbers<[1], [0], [0], [1], [0, 0, 1, 1], [], []>, precision = #tpu.contract_precision<fp32>} : vector<8x8xf32>, vector<8x128xf32>, vector<8x128xf32> -> vector<8x128xf32>
    %64 = vector.broadcast %3 : vector<8x1xf32> to vector<8x128xf32>
    %65 = arith.addf %63, %64 : vector<8x128xf32>
    %cst_35 = arith.constant 0.000000e+00 : f32
    %66 = vector.broadcast %cst_35 : f32 to vector<8x128xf32>
    %67 = arith.maximumf %65, %66 : vector<8x128xf32>
    %c1_i32_36 = arith.constant 1 : i32
    %68 = tpu.dynamic_rotate %67 by %c1_i32_36 dim 1 : vector<8x128xf32>, i32 -> vector<8x128xf32>
    %c-1_i32_37 = arith.constant -1 : i32
    %69 = vector.broadcast %c-1_i32_37 : i32 to vector<1x128xi32>
    %70 = arith.addi %19, %69 : vector<1x128xi32>
    %c0_i32_38 = arith.constant 0 : i32
    %71 = vector.broadcast %c0_i32_38 : i32 to vector<1x128xi32>
    %72 = arith.cmpi sge, %70, %71 : vector<1x128xi32>
    %c-1_i32_39 = arith.constant -1 : i32
    %73 = vector.broadcast %c-1_i32_39 : i32 to vector<1x128xi32>
    %74 = arith.addi %19, %73 : vector<1x128xi32>
    %c128_i32_40 = arith.constant 128 : i32
    %75 = vector.broadcast %c128_i32_40 : i32 to vector<1x128xi32>
    %76 = arith.cmpi slt, %74, %75 : vector<1x128xi32>
    %77 = arith.andi %72, %76 : vector<1x128xi1>
    %cst_41 = arith.constant 0.000000e+00 : f32
    %78 = vector.shape_cast %77 : vector<1x128xi1> to vector<1x128xi1>
    %79 = vector.broadcast %78 : vector<1x128xi1> to vector<8x128xi1>
    %80 = vector.broadcast %cst_41 : f32 to vector<8x128xf32>
    %81 = arith.select %79, %68, %80 : vector<8x128xi1>, vector<8x128xf32>
    %c127_i32_42 = arith.constant 127 : i32
    %82 = tpu.dynamic_rotate %67 by %c127_i32_42 dim 1 : vector<8x128xf32>, i32 -> vector<8x128xf32>
    %c1_i32_43 = arith.constant 1 : i32
    %83 = vector.broadcast %c1_i32_43 : i32 to vector<1x128xi32>
    %84 = arith.addi %19, %83 : vector<1x128xi32>
    %c0_i32_44 = arith.constant 0 : i32
    %85 = vector.broadcast %c0_i32_44 : i32 to vector<1x128xi32>
    %86 = arith.cmpi sge, %84, %85 : vector<1x128xi32>
    %c1_i32_45 = arith.constant 1 : i32
    %87 = vector.broadcast %c1_i32_45 : i32 to vector<1x128xi32>
    %88 = arith.addi %19, %87 : vector<1x128xi32>
    %c128_i32_46 = arith.constant 128 : i32
    %89 = vector.broadcast %c128_i32_46 : i32 to vector<1x128xi32>
    %90 = arith.cmpi slt, %88, %89 : vector<1x128xi32>
    %91 = arith.andi %86, %90 : vector<1x128xi1>
    %cst_47 = arith.constant 0.000000e+00 : f32
    %92 = vector.shape_cast %91 : vector<1x128xi1> to vector<1x128xi1>
    %93 = vector.broadcast %92 : vector<1x128xi1> to vector<8x128xi1>
    %94 = vector.broadcast %cst_47 : f32 to vector<8x128xf32>
    %95 = arith.select %93, %82, %94 : vector<8x128xi1>, vector<8x128xf32>
    %96 = tpu.concatenate %81, %67, %95 in 0 : vector<8x128xf32>, vector<8x128xf32>, vector<8x128xf32> -> vector<24x128xf32>
    %cst_48 = arith.constant dense<0.000000e+00> : vector<8x128xf32>
    %97 = tpu.matmul %1, %96, %cst_48 {dimension_numbers = #tpu.dot_dimension_numbers<[1], [0], [0], [1], [0, 0, 1, 1], [], []>, precision = #tpu.contract_precision<fp32>} : vector<8x24xf32>, vector<24x128xf32>, vector<8x128xf32> -> vector<8x128xf32>
    %98 = vector.broadcast %5 : vector<8x1xf32> to vector<8x128xf32>
    %99 = arith.addf %97, %98 : vector<8x128xf32>
    %cst_49 = arith.constant dense<0.000000e+00> : vector<8xf32>
    %100 = vector.multi_reduction <add>, %99, %cst_49 [1] : vector<8x128xf32> to vector<8xf32>
    %101 = vector.shape_cast %100 : vector<8xf32> to vector<8x1xf32>
    %102 = arith.addf %60, %101 : vector<8x1xf32>
    %c0_50 = arith.constant 0 : index
    %c2_51 = arith.constant 2 : index
    %c0_52 = arith.constant 0 : index
    %c0_53 = arith.constant 0 : index
    %103 = vector.load %arg1[%c0_50, %c2_51, %c0_52, %c0_53] : memref<1x4x8x128xf32, #tpu.memory_space<vmem>>, vector<1x1x8x128xf32>
    %104 = vector.shape_cast %103 : vector<1x1x8x128xf32> to vector<8x128xf32>
    %cst_54 = arith.constant dense<0.000000e+00> : vector<8x128xf32>
    %105 = tpu.matmul %0, %104, %cst_54 {dimension_numbers = #tpu.dot_dimension_numbers<[1], [0], [0], [1], [0, 0, 1, 1], [], []>, precision = #tpu.contract_precision<fp32>} : vector<8x8xf32>, vector<8x128xf32>, vector<8x128xf32> -> vector<8x128xf32>
    %106 = vector.broadcast %3 : vector<8x1xf32> to vector<8x128xf32>
    %107 = arith.addf %105, %106 : vector<8x128xf32>
    %cst_55 = arith.constant 0.000000e+00 : f32
    %108 = vector.broadcast %cst_55 : f32 to vector<8x128xf32>
    %109 = arith.maximumf %107, %108 : vector<8x128xf32>
    %c1_i32_56 = arith.constant 1 : i32
    %110 = tpu.dynamic_rotate %109 by %c1_i32_56 dim 1 : vector<8x128xf32>, i32 -> vector<8x128xf32>
    %c-1_i32_57 = arith.constant -1 : i32
    %111 = vector.broadcast %c-1_i32_57 : i32 to vector<1x128xi32>
    %112 = arith.addi %19, %111 : vector<1x128xi32>
    %c0_i32_58 = arith.constant 0 : i32
    %113 = vector.broadcast %c0_i32_58 : i32 to vector<1x128xi32>
    %114 = arith.cmpi sge, %112, %113 : vector<1x128xi32>
    %c-1_i32_59 = arith.constant -1 : i32
    %115 = vector.broadcast %c-1_i32_59 : i32 to vector<1x128xi32>
    %116 = arith.addi %19, %115 : vector<1x128xi32>
    %c128_i32_60 = arith.constant 128 : i32
    %117 = vector.broadcast %c128_i32_60 : i32 to vector<1x128xi32>
    %118 = arith.cmpi slt, %116, %117 : vector<1x128xi32>
    %119 = arith.andi %114, %118 : vector<1x128xi1>
    %cst_61 = arith.constant 0.000000e+00 : f32
    %120 = vector.shape_cast %119 : vector<1x128xi1> to vector<1x128xi1>
    %121 = vector.broadcast %120 : vector<1x128xi1> to vector<8x128xi1>
    %122 = vector.broadcast %cst_61 : f32 to vector<8x128xf32>
    %123 = arith.select %121, %110, %122 : vector<8x128xi1>, vector<8x128xf32>
    %c127_i32_62 = arith.constant 127 : i32
    %124 = tpu.dynamic_rotate %109 by %c127_i32_62 dim 1 : vector<8x128xf32>, i32 -> vector<8x128xf32>
    %c1_i32_63 = arith.constant 1 : i32
    %125 = vector.broadcast %c1_i32_63 : i32 to vector<1x128xi32>
    %126 = arith.addi %19, %125 : vector<1x128xi32>
    %c0_i32_64 = arith.constant 0 : i32
    %127 = vector.broadcast %c0_i32_64 : i32 to vector<1x128xi32>
    %128 = arith.cmpi sge, %126, %127 : vector<1x128xi32>
    %c1_i32_65 = arith.constant 1 : i32
    %129 = vector.broadcast %c1_i32_65 : i32 to vector<1x128xi32>
    %130 = arith.addi %19, %129 : vector<1x128xi32>
    %c128_i32_66 = arith.constant 128 : i32
    %131 = vector.broadcast %c128_i32_66 : i32 to vector<1x128xi32>
    %132 = arith.cmpi slt, %130, %131 : vector<1x128xi32>
    %133 = arith.andi %128, %132 : vector<1x128xi1>
    %cst_67 = arith.constant 0.000000e+00 : f32
    %134 = vector.shape_cast %133 : vector<1x128xi1> to vector<1x128xi1>
    %135 = vector.broadcast %134 : vector<1x128xi1> to vector<8x128xi1>
    %136 = vector.broadcast %cst_67 : f32 to vector<8x128xf32>
    %137 = arith.select %135, %124, %136 : vector<8x128xi1>, vector<8x128xf32>
    %138 = tpu.concatenate %123, %109, %137 in 0 : vector<8x128xf32>, vector<8x128xf32>, vector<8x128xf32> -> vector<24x128xf32>
    %cst_68 = arith.constant dense<0.000000e+00> : vector<8x128xf32>
    %139 = tpu.matmul %1, %138, %cst_68 {dimension_numbers = #tpu.dot_dimension_numbers<[1], [0], [0], [1], [0, 0, 1, 1], [], []>, precision = #tpu.contract_precision<fp32>} : vector<8x24xf32>, vector<24x128xf32>, vector<8x128xf32> -> vector<8x128xf32>
    %140 = vector.broadcast %5 : vector<8x1xf32> to vector<8x128xf32>
    %141 = arith.addf %139, %140 : vector<8x128xf32>
    %cst_69 = arith.constant dense<0.000000e+00> : vector<8xf32>
    %142 = vector.multi_reduction <add>, %141, %cst_69 [1] : vector<8x128xf32> to vector<8xf32>
    %143 = vector.shape_cast %142 : vector<8xf32> to vector<8x1xf32>
    %144 = arith.addf %102, %143 : vector<8x1xf32>
    %c0_70 = arith.constant 0 : index
    %c3_71 = arith.constant 3 : index
    %c0_72 = arith.constant 0 : index
    %c0_73 = arith.constant 0 : index
    %145 = vector.load %arg1[%c0_70, %c3_71, %c0_72, %c0_73] : memref<1x4x8x128xf32, #tpu.memory_space<vmem>>, vector<1x1x8x128xf32>
    %146 = vector.shape_cast %145 : vector<1x1x8x128xf32> to vector<8x128xf32>
    %cst_74 = arith.constant dense<0.000000e+00> : vector<8x128xf32>
    %147 = tpu.matmul %0, %146, %cst_74 {dimension_numbers = #tpu.dot_dimension_numbers<[1], [0], [0], [1], [0, 0, 1, 1], [], []>, precision = #tpu.contract_precision<fp32>} : vector<8x8xf32>, vector<8x128xf32>, vector<8x128xf32> -> vector<8x128xf32>
    %148 = vector.broadcast %3 : vector<8x1xf32> to vector<8x128xf32>
    %149 = arith.addf %147, %148 : vector<8x128xf32>
    %cst_75 = arith.constant 0.000000e+00 : f32
    %150 = vector.broadcast %cst_75 : f32 to vector<8x128xf32>
    %151 = arith.maximumf %149, %150 : vector<8x128xf32>
    %c1_i32_76 = arith.constant 1 : i32
    %152 = tpu.dynamic_rotate %151 by %c1_i32_76 dim 1 : vector<8x128xf32>, i32 -> vector<8x128xf32>
    %c-1_i32_77 = arith.constant -1 : i32
    %153 = vector.broadcast %c-1_i32_77 : i32 to vector<1x128xi32>
    %154 = arith.addi %19, %153 : vector<1x128xi32>
    %c0_i32_78 = arith.constant 0 : i32
    %155 = vector.broadcast %c0_i32_78 : i32 to vector<1x128xi32>
    %156 = arith.cmpi sge, %154, %155 : vector<1x128xi32>
    %c-1_i32_79 = arith.constant -1 : i32
    %157 = vector.broadcast %c-1_i32_79 : i32 to vector<1x128xi32>
    %158 = arith.addi %19, %157 : vector<1x128xi32>
    %c128_i32_80 = arith.constant 128 : i32
    %159 = vector.broadcast %c128_i32_80 : i32 to vector<1x128xi32>
    %160 = arith.cmpi slt, %158, %159 : vector<1x128xi32>
    %161 = arith.andi %156, %160 : vector<1x128xi1>
    %cst_81 = arith.constant 0.000000e+00 : f32
    %162 = vector.shape_cast %161 : vector<1x128xi1> to vector<1x128xi1>
    %163 = vector.broadcast %162 : vector<1x128xi1> to vector<8x128xi1>
    %164 = vector.broadcast %cst_81 : f32 to vector<8x128xf32>
    %165 = arith.select %163, %152, %164 : vector<8x128xi1>, vector<8x128xf32>
    %c127_i32_82 = arith.constant 127 : i32
    %166 = tpu.dynamic_rotate %151 by %c127_i32_82 dim 1 : vector<8x128xf32>, i32 -> vector<8x128xf32>
    %c1_i32_83 = arith.constant 1 : i32
    %167 = vector.broadcast %c1_i32_83 : i32 to vector<1x128xi32>
    %168 = arith.addi %19, %167 : vector<1x128xi32>
    %c0_i32_84 = arith.constant 0 : i32
    %169 = vector.broadcast %c0_i32_84 : i32 to vector<1x128xi32>
    %170 = arith.cmpi sge, %168, %169 : vector<1x128xi32>
    %c1_i32_85 = arith.constant 1 : i32
    %171 = vector.broadcast %c1_i32_85 : i32 to vector<1x128xi32>
    %172 = arith.addi %19, %171 : vector<1x128xi32>
    %c128_i32_86 = arith.constant 128 : i32
    %173 = vector.broadcast %c128_i32_86 : i32 to vector<1x128xi32>
    %174 = arith.cmpi slt, %172, %173 : vector<1x128xi32>
    %175 = arith.andi %170, %174 : vector<1x128xi1>
    %cst_87 = arith.constant 0.000000e+00 : f32
    %176 = vector.shape_cast %175 : vector<1x128xi1> to vector<1x128xi1>
    %177 = vector.broadcast %176 : vector<1x128xi1> to vector<8x128xi1>
    %178 = vector.broadcast %cst_87 : f32 to vector<8x128xf32>
    %179 = arith.select %177, %166, %178 : vector<8x128xi1>, vector<8x128xf32>
    %180 = tpu.concatenate %165, %151, %179 in 0 : vector<8x128xf32>, vector<8x128xf32>, vector<8x128xf32> -> vector<24x128xf32>
    %cst_88 = arith.constant dense<0.000000e+00> : vector<8x128xf32>
    %181 = tpu.matmul %1, %180, %cst_88 {dimension_numbers = #tpu.dot_dimension_numbers<[1], [0], [0], [1], [0, 0, 1, 1], [], []>, precision = #tpu.contract_precision<fp32>} : vector<8x24xf32>, vector<24x128xf32>, vector<8x128xf32> -> vector<8x128xf32>
    %182 = vector.broadcast %5 : vector<8x1xf32> to vector<8x128xf32>
    %183 = arith.addf %181, %182 : vector<8x128xf32>
    %cst_89 = arith.constant dense<0.000000e+00> : vector<8xf32>
    %184 = vector.multi_reduction <add>, %183, %cst_89 [1] : vector<8x128xf32> to vector<8xf32>
    %185 = vector.shape_cast %184 : vector<8xf32> to vector<8x1xf32>
    %186 = arith.addf %144, %185 : vector<8x1xf32>
    %cst_90 = arith.constant 0.001953125 : f32
    %187 = vector.broadcast %cst_90 : f32 to vector<8x1xf32>
    %188 = arith.mulf %186, %187 : vector<8x1xf32>
    %189 = vector.broadcast %188 : vector<8x1xf32> to vector<8x128xf32>
    %190 = arith.subf %58, %189 : vector<8x128xf32>
    %191 = arith.mulf %190, %190 : vector<8x128xf32>
    %cst_91 = arith.constant dense<0.000000e+00> : vector<8xf32>
    %192 = vector.multi_reduction <add>, %191, %cst_91 [1] : vector<8x128xf32> to vector<8xf32>
    %193 = vector.shape_cast %192 : vector<8xf32> to vector<8x1xf32>
    %194 = vector.broadcast %188 : vector<8x1xf32> to vector<8x128xf32>
    %195 = arith.subf %99, %194 : vector<8x128xf32>
    %196 = arith.mulf %195, %195 : vector<8x128xf32>
    %cst_92 = arith.constant dense<0.000000e+00> : vector<8xf32>
    %197 = vector.multi_reduction <add>, %196, %cst_92 [1] : vector<8x128xf32> to vector<8xf32>
    %198 = vector.shape_cast %197 : vector<8xf32> to vector<8x1xf32>
    %199 = arith.addf %193, %198 : vector<8x1xf32>
    %200 = vector.broadcast %188 : vector<8x1xf32> to vector<8x128xf32>
    %201 = arith.subf %141, %200 : vector<8x128xf32>
    %202 = arith.mulf %201, %201 : vector<8x128xf32>
    %cst_93 = arith.constant dense<0.000000e+00> : vector<8xf32>
    %203 = vector.multi_reduction <add>, %202, %cst_93 [1] : vector<8x128xf32> to vector<8xf32>
    %204 = vector.shape_cast %203 : vector<8xf32> to vector<8x1xf32>
    %205 = arith.addf %199, %204 : vector<8x1xf32>
    %206 = vector.broadcast %188 : vector<8x1xf32> to vector<8x128xf32>
    %207 = arith.subf %183, %206 : vector<8x128xf32>
    %208 = arith.mulf %207, %207 : vector<8x128xf32>
    %cst_94 = arith.constant dense<0.000000e+00> : vector<8xf32>
    %209 = vector.multi_reduction <add>, %208, %cst_94 [1] : vector<8x128xf32> to vector<8xf32>
    %210 = vector.shape_cast %209 : vector<8xf32> to vector<8x1xf32>
    %211 = arith.addf %205, %210 : vector<8x1xf32>
    %cst_95 = arith.constant 0.001953125 : f32
    %212 = vector.broadcast %cst_95 : f32 to vector<8x1xf32>
    %213 = arith.mulf %211, %212 : vector<8x1xf32>
    %cst_96 = arith.constant 9.99999974E-6 : f32
    %214 = vector.broadcast %cst_96 : f32 to vector<8x1xf32>
    %215 = arith.addf %213, %214 : vector<8x1xf32>
    %216 = math.rsqrt %215 : vector<8x1xf32>
    %217 = vector.broadcast %216 : vector<8x1xf32> to vector<8x128xf32>
    %218 = arith.mulf %190, %217 : vector<8x128xf32>
    %219 = vector.extract_strided_slice %15 {offsets = [0, 0], sizes = [8, 1], strides = [1, 1]} : vector<8x4xf32> to vector<8x1xf32>
    %220 = vector.broadcast %219 : vector<8x1xf32> to vector<8x128xf32>
    %221 = arith.mulf %220, %218 : vector<8x128xf32>
    %222 = vector.extract_strided_slice %18 {offsets = [0, 0], sizes = [8, 1], strides = [1, 1]} : vector<8x4xf32> to vector<8x1xf32>
    %223 = vector.broadcast %222 : vector<8x1xf32> to vector<8x128xf32>
    %224 = arith.addf %221, %223 : vector<8x128xf32>
    %cst_97 = arith.constant 0.000000e+00 : f32
    %225 = vector.broadcast %cst_97 : f32 to vector<8x128xf32>
    %226 = arith.maximumf %224, %225 : vector<8x128xf32>
    %227 = arith.addf %26, %226 : vector<8x128xf32>
    %c0_98 = arith.constant 0 : index
    %c0_99 = arith.constant 0 : index
    %c0_100 = arith.constant 0 : index
    %c0_101 = arith.constant 0 : index
    %228 = vector.load %arg6[%c0_98, %c0_99, %c0_100, %c0_101] : memref<1x4x8x128xf32, #tpu.memory_space<vmem>>, vector<1x1x8x128xf32>
    %229 = vector.shape_cast %228 : vector<1x1x8x128xf32> to vector<8x128xf32>
    %230 = vector.shape_cast %227 : vector<8x128xf32> to vector<1x1x8x128xf32>
    tpu.vector_store %arg6[%c0_98, %c0_99, %c0_100, %c0_101], %230 {strides = array<i32>} : memref<1x4x8x128xf32, #tpu.memory_space<vmem>>, vector<1x1x8x128xf32>,
    %231 = vector.broadcast %216 : vector<8x1xf32> to vector<8x128xf32>
    %232 = arith.mulf %195, %231 : vector<8x128xf32>
    %233 = vector.extract_strided_slice %15 {offsets = [0, 1], sizes = [8, 1], strides = [1, 1]} : vector<8x4xf32> to vector<8x1xf32>
    %234 = vector.broadcast %233 : vector<8x1xf32> to vector<8x128xf32>
    %235 = arith.mulf %234, %232 : vector<8x128xf32>
    %236 = vector.extract_strided_slice %18 {offsets = [0, 1], sizes = [8, 1], strides = [1, 1]} : vector<8x4xf32> to vector<8x1xf32>
    %237 = vector.broadcast %236 : vector<8x1xf32> to vector<8x128xf32>
    %238 = arith.addf %235, %237 : vector<8x128xf32>
    %cst_102 = arith.constant 0.000000e+00 : f32
    %239 = vector.broadcast %cst_102 : f32 to vector<8x128xf32>
    %240 = arith.maximumf %238, %239 : vector<8x128xf32>
    %241 = arith.addf %67, %240 : vector<8x128xf32>
    %c0_103 = arith.constant 0 : index
    %c1_104 = arith.constant 1 : index
    %c0_105 = arith.constant 0 : index
    %c0_106 = arith.constant 0 : index
    %242 = vector.load %arg6[%c0_103, %c1_104, %c0_105, %c0_106] : memref<1x4x8x128xf32, #tpu.memory_space<vmem>>, vector<1x1x8x128xf32>
    %243 = vector.shape_cast %242 : vector<1x1x8x128xf32> to vector<8x128xf32>
    %244 = vector.shape_cast %241 : vector<8x128xf32> to vector<1x1x8x128xf32>
    tpu.vector_store %arg6[%c0_103, %c1_104, %c0_105, %c0_106], %244 {strides = array<i32>} : memref<1x4x8x128xf32, #tpu.memory_space<vmem>>, vector<1x1x8x128xf32>,
    %245 = vector.broadcast %216 : vector<8x1xf32> to vector<8x128xf32>
    %246 = arith.mulf %201, %245 : vector<8x128xf32>
    %247 = vector.extract_strided_slice %15 {offsets = [0, 2], sizes = [8, 1], strides = [1, 1]} : vector<8x4xf32> to vector<8x1xf32>
    %248 = vector.broadcast %247 : vector<8x1xf32> to vector<8x128xf32>
    %249 = arith.mulf %248, %246 : vector<8x128xf32>
    %250 = vector.extract_strided_slice %18 {offsets = [0, 2], sizes = [8, 1], strides = [1, 1]} : vector<8x4xf32> to vector<8x1xf32>
    %251 = vector.broadcast %250 : vector<8x1xf32> to vector<8x128xf32>
    %252 = arith.addf %249, %251 : vector<8x128xf32>
    %cst_107 = arith.constant 0.000000e+00 : f32
    %253 = vector.broadcast %cst_107 : f32 to vector<8x128xf32>
    %254 = arith.maximumf %252, %253 : vector<8x128xf32>
    %255 = arith.addf %109, %254 : vector<8x128xf32>
    %c0_108 = arith.constant 0 : index
    %c2_109 = arith.constant 2 : index
    %c0_110 = arith.constant 0 : index
    %c0_111 = arith.constant 0 : index
    %256 = vector.load %arg6[%c0_108, %c2_109, %c0_110, %c0_111] : memref<1x4x8x128xf32, #tpu.memory_space<vmem>>, vector<1x1x8x128xf32>
    %257 = vector.shape_cast %256 : vector<1x1x8x128xf32> to vector<8x128xf32>
    %258 = vector.shape_cast %255 : vector<8x128xf32> to vector<1x1x8x128xf32>
    tpu.vector_store %arg6[%c0_108, %c2_109, %c0_110, %c0_111], %258 {strides = array<i32>} : memref<1x4x8x128xf32, #tpu.memory_space<vmem>>, vector<1x1x8x128xf32>,
    %259 = vector.broadcast %216 : vector<8x1xf32> to vector<8x128xf32>
    %260 = arith.mulf %207, %259 : vector<8x128xf32>
    %261 = vector.extract_strided_slice %15 {offsets = [0, 3], sizes = [8, 1], strides = [1, 1]} : vector<8x4xf32> to vector<8x1xf32>
    %262 = vector.broadcast %261 : vector<8x1xf32> to vector<8x128xf32>
    %263 = arith.mulf %262, %260 : vector<8x128xf32>
    %264 = vector.extract_strided_slice %18 {offsets = [0, 3], sizes = [8, 1], strides = [1, 1]} : vector<8x4xf32> to vector<8x1xf32>
    %265 = vector.broadcast %264 : vector<8x1xf32> to vector<8x128xf32>
    %266 = arith.addf %263, %265 : vector<8x128xf32>
    %cst_112 = arith.constant 0.000000e+00 : f32
    %267 = vector.broadcast %cst_112 : f32 to vector<8x128xf32>
    %268 = arith.maximumf %266, %267 : vector<8x128xf32>
    %269 = arith.addf %151, %268 : vector<8x128xf32>
    %c0_113 = arith.constant 0 : index
    %c3_114 = arith.constant 3 : index
    %c0_115 = arith.constant 0 : index
    %c0_116 = arith.constant 0 : index
    %270 = vector.load %arg6[%c0_113, %c3_114, %c0_115, %c0_116] : memref<1x4x8x128xf32, #tpu.memory_space<vmem>>, vector<1x1x8x128xf32>
    %271 = vector.shape_cast %270 : vector<1x1x8x128xf32> to vector<8x128xf32>
    %272 = vector.shape_cast %269 : vector<8x128xf32> to vector<1x1x8x128xf32>
    tpu.vector_store %arg6[%c0_113, %c3_114, %c0_115, %c0_116], %272 {strides = array<i32>} : memref<1x4x8x128xf32, #tpu.memory_space<vmem>>, vector<1x1x8x128xf32>,
    return
  }
  func.func @transform_0(%arg0: i32) -> (i32, i32, i32, i32) {
    %c0_i32 = arith.constant 0 : i32
    %c0_i32_0 = arith.constant 0 : i32
    %c0_i32_1 = arith.constant 0 : i32
    %c0_i32_2 = arith.constant 0 : i32
    return %arg0, %c0_i32, %c0_i32_0, %c0_i32_1 : i32, i32, i32, i32
  }
  func.func @transform_1(%arg0: i32) -> (i32, i32) {
    %c0_i32 = arith.constant 0 : i32
    %c0_i32_0 = arith.constant 0 : i32
    %c0_i32_1 = arith.constant 0 : i32
    return %c0_i32, %c0_i32_0 : i32, i32
  }
  func.func @transform_2(%arg0: i32) -> (i32, i32) {
    %c0_i32 = arith.constant 0 : i32
    %c0_i32_0 = arith.constant 0 : i32
    %c0_i32_1 = arith.constant 0 : i32
    return %c0_i32, %c0_i32_0 : i32, i32
  }
  func.func @transform_3(%arg0: i32) -> (i32, i32) {
    %c0_i32 = arith.constant 0 : i32
    %c0_i32_0 = arith.constant 0 : i32
    %c0_i32_1 = arith.constant 0 : i32
    return %c0_i32, %c0_i32_0 : i32, i32
  }
  func.func @transform_4(%arg0: i32) -> (i32, i32, i32) {
    %c0_i32 = arith.constant 0 : i32
    %c0_i32_0 = arith.constant 0 : i32
    %c0_i32_1 = arith.constant 0 : i32
    %c0_i32_2 = arith.constant 0 : i32
    return %c0_i32, %c0_i32_0, %c0_i32_1 : i32, i32, i32
  }
  func.func @transform_5(%arg0: i32) -> (i32, i32, i32, i32) {
    %c0_i32 = arith.constant 0 : i32
    %c0_i32_0 = arith.constant 0 : i32
    %c0_i32_1 = arith.constant 0 : i32
    %c0_i32_2 = arith.constant 0 : i32
    return %arg0, %c0_i32, %c0_i32_0, %c0_i32_1 : i32, i32, i32, i32
  }
}

</mosaic_0001>

<llo_original>
// kernel: tpu_custom_call.1
$region0: #{tpu_custom_call.1}
  #allocation0 [shape = 'u32[]', space=smem, size = 0x4, offset = 0x4, fixed_abs, tag = 'smem constant byte address 0x4 - core index']
  #allocation1 [shape = 'u32[144,128]{1,0:T(1,128)}', space=vmem, size = 0x12000, scoped, tag = 'internal scratch']
  %s0 = inlined_call_operand.vmem [shape: f32[1,4,8,128], index: 0, kind: input, shape index: {}]
  %s1 = inlined_call_operand.vmem [shape: f32[16,4], index: 1, kind: input, shape index: {}]
  %s2 = inlined_call_operand.vmem [shape: f32[8,32], index: 2, kind: input, shape index: {}]
  %s3 = inlined_call_operand.vmem [shape: f32[16,16], index: 3, kind: input, shape index: {}]
  %s4 = inlined_call_operand.vmem [shape: f32[4,8,1], index: 4, kind: input, shape index: {}]
  %s5 = inlined_call_operand.hbm [shape: f32[1,4,8,128], index: 5, kind: output, shape index: {}]
  %s6 = sld [smem:[#allocation0]]
  $region30: #{tpu_custom_call.1} parent=0
    _
  %s8 = ssub.s32 1, %s6
  %s9 = scalar_select 0, %s8, %s6
  $region1: #{tpu_custom_call.1} parent=0
    #allocation2 [shape = 'u8[16384]{0}', space=vmem, size = 0x4000, scoped, tag = 'output window, operand 0, single buffered']
    #allocation3 [shape = 's32[1]{0}', space=sflag, size = 0x4, scoped, tag = 'scoped memory for tpu_custom_call.1']
    %10 = vsyncpa [#allocation3], 0
    // Predicated region
    $region2: #{tpu_custom_call.1} parent=1 // pred_check
      _
    $region3: #{tpu_custom_call.1} parent=1 // pred_check_branch
      %12 = sbr.rel (0) target = $region5
    $region4: #{tpu_custom_call.1} parent=1 // pred_region
      _
    $region5: #{tpu_custom_call.1} parent=1 // pred_fallthru
      _
    // Predicated region
    $region6: #{tpu_custom_call.1} parent=1 // pred_check
      _
    $region7: #{tpu_custom_call.1} parent=1 // pred_check_branch
      %14 = sbr.rel (0) target = $region9
    $region8: #{tpu_custom_call.1} parent=1 // pred_region
      _
    $region9: #{tpu_custom_call.1} parent=1 // pred_fallthru
      _
    // Predicated region
    $region10: #{tpu_custom_call.1} parent=1 // pred_check
      _
    $region11: #{tpu_custom_call.1} parent=1 // pred_check_branch
      %16 = sbr.rel (0) target = $region13
    $region12: #{tpu_custom_call.1} parent=1 // pred_region
      _
    $region13: #{tpu_custom_call.1} parent=1 // pred_fallthru
      _
    // Predicated region
    $region14: #{tpu_custom_call.1} parent=1 // pred_check
      _
    $region15: #{tpu_custom_call.1} parent=1 // pred_check_branch
      %18 = sbr.rel (0) target = $region17
    $region16: #{tpu_custom_call.1} parent=1 // pred_region
      _
    $region17: #{tpu_custom_call.1} parent=1 // pred_fallthru
      _
    // Predicated region
    $region18: #{tpu_custom_call.1} parent=1 // pred_check
      _
    $region19: #{tpu_custom_call.1} parent=1 // pred_check_branch
      %20 = sbr.rel (0) target = $region21
    $region20: #{tpu_custom_call.1} parent=1 // pred_region
      _
    $region21: #{tpu_custom_call.1} parent=1 // pred_fallthru
      _
    %v21 = vld [vmem:[%s2] sm:$0xff]
    %v22 = vld [vmem:[%s4] sm:$0xff]
    %s23 = scalar_lea.vmem %s4, 8
    %v24 = vld [vmem:[%s23] sm:$0xff]
    %s25 = scalar_lea.vmem %s4, 16
    %v26 = vld [vmem:[%s25] sm:$0xff]
    %s27 = scalar_lea.vmem %s4, 24
    %v28 = vld [vmem:[%s27] sm:$0xff]
    %v29 = vld [vmem:[%s3] sm:$0xff]
    %v30 = vld [vmem:[%s3 + $0x8] sm:$0xff]
    %v31 = vld [vmem:[%s1] sm:$0xff]
    %v32 = vld [vmem:[%s1 + $0x8] sm:$0xff]
    %vm33 = vcmask 130048
    %v35 = vsel %vm33, %v29, 0
    %v38 = vsel %vm33, %v30, 0
    %40 = vmatprep.subr.mxu0 0.0
    %v41 = vand.u32 %v31, 4294901760
    %42 = vmatpush1.msra.mxu0 %v41
    %43 = vmatprep.subr.mxu0 0.0
    %v44 = vand.u32 %v32, 4294901760
    %45 = vmatpush1.msra.mxu0 %v44
    %46 = vmatprep.subr.mxu0 0.0
    %47 = vmatpush1.msra.mxu0 0.0
    %48 = vmatprep.subr.mxu0 0.0
    %49 = vmatpush1.msra.mxu0 0.0
    %50 = vmatprep.subr.mxu0 0.0
    %51 = vmatpush1.msra.mxu0 0.0
    %52 = vmatprep.subr.mxu0 0.0
    %53 = vmatpush1.msra.mxu0 0.0
    %54 = vmatprep.subr.mxu0 0.0
    %55 = vmatpush1.msra.mxu0 0.0
    %56 = vmatprep.subr.mxu0 0.0
    %57 = vmatpush1.msra.mxu0 0.0
    %58 = vmatprep.subr.mxu0 0.0
    %59 = vmatpush1.msra.mxu0 0.0
    %60 = vmatprep.subr.mxu0 0.0
    %61 = vmatpush1.msra.mxu0 0.0
    %62 = vmatprep.subr.mxu0 0.0
    %63 = vmatpush1.msra.mxu0 0.0
    %64 = vmatprep.subr.mxu0 0.0
    %65 = vmatpush1.msra.mxu0 0.0
    %66 = vmatprep.subr.mxu0 0.0
    %67 = vmatpush1.msra.mxu0 0.0
    %68 = vmatprep.subr.mxu0 0.0
    %69 = vmatpush1.msra.mxu0 0.0
    %70 = vmatprep.subr.mxu0 0.0
    %71 = vmatpush1.msra.mxu0 0.0
    %72 = vmatprep.subr.mxu0 0.0
    %73 = vmatpush1.msra.mxu0 0.0
    %74 = vmatprep.subr.mxu0 0.0
    %75 = vmatpush1.msra.mxu0 0.0
    %76 = vmatprep.subr.mxu0 0.0
    %77 = vmatpush1.msra.mxu0 0.0
    %78 = vmatprep.subr.mxu0 0.0
    %79 = vmatpush1.msra.mxu0 0.0
    %80 = vmatprep.subr.mxu0 0.0
    %81 = vmatpush1.msra.mxu0 0.0
    %82 = vmatprep.subr.mxu0 0.0
    %83 = vmatpush1.msra.mxu0 0.0
    %84 = vmatprep.subr.mxu0 0.0
    %85 = vmatpush1.msra.mxu0 0.0
    %86 = vmatprep.subr.mxu0 0.0
    %87 = vmatpush1.msra.mxu0 0.0
    %88 = vmatprep.subr.mxu0 0.0
    %89 = vmatpush1.msra.mxu0 0.0
    %90 = vmatprep.subr.mxu0 0.0
    %91 = vmatpush1.msra.mxu0 0.0
    %92 = vmatprep.subr.mxu0 0.0
    %93 = vmatpush1.msra.mxu0 0.0
    %94 = vmatprep.subr.mxu0 0.0
    %95 = vmatpush1.msra.mxu0 0.0
    %96 = vmatprep.subr.mxu0 0.0
    %97 = vmatpush1.msra.mxu0 0.0
    %98 = vmatprep.subr.mxu0 0.0
    %99 = vmatpush1.msra.mxu0 0.0
    %100 = vmatprep.subr.mxu0 0.0
    %101 = vmatpush1.msra.mxu0 0.0
    %102 = vmatprep.subr.mxu0 0.0
    %103 = vmatpush1.msra.mxu0 0.0
    %104 = vmatprep.subr.mxu0 0.0
    %105 = vmatpush1.msra.mxu0 0.0
    %106 = vmatprep.mubr.f32.mxu0 0.0
    %v107 = vand.u32 %v35, 4294901760
    %v108 = vsub.f32 %v35, %v107
    %v109 = vand.u32 %v108, 4294901760
    %v110 = vsub.f32 %v108, %v109
    %v111 = vand.u32 %v110, 4294901760
    %112 = vmatmul.mubr.f32.gmra.mrb[0].mxu0 %v111
    %v113 = vpop.f32.mrb[0].mxu0
    %v114 = vadd.f32 0.0, %v113
    %v115 = vpop.f32.mrb[0].mxu0
    %116 = vmatprep.mubr.f32.mxu0 0.0
    %v117 = vand.u32 %v38, 4294901760
    %v118 = vsub.f32 %v38, %v117
    %v119 = vand.u32 %v118, 4294901760
    %v120 = vsub.f32 %v118, %v119
    %v121 = vand.u32 %v120, 4294901760
    %122 = vmatmul.mubr.f32.gmra.mrb[0].mxu0 %v121
    %v123 = vpop.f32.mrb[0].mxu0
    %v124 = vadd.f32 0.0, %v123
    %v125 = vpop.f32.mrb[0].mxu0
    %126 = vdwg.mxu0
    %127 = vmatprep.subr.mxu0 0.0
    %v128 = vand.u32 %v31, 4294901760
    %v129 = vsub.f32 %v31, %v128
    %v130 = vand.u32 %v129, 4294901760
    %v131 = vsub.f32 %v129, %v130
    %v132 = vand.u32 %v131, 4294901760
    %133 = vmatpush1.msra.mxu0 %v132
    %134 = vmatprep.subr.mxu0 0.0
    %v135 = vand.u32 %v32, 4294901760
    %v136 = vsub.f32 %v32, %v135
    %v137 = vand.u32 %v136, 4294901760
    %v138 = vsub.f32 %v136, %v137
    %v139 = vand.u32 %v138, 4294901760
    %140 = vmatpush1.msra.mxu0 %v139
    %141 = vmatprep.subr.mxu0 0.0
    %142 = vmatpush1.msra.mxu0 0.0
    %143 = vmatprep.subr.mxu0 0.0
    %144 = vmatpush1.msra.mxu0 0.0
    %145 = vmatprep.subr.mxu0 0.0
    %146 = vmatpush1.msra.mxu0 0.0
    %147 = vmatprep.subr.mxu0 0.0
    %148 = vmatpush1.msra.mxu0 0.0
    %149 = vmatprep.subr.mxu0 0.0
    %150 = vmatpush1.msra.mxu0 0.0
    %151 = vmatprep.subr.mxu0 0.0
    %152 = vmatpush1.msra.mxu0 0.0
    %153 = vmatprep.subr.mxu0 0.0
    %154 = vmatpush1.msra.mxu0 0.0
    %155 = vmatprep.subr.mxu0 0.0
    %156 = vmatpush1.msra.mxu0 0.0
    %157 = vmatprep.subr.mxu0 0.0
    %158 = vmatpush1.msra.mxu0 0.0
    %159 = vmatprep.subr.mxu0 0.0
    %160 = vmatpush1.msra.mxu0 0.0
    %161 = vmatprep.subr.mxu0 0.0
    %162 = vmatpush1.msra.mxu0 0.0
    %163 = vmatprep.subr.mxu0 0.0
    %164 = vmatpush1.msra.mxu0 0.0
    %165 = vmatprep.subr.mxu0 0.0
    %166 = vmatpush1.msra.mxu0 0.0
    %167 = vmatprep.subr.mxu0 0.0
    %168 = vmatpush1.msra.mxu0 0.0
    %169 = vmatprep.subr.mxu0 0.0
    %170 = vmatpush1.msra.mxu0 0.0
    %171 = vmatprep.subr.mxu0 0.0
    %172 = vmatpush1.msra.mxu0 0.0
    %173 = vmatprep.subr.mxu0 0.0
    %174 = vmatpush1.msra.mxu0 0.0
    %175 = vmatprep.subr.mxu0 0.0
    %176 = vmatpush1.msra.mxu0 0.0
    %177 = vmatprep.subr.mxu0 0.0
    %178 = vmatpush1.msra.mxu0 0.0
    %179 = vmatprep.subr.mxu0 0.0
    %180 = vmatpush1.msra.mxu0 0.0
    %181 = vmatprep.subr.mxu0 0.0
    %182 = vmatpush1.msra.mxu0 0.0
    %183 = vmatprep.subr.mxu0 0.0
    %184 = vmatpush1.msra.mxu0 0.0
    %185 = vmatprep.subr.mxu0 0.0
    %186 = vmatpush1.msra.mxu0 0.0
    %187 = vmatprep.subr.mxu0 0.0
    %188 = vmatpush1.msra.mxu0 0.0
    %189 = vmatprep.subr.mxu0 0.0
    %190 = vmatpush1.msra.mxu0 0.0
    %191 = vmatprep.subr.mxu0 0.0
    %192 = vmatpush1.msra.mxu0 0.0
    %193 = vmatprep.subr.mxu0 0.0
    %194 = vmatpush1.msra.mxu0 0.0
    %195 = vmatprep.subr.mxu0 0.0
    %196 = vmatpush1.msra.mxu0 0.0
    %197 = vmatprep.subr.mxu0 0.0
    %198 = vmatpush1.msra.mxu0 0.0
    %199 = vmatprep.subr.mxu0 0.0
    %200 = vmatpush1.msra.mxu0 0.0
    %201 = vmatprep.mubr.f32.mxu0 0.0
    %v202 = vand.u32 %v35, 4294901760
    %203 = vmatmul.mubr.f32.gmra.mrb[0].mxu0 %v202
    %v204 = vpop.f32.mrb[0].mxu0
    %v205 = vadd.f32 %v114, %v204
    %v206 = vpop.f32.mrb[0].mxu0
    %207 = vmatprep.mubr.f32.mxu0 0.0
    %v208 = vand.u32 %v38, 4294901760
    %209 = vmatmul.mubr.f32.gmra.mrb[0].mxu0 %v208
    %v210 = vpop.f32.mrb[0].mxu0
    %v211 = vadd.f32 %v124, %v210
    %v212 = vpop.f32.mrb[0].mxu0
    %213 = vdwg.mxu0
    %214 = vmatprep.subr.mxu0 0.0
    %v215 = vand.u32 %v31, 4294901760
    %v216 = vsub.f32 %v31, %v215
    %217 = vmatpush1.msra.mxu0 %v216
    %218 = vmatprep.subr.mxu0 0.0
    %v219 = vand.u32 %v32, 4294901760
    %v220 = vsub.f32 %v32, %v219
    %221 = vmatpush1.msra.mxu0 %v220
    %222 = vmatprep.subr.mxu0 0.0
    %223 = vmatpush1.msra.mxu0 0.0
    %224 = vmatprep.subr.mxu0 0.0
    %225 = vmatpush1.msra.mxu0 0.0
    %226 = vmatprep.subr.mxu0 0.0
    %227 = vmatpush1.msra.mxu0 0.0
    %228 = vmatprep.subr.mxu0 0.0
    %229 = vmatpush1.msra.mxu0 0.0
    %230 = vmatprep.subr.mxu0 0.0
    %231 = vmatpush1.msra.mxu0 0.0
    %232 = vmatprep.subr.mxu0 0.0
    %233 = vmatpush1.msra.mxu0 0.0
    %234 = vmatprep.subr.mxu0 0.0
    %235 = vmatpush1.msra.mxu0 0.0
    %236 = vmatprep.subr.mxu0 0.0
    %237 = vmatpush1.msra.mxu0 0.0
    %238 = vmatprep.subr.mxu0 0.0
    %239 = vmatpush1.msra.mxu0 0.0
    %240 = vmatprep.subr.mxu0 0.0
    %241 = vmatpush1.msra.mxu0 0.0
    %242 = vmatprep.subr.mxu0 0.0
    %243 = vmatpush1.msra.mxu0 0.0
    %244 = vmatprep.subr.mxu0 0.0
    %245 = vmatpush1.msra.mxu0 0.0
    %246 = vmatprep.subr.mxu0 0.0
    %247 = vmatpush1.msra.mxu0 0.0
    %248 = vmatprep.subr.mxu0 0.0
    %249 = vmatpush1.msra.mxu0 0.0
    %250 = vmatprep.subr.mxu0 0.0
    %251 = vmatpush1.msra.mxu0 0.0
    %252 = vmatprep.subr.mxu0 0.0
    %253 = vmatpush1.msra.mxu0 0.0
    %254 = vmatprep.subr.mxu0 0.0
    %255 = vmatpush1.msra.mxu0 0.0
    %256 = vmatprep.subr.mxu0 0.0
    %257 = vmatpush1.msra.mxu0 0.0
    %258 = vmatprep.subr.mxu0 0.0
    %259 = vmatpush1.msra.mxu0 0.0
    %260 = vmatprep.subr.mxu0 0.0
    %261 = vmatpush1.msra.mxu0 0.0
    %262 = vmatprep.subr.mxu0 0.0
    %263 = vmatpush1.msra.mxu0 0.0
    %264 = vmatprep.subr.mxu0 0.0
    %265 = vmatpush1.msra.mxu0 0.0
    %266 = vmatprep.subr.mxu0 0.0
    %267 = vmatpush1.msra.mxu0 0.0
    %268 = vmatprep.subr.mxu0 0.0
    %269 = vmatpush1.msra.mxu0 0.0
    %270 = vmatprep.subr.mxu0 0.0
    %271 = vmatpush1.msra.mxu0 0.0
    %272 = vmatprep.subr.mxu0 0.0
    %273 = vmatpush1.msra.mxu0 0.0
    %274 = vmatprep.subr.mxu0 0.0
    %275 = vmatpush1.msra.mxu0 0.0
    %276 = vmatprep.subr.mxu0 0.0
    %277 = vmatpush1.msra.mxu0 0.0
    %278 = vmatprep.subr.mxu0 0.0
    %279 = vmatpush1.msra.mxu0 0.0
    %280 = vmatprep.subr.mxu0 0.0
    %281 = vmatpush1.msra.mxu0 0.0
    %282 = vmatprep.mubr.f32.mxu0 0.0
    %v283 = vand.u32 %v35, 4294901760
    %v284 = vsub.f32 %v35, %v283
    %285 = vmatmul.mubr.f32.gmra.mrb[0].mxu0 %v284
    %v286 = vpop.f32.mrb[0].mxu0
    %v287 = vadd.f32 %v205, %v286
    %v288 = vpop.f32.mrb[0].mxu0
    %289 = vmatprep.mubr.f32.mxu0 0.0
    %v290 = vand.u32 %v38, 4294901760
    %v291 = vsub.f32 %v38, %v290
    %292 = vmatmul.mubr.f32.gmra.mrb[0].mxu0 %v291
    %v293 = vpop.f32.mrb[0].mxu0
    %v294 = vadd.f32 %v211, %v293
    %v295 = vpop.f32.mrb[0].mxu0
    %296 = vdwg.mxu0
    %297 = vmatprep.subr.mxu0 0.0
    %v298 = vand.u32 %v31, 4294901760
    %299 = vmatpush1.msra.mxu0 %v298
    %300 = vmatprep.subr.mxu0 0.0
    %v301 = vand.u32 %v32, 4294901760
    %302 = vmatpush1.msra.mxu0 %v301
    %303 = vmatprep.subr.mxu0 0.0
    %304 = vmatpush1.msra.mxu0 0.0
    %305 = vmatprep.subr.mxu0 0.0
    %306 = vmatpush1.msra.mxu0 0.0
    %307 = vmatprep.subr.mxu0 0.0
    %308 = vmatpush1.msra.mxu0 0.0
    %309 = vmatprep.subr.mxu0 0.0
    %310 = vmatpush1.msra.mxu0 0.0
    %311 = vmatprep.subr.mxu0 0.0
    %312 = vmatpush1.msra.mxu0 0.0
    %313 = vmatprep.subr.mxu0 0.0
    %314 = vmatpush1.msra.mxu0 0.0
    %315 = vmatprep.subr.mxu0 0.0
    %316 = vmatpush1.msra.mxu0 0.0
    %317 = vmatprep.subr.mxu0 0.0
    %318 = vmatpush1.msra.mxu0 0.0
    %319 = vmatprep.subr.mxu0 0.0
    %320 = vmatpush1.msra.mxu0 0.0
    %321 = vmatprep.subr.mxu0 0.0
    %322 = vmatpush1.msra.mxu0 0.0
    %323 = vmatprep.subr.mxu0 0.0
    %324 = vmatpush1.msra.mxu0 0.0
    %325 = vmatprep.subr.mxu0 0.0
    %326 = vmatpush1.msra.mxu0 0.0
    %327 = vmatprep.subr.mxu0 0.0
    %328 = vmatpush1.msra.mxu0 0.0
    %329 = vmatprep.subr.mxu0 0.0
    %330 = vmatpush1.msra.mxu0 0.0
    %331 = vmatprep.subr.mxu0 0.0
    %332 = vmatpush1.msra.mxu0 0.0
    %333 = vmatprep.subr.mxu0 0.0
    %334 = vmatpush1.msra.mxu0 0.0
    %335 = vmatprep.subr.mxu0 0.0
    %336 = vmatpush1.msra.mxu0 0.0
    %337 = vmatprep.subr.mxu0 0.0
    %338 = vmatpush1.msra.mxu0 0.0
    %339 = vmatprep.subr.mxu0 0.0
    %340 = vmatpush1.msra.mxu0 0.0
    %341 = vmatprep.subr.mxu0 0.0
    %342 = vmatpush1.msra.mxu0 0.0
    %343 = vmatprep.subr.mxu0 0.0
    %344 = vmatpush1.msra.mxu0 0.0
    %345 = vmatprep.subr.mxu0 0.0
    %346 = vmatpush1.msra.mxu0 0.0
    %347 = vmatprep.subr.mxu0 0.0
    %348 = vmatpush1.msra.mxu0 0.0
    %349 = vmatprep.subr.mxu0 0.0
    %350 = vmatpush1.msra.mxu0 0.0
    %351 = vmatprep.subr.mxu0 0.0
    %352 = vmatpush1.msra.mxu0 0.0
    %353 = vmatprep.subr.mxu0 0.0
    %354 = vmatpush1.msra.mxu0 0.0
    %355 = vmatprep.subr.mxu0 0.0
    %356 = vmatpush1.msra.mxu0 0.0
    %357 = vmatprep.subr.mxu0 0.0
    %358 = vmatpush1.msra.mxu0 0.0
    %359 = vmatprep.subr.mxu0 0.0
    %360 = vmatpush1.msra.mxu0 0.0
    %361 = vmatprep.subr.mxu0 0.0
    %362 = vmatpush1.msra.mxu0 0.0
    %363 = vmatprep.mubr.f32.mxu0 0.0
    %v364 = vand.u32 %v35, 4294901760
    %v365 = vsub.f32 %v35, %v364
    %v366 = vand.u32 %v365, 4294901760
    %367 = vmatmul.mubr.f32.gmra.mrb[0].mxu0 %v366
    %v368 = vpop.f32.mrb[0].mxu0
    %v369 = vadd.f32 %v287, %v368
    %v370 = vpop.f32.mrb[0].mxu0
    %371 = vmatprep.mubr.f32.mxu0 0.0
    %v372 = vand.u32 %v38, 4294901760
    %v373 = vsub.f32 %v38, %v372
    %v374 = vand.u32 %v373, 4294901760
    %375 = vmatmul.mubr.f32.gmra.mrb[0].mxu0 %v374
    %v376 = vpop.f32.mrb[0].mxu0
    %v377 = vadd.f32 %v294, %v376
    %v378 = vpop.f32.mrb[0].mxu0
    %379 = vdwg.mxu0
    %380 = vmatprep.subr.mxu0 0.0
    %v381 = vand.u32 %v31, 4294901760
    %v382 = vsub.f32 %v31, %v381
    %v383 = vand.u32 %v382, 4294901760
    %384 = vmatpush1.msra.mxu0 %v383
    %385 = vmatprep.subr.mxu0 0.0
    %v386 = vand.u32 %v32, 4294901760
    %v387 = vsub.f32 %v32, %v386
    %v388 = vand.u32 %v387, 4294901760
    %389 = vmatpush1.msra.mxu0 %v388
    %390 = vmatprep.subr.mxu0 0.0
    %391 = vmatpush1.msra.mxu0 0.0
    %392 = vmatprep.subr.mxu0 0.0
    %393 = vmatpush1.msra.mxu0 0.0
    %394 = vmatprep.subr.mxu0 0.0
    %395 = vmatpush1.msra.mxu0 0.0
    %396 = vmatprep.subr.mxu0 0.0
    %397 = vmatpush1.msra.mxu0 0.0
    %398 = vmatprep.subr.mxu0 0.0
    %399 = vmatpush1.msra.mxu0 0.0
    %400 = vmatprep.subr.mxu0 0.0
    %401 = vmatpush1.msra.mxu0 0.0
    %402 = vmatprep.subr.mxu0 0.0
    %403 = vmatpush1.msra.mxu0 0.0
    %404 = vmatprep.subr.mxu0 0.0
    %405 = vmatpush1.msra.mxu0 0.0
    %406 = vmatprep.subr.mxu0 0.0
    %407 = vmatpush1.msra.mxu0 0.0
    %408 = vmatprep.subr.mxu0 0.0
    %409 = vmatpush1.msra.mxu0 0.0
    %410 = vmatprep.subr.mxu0 0.0
    %411 = vmatpush1.msra.mxu0 0.0
    %412 = vmatprep.subr.mxu0 0.0
    %413 = vmatpush1.msra.mxu0 0.0
    %414 = vmatprep.subr.mxu0 0.0
    %415 = vmatpush1.msra.mxu0 0.0
    %416 = vmatprep.subr.mxu0 0.0
    %417 = vmatpush1.msra.mxu0 0.0
    %418 = vmatprep.subr.mxu0 0.0
    %419 = vmatpush1.msra.mxu0 0.0
    %420 = vmatprep.subr.mxu0 0.0
    %421 = vmatpush1.msra.mxu0 0.0
    %422 = vmatprep.subr.mxu0 0.0
    %423 = vmatpush1.msra.mxu0 0.0
    %424 = vmatprep.subr.mxu0 0.0
    %425 = vmatpush1.msra.mxu0 0.0
    %426 = vmatprep.subr.mxu0 0.0
    %427 = vmatpush1.msra.mxu0 0.0
    %428 = vmatprep.subr.mxu0 0.0
    %429 = vmatpush1.msra.mxu0 0.0
    %430 = vmatprep.subr.mxu0 0.0
    %431 = vmatpush1.msra.mxu0 0.0
    %432 = vmatprep.subr.mxu0 0.0
    %433 = vmatpush1.msra.mxu0 0.0
    %434 = vmatprep.subr.mxu0 0.0
    %435 = vmatpush1.msra.mxu0 0.0
    %436 = vmatprep.subr.mxu0 0.0
    %437 = vmatpush1.msra.mxu0 0.0
    %438 = vmatprep.subr.mxu0 0.0
    %439 = vmatpush1.msra.mxu0 0.0
    %440 = vmatprep.subr.mxu0 0.0
    %441 = vmatpush1.msra.mxu0 0.0
    %442 = vmatprep.subr.mxu0 0.0
    %443 = vmatpush1.msra.mxu0 0.0
    %444 = vmatprep.subr.mxu0 0.0
    %445 = vmatpush1.msra.mxu0 0.0
    %446 = vmatprep.subr.mxu0 0.0
    %447 = vmatpush1.msra.mxu0 0.0
    %448 = vmatprep.subr.mxu0 0.0
    %449 = vmatpush1.msra.mxu0 0.0
    %450 = vmatprep.mubr.f32.mxu0 0.0
    %v451 = vand.u32 %v35, 4294901760
    %452 = vmatmul.mubr.f32.gmra.mrb[0].mxu0 %v451
    %v453 = vpop.f32.mrb[0].mxu0
    %v454 = vadd.f32 %v369, %v453
    %v455 = vpop.f32.mrb[0].mxu0
    %456 = vmatprep.mubr.f32.mxu0 0.0
    %v457 = vand.u32 %v38, 4294901760
    %458 = vmatmul.mubr.f32.gmra.mrb[0].mxu0 %v457
    %v459 = vpop.f32.mrb[0].mxu0
    %v460 = vadd.f32 %v377, %v459
    %v461 = vpop.f32.mrb[0].mxu0
    %462 = vdwg.mxu0
    %463 = vmatprep.subr.mxu0 0.0
    %v464 = vand.u32 %v31, 4294901760
    %465 = vmatpush1.msra.mxu0 %v464
    %466 = vmatprep.subr.mxu0 0.0
    %v467 = vand.u32 %v32, 4294901760
    %468 = vmatpush1.msra.mxu0 %v467
    %469 = vmatprep.subr.mxu0 0.0
    %470 = vmatpush1.msra.mxu0 0.0
    %471 = vmatprep.subr.mxu0 0.0
    %472 = vmatpush1.msra.mxu0 0.0
    %473 = vmatprep.subr.mxu0 0.0
    %474 = vmatpush1.msra.mxu0 0.0
    %475 = vmatprep.subr.mxu0 0.0
    %476 = vmatpush1.msra.mxu0 0.0
    %477 = vmatprep.subr.mxu0 0.0
    %478 = vmatpush1.msra.mxu0 0.0
    %479 = vmatprep.subr.mxu0 0.0
    %480 = vmatpush1.msra.mxu0 0.0
    %481 = vmatprep.subr.mxu0 0.0
    %482 = vmatpush1.msra.mxu0 0.0
    %483 = vmatprep.subr.mxu0 0.0
    %484 = vmatpush1.msra.mxu0 0.0
    %485 = vmatprep.subr.mxu0 0.0
    %486 = vmatpush1.msra.mxu0 0.0
    %487 = vmatprep.subr.mxu0 0.0
    %488 = vmatpush1.msra.mxu0 0.0
    %489 = vmatprep.subr.mxu0 0.0
    %490 = vmatpush1.msra.mxu0 0.0
    %491 = vmatprep.subr.mxu0 0.0
    %492 = vmatpush1.msra.mxu0 0.0
    %493 = vmatprep.subr.mxu0 0.0
    %494 = vmatpush1.msra.mxu0 0.0
    %495 = vmatprep.subr.mxu0 0.0
    %496 = vmatpush1.msra.mxu0 0.0
    %497 = vmatprep.subr.mxu0 0.0
    %498 = vmatpush1.msra.mxu0 0.0
    %499 = vmatprep.subr.mxu0 0.0
    %500 = vmatpush1.msra.mxu0 0.0
    %501 = vmatprep.subr.mxu0 0.0
    %502 = vmatpush1.msra.mxu0 0.0
    %503 = vmatprep.subr.mxu0 0.0
    %504 = vmatpush1.msra.mxu0 0.0
    %505 = vmatprep.subr.mxu0 0.0
    %506 = vmatpush1.msra.mxu0 0.0
    %507 = vmatprep.subr.mxu0 0.0
    %508 = vmatpush1.msra.mxu0 0.0
    %509 = vmatprep.subr.mxu0 0.0
    %510 = vmatpush1.msra.mxu0 0.0
    %511 = vmatprep.subr.mxu0 0.0
    %512 = vmatpush1.msra.mxu0 0.0
    %513 = vmatprep.subr.mxu0 0.0
    %514 = vmatpush1.msra.mxu0 0.0
    %515 = vmatprep.subr.mxu0 0.0
    %516 = vmatpush1.msra.mxu0 0.0
    %517 = vmatprep.subr.mxu0 0.0
    %518 = vmatpush1.msra.mxu0 0.0
    %519 = vmatprep.subr.mxu0 0.0
    %520 = vmatpush1.msra.mxu0 0.0
    %521 = vmatprep.subr.mxu0 0.0
    %522 = vmatpush1.msra.mxu0 0.0
    %523 = vmatprep.subr.mxu0 0.0
    %524 = vmatpush1.msra.mxu0 0.0
    %525 = vmatprep.subr.mxu0 0.0
    %526 = vmatpush1.msra.mxu0 0.0
    %527 = vmatprep.subr.mxu0 0.0
    %528 = vmatpush1.msra.mxu0 0.0
    %529 = vmatprep.mubr.f32.mxu0 0.0
    %v530 = vand.u32 %v35, 4294901760
    %531 = vmatmul.mubr.f32.gmra.mrb[0].mxu0 %v530
    %v532 = vpop.f32.mrb[0].mxu0
    %v533 = vadd.f32 %v454, %v532
    %v534 = vpop.f32.mrb[0].mxu0
    %535 = vmatprep.mubr.f32.mxu0 0.0
    %v536 = vand.u32 %v38, 4294901760
    %537 = vmatmul.mubr.f32.gmra.mrb[0].mxu0 %v536
    %v538 = vpop.f32.mrb[0].mxu0
    %v539 = vadd.f32 %v460, %v538
    %v540 = vpop.f32.mrb[0].mxu0
    %541 = vdwg.mxu0
    %543 = vset.pattern.permute.xlu0 0
    %544 = vperm.xlu0 %543, %v26
    %v545 = vpop.permute.xlu0 %544
    %v547 = vadd.f32 %v533, %v545
    %549 = vset.pattern.permute.xlu0 0
    %550 = vperm.xlu0 %549, %v28
    %v551 = vpop.permute.xlu0 %550
    %v553 = vadd.f32 %v539, %v551
    %v554 = vlaneseq
    %v555 = vand.u32 %v554, 127
    %v556 = vld [vmem:[%s0] sm:$0xff]
    %558 = vset.pattern.permute.xlu0 0
    %559 = vperm.xlu0 %558, %v22
    %v560 = vpop.permute.xlu0 %559
    %vm562 = vcmask 64512
    %v564 = vsel %vm562, %v21, 0
    %566 = vmatprep.subr.mxu0 0.0
    %v567 = vand.u32 %v556, 4294901760
    %568 = vmatpush1.msra.mxu0 %v567
    %569 = vmatprep.subr.mxu0 0.0
    %570 = vmatpush1.msra.mxu0 0.0
    %571 = vmatprep.subr.mxu0 0.0
    %572 = vmatpush1.msra.mxu0 0.0
    %573 = vmatprep.subr.mxu0 0.0
    %574 = vmatpush1.msra.mxu0 0.0
    %575 = vmatprep.subr.mxu0 0.0
    %576 = vmatpush1.msra.mxu0 0.0
    %577 = vmatprep.subr.mxu0 0.0
    %578 = vmatpush1.msra.mxu0 0.0
    %579 = vmatprep.subr.mxu0 0.0
    %580 = vmatpush1.msra.mxu0 0.0
    %581 = vmatprep.subr.mxu0 0.0
    %582 = vmatpush1.msra.mxu0 0.0
    %583 = vmatprep.subr.mxu0 0.0
    %584 = vmatpush1.msra.mxu0 0.0
    %585 = vmatprep.subr.mxu0 0.0
    %586 = vmatpush1.msra.mxu0 0.0
    %587 = vmatprep.subr.mxu0 0.0
    %588 = vmatpush1.msra.mxu0 0.0
    %589 = vmatprep.subr.mxu0 0.0
    %590 = vmatpush1.msra.mxu0 0.0
    %591 = vmatprep.subr.mxu0 0.0
    %592 = vmatpush1.msra.mxu0 0.0
    %593 = vmatprep.subr.mxu0 0.0
    %594 = vmatpush1.msra.mxu0 0.0
    %595 = vmatprep.subr.mxu0 0.0
    %596 = vmatpush1.msra.mxu0 0.0
    %597 = vmatprep.subr.mxu0 0.0
    %598 = vmatpush1.msra.mxu0 0.0
    %599 = vmatprep.subr.mxu0 0.0
    %600 = vmatpush1.msra.mxu0 0.0
    %601 = vmatprep.subr.mxu0 0.0
    %602 = vmatpush1.msra.mxu0 0.0
    %603 = vmatprep.subr.mxu0 0.0
    %604 = vmatpush1.msra.mxu0 0.0
    %605 = vmatprep.subr.mxu0 0.0
    %606 = vmatpush1.msra.mxu0 0.0
    %607 = vmatprep.subr.mxu0 0.0
    %608 = vmatpush1.msra.mxu0 0.0
    %609 = vmatprep.subr.mxu0 0.0
    %610 = vmatpush1.msra.mxu0 0.0
    %611 = vmatprep.subr.mxu0 0.0
    %612 = vmatpush1.msra.mxu0 0.0
    %613 = vmatprep.subr.mxu0 0.0
    %614 = vmatpush1.msra.mxu0 0.0
    %615 = vmatprep.subr.mxu0 0.0
    %616 = vmatpush1.msra.mxu0 0.0
    %617 = vmatprep.subr.mxu0 0.0
    %618 = vmatpush1.msra.mxu0 0.0
    %619 = vmatprep.subr.mxu0 0.0
    %620 = vmatpush1.msra.mxu0 0.0
    %621 = vmatprep.subr.mxu0 0.0
    %622 = vmatpush1.msra.mxu0 0.0
    %623 = vmatprep.subr.mxu0 0.0
    %624 = vmatpush1.msra.mxu0 0.0
    %625 = vmatprep.subr.mxu0 0.0
    %626 = vmatpush1.msra.mxu0 0.0
    %627 = vmatprep.subr.mxu0 0.0
    %628 = vmatpush1.msra.mxu0 0.0
    %629 = vmatprep.subr.mxu0 0.0
    %630 = vmatpush1.msra.mxu0 0.0
    %631 = vmatprep.mubr.f32.mxu0 0.0
    %v632 = vand.u32 %v564, 4294901760
    %v633 = vsub.f32 %v564, %v632
    %v634 = vand.u32 %v633, 4294901760
    %v635 = vsub.f32 %v633, %v634
    %v636 = vand.u32 %v635, 4294901760
    %637 = vmatmul.mubr.f32.gmra.mrb[0].mxu0 %v636
    %v638 = vpop.f32.mrb[0].mxu0
    %v639 = vadd.f32 %v560, %v638
    %v640 = vpop.f32.mrb[0].mxu0
    %641 = vdwg.mxu0
    %642 = vmatprep.subr.mxu0 0.0
    %v643 = vand.u32 %v556, 4294901760
    %v644 = vsub.f32 %v556, %v643
    %v645 = vand.u32 %v644, 4294901760
    %v646 = vsub.f32 %v644, %v645
    %v647 = vand.u32 %v646, 4294901760
    %648 = vmatpush1.msra.mxu0 %v647
    %649 = vmatprep.subr.mxu0 0.0
    %650 = vmatpush1.msra.mxu0 0.0
    %651 = vmatprep.subr.mxu0 0.0
    %652 = vmatpush1.msra.mxu0 0.0
    %653 = vmatprep.subr.mxu0 0.0
    %654 = vmatpush1.msra.mxu0 0.0
    %655 = vmatprep.subr.mxu0 0.0
    %656 = vmatpush1.msra.mxu0 0.0
    %657 = vmatprep.subr.mxu0 0.0
    %658 = vmatpush1.msra.mxu0 0.0
    %659 = vmatprep.subr.mxu0 0.0
    %660 = vmatpush1.msra.mxu0 0.0
    %661 = vmatprep.subr.mxu0 0.0
    %662 = vmatpush1.msra.mxu0 0.0
    %663 = vmatprep.subr.mxu0 0.0
    %664 = vmatpush1.msra.mxu0 0.0
    %665 = vmatprep.subr.mxu0 0.0
    %666 = vmatpush1.msra.mxu0 0.0
    %667 = vmatprep.subr.mxu0 0.0
    %668 = vmatpush1.msra.mxu0 0.0
    %669 = vmatprep.subr.mxu0 0.0
    %670 = vmatpush1.msra.mxu0 0.0
    %671 = vmatprep.subr.mxu0 0.0
    %672 = vmatpush1.msra.mxu0 0.0
    %673 = vmatprep.subr.mxu0 0.0
    %674 = vmatpush1.msra.mxu0 0.0
    %675 = vmatprep.subr.mxu0 0.0
    %676 = vmatpush1.msra.mxu0 0.0
    %677 = vmatprep.subr.mxu0 0.0
    %678 = vmatpush1.msra.mxu0 0.0
    %679 = vmatprep.subr.mxu0 0.0
    %680 = vmatpush1.msra.mxu0 0.0
    %681 = vmatprep.subr.mxu0 0.0
    %682 = vmatpush1.msra.mxu0 0.0
    %683 = vmatprep.subr.mxu0 0.0
    %684 = vmatpush1.msra.mxu0 0.0
    %685 = vmatprep.subr.mxu0 0.0
    %686 = vmatpush1.msra.mxu0 0.0
    %687 = vmatprep.subr.mxu0 0.0
    %688 = vmatpush1.msra.mxu0 0.0
    %689 = vmatprep.subr.mxu0 0.0
    %690 = vmatpush1.msra.mxu0 0.0
    %691 = vmatprep.subr.mxu0 0.0
    %692 = vmatpush1.msra.mxu0 0.0
    %693 = vmatprep.subr.mxu0 0.0
    %694 = vmatpush1.msra.mxu0 0.0
    %695 = vmatprep.subr.mxu0 0.0
    %696 = vmatpush1.msra.mxu0 0.0
    %697 = vmatprep.subr.mxu0 0.0
    %698 = vmatpush1.msra.mxu0 0.0
    %699 = vmatprep.subr.mxu0 0.0
    %700 = vmatpush1.msra.mxu0 0.0
    %701 = vmatprep.subr.mxu0 0.0
    %702 = vmatpush1.msra.mxu0 0.0
    %703 = vmatprep.subr.mxu0 0.0
    %704 = vmatpush1.msra.mxu0 0.0
    %705 = vmatprep.subr.mxu0 0.0
    %706 = vmatpush1.msra.mxu0 0.0
    %707 = vmatprep.subr.mxu0 0.0
    %708 = vmatpush1.msra.mxu0 0.0
    %709 = vmatprep.subr.mxu0 0.0
    %710 = vmatpush1.msra.mxu0 0.0
    %711 = vmatprep.mubr.f32.mxu0 0.0
    %v712 = vand.u32 %v564, 4294901760
    %713 = vmatmul.mubr.f32.gmra.mrb[0].mxu0 %v712
    %v714 = vpop.f32.mrb[0].mxu0
    %v715 = vadd.f32 %v639, %v714
    %v716 = vpop.f32.mrb[0].mxu0
    %717 = vdwg.mxu0
    %718 = vmatprep.subr.mxu0 0.0
    %v719 = vand.u32 %v556, 4294901760
    %v720 = vsub.f32 %v556, %v719
    %721 = vmatpush1.msra.mxu0 %v720
    %722 = vmatprep.subr.mxu0 0.0
    %723 = vmatpush1.msra.mxu0 0.0
    %724 = vmatprep.subr.mxu0 0.0
    %725 = vmatpush1.msra.mxu0 0.0
    %726 = vmatprep.subr.mxu0 0.0
    %727 = vmatpush1.msra.mxu0 0.0
    %728 = vmatprep.subr.mxu0 0.0
    %729 = vmatpush1.msra.mxu0 0.0
    %730 = vmatprep.subr.mxu0 0.0
    %731 = vmatpush1.msra.mxu0 0.0
    %732 = vmatprep.subr.mxu0 0.0
    %733 = vmatpush1.msra.mxu0 0.0
    %734 = vmatprep.subr.mxu0 0.0
    %735 = vmatpush1.msra.mxu0 0.0
    %736 = vmatprep.subr.mxu0 0.0
    %737 = vmatpush1.msra.mxu0 0.0
    %738 = vmatprep.subr.mxu0 0.0
    %739 = vmatpush1.msra.mxu0 0.0
    %740 = vmatprep.subr.mxu0 0.0
    %741 = vmatpush1.msra.mxu0 0.0
    %742 = vmatprep.subr.mxu0 0.0
    %743 = vmatpush1.msra.mxu0 0.0
    %744 = vmatprep.subr.mxu0 0.0
    %745 = vmatpush1.msra.mxu0 0.0
    %746 = vmatprep.subr.mxu0 0.0
    %747 = vmatpush1.msra.mxu0 0.0
    %748 = vmatprep.subr.mxu0 0.0
    %749 = vmatpush1.msra.mxu0 0.0
    %750 = vmatprep.subr.mxu0 0.0
    %751 = vmatpush1.msra.mxu0 0.0
    %752 = vmatprep.subr.mxu0 0.0
    %753 = vmatpush1.msra.mxu0 0.0
    %754 = vmatprep.subr.mxu0 0.0
    %755 = vmatpush1.msra.mxu0 0.0
    %756 = vmatprep.subr.mxu0 0.0
    %757 = vmatpush1.msra.mxu0 0.0
    %758 = vmatprep.subr.mxu0 0.0
    %759 = vmatpush1.msra.mxu0 0.0
    %760 = vmatprep.subr.mxu0 0.0
    %761 = vmatpush1.msra.mxu0 0.0
    %762 = vmatprep.subr.mxu0 0.0
    %763 = vmatpush1.msra.mxu0 0.0
    %764 = vmatprep.subr.mxu0 0.0
    %765 = vmatpush1.msra.mxu0 0.0
    %766 = vmatprep.subr.mxu0 0.0
    %767 = vmatpush1.msra.mxu0 0.0
    %768 = vmatprep.subr.mxu0 0.0
    %769 = vmatpush1.msra.mxu0 0.0
    %770 = vmatprep.subr.mxu0 0.0
    %771 = vmatpush1.msra.mxu0 0.0
    %772 = vmatprep.subr.mxu0 0.0
    %773 = vmatpush1.msra.mxu0 0.0
    %774 = vmatprep.subr.mxu0 0.0
    %775 = vmatpush1.msra.mxu0 0.0
    %776 = vmatprep.subr.mxu0 0.0
    %777 = vmatpush1.msra.mxu0 0.0
    %778 = vmatprep.subr.mxu0 0.0
    %779 = vmatpush1.msra.mxu0 0.0
    %780 = vmatprep.subr.mxu0 0.0
    %781 = vmatpush1.msra.mxu0 0.0
    %782 = vmatprep.subr.mxu0 0.0
    %783 = vmatpush1.msra.mxu0 0.0
    %784 = vmatprep.mubr.f32.mxu0 0.0
    %v785 = vand.u32 %v564, 4294901760
    %v786 = vsub.f32 %v564, %v785
    %787 = vmatmul.mubr.f32.gmra.mrb[0].mxu0 %v786
    %v788 = vpop.f32.mrb[0].mxu0
    %v789 = vadd.f32 %v715, %v788
    %v790 = vpop.f32.mrb[0].mxu0
    %791 = vdwg.mxu0
    %792 = vmatprep.subr.mxu0 0.0
    %v793 = vand.u32 %v556, 4294901760
    %794 = vmatpush1.msra.mxu0 %v793
    %795 = vmatprep.subr.mxu0 0.0
    %796 = vmatpush1.msra.mxu0 0.0
    %797 = vmatprep.subr.mxu0 0.0
    %798 = vmatpush1.msra.mxu0 0.0
    %799 = vmatprep.subr.mxu0 0.0
    %800 = vmatpush1.msra.mxu0 0.0
    %801 = vmatprep.subr.mxu0 0.0
    %802 = vmatpush1.msra.mxu0 0.0
    %803 = vmatprep.subr.mxu0 0.0
    %804 = vmatpush1.msra.mxu0 0.0
    %805 = vmatprep.subr.mxu0 0.0
    %806 = vmatpush1.msra.mxu0 0.0
    %807 = vmatprep.subr.mxu0 0.0
    %808 = vmatpush1.msra.mxu0 0.0
    %809 = vmatprep.subr.mxu0 0.0
    %810 = vmatpush1.msra.mxu0 0.0
    %811 = vmatprep.subr.mxu0 0.0
    %812 = vmatpush1.msra.mxu0 0.0
    %813 = vmatprep.subr.mxu0 0.0
    %814 = vmatpush1.msra.mxu0 0.0
    %815 = vmatprep.subr.mxu0 0.0
    %816 = vmatpush1.msra.mxu0 0.0
    %817 = vmatprep.subr.mxu0 0.0
    %818 = vmatpush1.msra.mxu0 0.0
    %819 = vmatprep.subr.mxu0 0.0
    %820 = vmatpush1.msra.mxu0 0.0
    %821 = vmatprep.subr.mxu0 0.0
    %822 = vmatpush1.msra.mxu0 0.0
    %823 = vmatprep.subr.mxu0 0.0
    %824 = vmatpush1.msra.mxu0 0.0
    %825 = vmatprep.subr.mxu0 0.0
    %826 = vmatpush1.msra.mxu0 0.0
    %827 = vmatprep.subr.mxu0 0.0
    %828 = vmatpush1.msra.mxu0 0.0
    %829 = vmatprep.subr.mxu0 0.0
    %830 = vmatpush1.msra.mxu0 0.0
    %831 = vmatprep.subr.mxu0 0.0
    %832 = vmatpush1.msra.mxu0 0.0
    %833 = vmatprep.subr.mxu0 0.0
    %834 = vmatpush1.msra.mxu0 0.0
    %835 = vmatprep.subr.mxu0 0.0
    %836 = vmatpush1.msra.mxu0 0.0
    %837 = vmatprep.subr.mxu0 0.0
    %838 = vmatpush1.msra.mxu0 0.0
    %839 = vmatprep.subr.mxu0 0.0
    %840 = vmatpush1.msra.mxu0 0.0
    %841 = vmatprep.subr.mxu0 0.0
    %842 = vmatpush1.msra.mxu0 0.0
    %843 = vmatprep.subr.mxu0 0.0
    %844 = vmatpush1.msra.mxu0 0.0
    %845 = vmatprep.subr.mxu0 0.0
    %846 = vmatpush1.msra.mxu0 0.0
    %847 = vmatprep.subr.mxu0 0.0
    %848 = vmatpush1.msra.mxu0 0.0
    %849 = vmatprep.subr.mxu0 0.0
    %850 = vmatpush1.msra.mxu0 0.0
    %851 = vmatprep.subr.mxu0 0.0
    %852 = vmatpush1.msra.mxu0 0.0
    %853 = vmatprep.subr.mxu0 0.0
    %854 = vmatpush1.msra.mxu0 0.0
    %855 = vmatprep.subr.mxu0 0.0
    %856 = vmatpush1.msra.mxu0 0.0
    %857 = vmatprep.mubr.f32.mxu0 0.0
    %v858 = vand.u32 %v564, 4294901760
    %v859 = vsub.f32 %v564, %v858
    %v860 = vand.u32 %v859, 4294901760
    %861 = vmatmul.mubr.f32.gmra.mrb[0].mxu0 %v860
    %v862 = vpop.f32.mrb[0].mxu0
    %v863 = vadd.f32 %v789, %v862
    %v864 = vpop.f32.mrb[0].mxu0
    %865 = vdwg.mxu0
    %866 = vmatprep.subr.mxu0 0.0
    %v867 = vand.u32 %v556, 4294901760
    %v868 = vsub.f32 %v556, %v867
    %v869 = vand.u32 %v868, 4294901760
    %870 = vmatpush1.msra.mxu0 %v869
    %871 = vmatprep.subr.mxu0 0.0
    %872 = vmatpush1.msra.mxu0 0.0
    %873 = vmatprep.subr.mxu0 0.0
    %874 = vmatpush1.msra.mxu0 0.0
    %875 = vmatprep.subr.mxu0 0.0
    %876 = vmatpush1.msra.mxu0 0.0
    %877 = vmatprep.subr.mxu0 0.0
    %878 = vmatpush1.msra.mxu0 0.0
    %879 = vmatprep.subr.mxu0 0.0
    %880 = vmatpush1.msra.mxu0 0.0
    %881 = vmatprep.subr.mxu0 0.0
    %882 = vmatpush1.msra.mxu0 0.0
    %883 = vmatprep.subr.mxu0 0.0
    %884 = vmatpush1.msra.mxu0 0.0
    %885 = vmatprep.subr.mxu0 0.0
    %886 = vmatpush1.msra.mxu0 0.0
    %887 = vmatprep.subr.mxu0 0.0
    %888 = vmatpush1.msra.mxu0 0.0
    %889 = vmatprep.subr.mxu0 0.0
    %890 = vmatpush1.msra.mxu0 0.0
    %891 = vmatprep.subr.mxu0 0.0
    %892 = vmatpush1.msra.mxu0 0.0
    %893 = vmatprep.subr.mxu0 0.0
    %894 = vmatpush1.msra.mxu0 0.0
    %895 = vmatprep.subr.mxu0 0.0
    %896 = vmatpush1.msra.mxu0 0.0
    %897 = vmatprep.subr.mxu0 0.0
    %898 = vmatpush1.msra.mxu0 0.0
    %899 = vmatprep.subr.mxu0 0.0
    %900 = vmatpush1.msra.mxu0 0.0
    %901 = vmatprep.subr.mxu0 0.0
    %902 = vmatpush1.msra.mxu0 0.0
    %903 = vmatprep.subr.mxu0 0.0
    %904 = vmatpush1.msra.mxu0 0.0
    %905 = vmatprep.subr.mxu0 0.0
    %906 = vmatpush1.msra.mxu0 0.0
    %907 = vmatprep.subr.mxu0 0.0
    %908 = vmatpush1.msra.mxu0 0.0
    %909 = vmatprep.subr.mxu0 0.0
    %910 = vmatpush1.msra.mxu0 0.0
    %911 = vmatprep.subr.mxu0 0.0
    %912 = vmatpush1.msra.mxu0 0.0
    %913 = vmatprep.subr.mxu0 0.0
    %914 = vmatpush1.msra.mxu0 0.0
    %915 = vmatprep.subr.mxu0 0.0
    %916 = vmatpush1.msra.mxu0 0.0
    %917 = vmatprep.subr.mxu0 0.0
    %918 = vmatpush1.msra.mxu0 0.0
    %919 = vmatprep.subr.mxu0 0.0
    %920 = vmatpush1.msra.mxu0 0.0
    %921 = vmatprep.subr.mxu0 0.0
    %922 = vmatpush1.msra.mxu0 0.0
    %923 = vmatprep.subr.mxu0 0.0
    %924 = vmatpush1.msra.mxu0 0.0
    %925 = vmatprep.subr.mxu0 0.0
    %926 = vmatpush1.msra.mxu0 0.0
    %927 = vmatprep.subr.mxu0 0.0
    %928 = vmatpush1.msra.mxu0 0.0
    %929 = vmatprep.subr.mxu0 0.0
    %930 = vmatpush1.msra.mxu0 0.0
    %931 = vmatprep.subr.mxu0 0.0
    %932 = vmatpush1.msra.mxu0 0.0
    %933 = vmatprep.mubr.f32.mxu0 0.0
    %v934 = vand.u32 %v564, 4294901760
    %935 = vmatmul.mubr.f32.gmra.mrb[0].mxu0 %v934
    %v936 = vpop.f32.mrb[0].mxu0
    %v937 = vadd.f32 %v863, %v936
    %v938 = vpop.f32.mrb[0].mxu0
    %939 = vdwg.mxu0
    %940 = vmatprep.subr.mxu0 0.0
    %v941 = vand.u32 %v556, 4294901760
    %942 = vmatpush1.msra.mxu0 %v941
    %943 = vmatprep.subr.mxu0 0.0
    %944 = vmatpush1.msra.mxu0 0.0
    %945 = vmatprep.subr.mxu0 0.0
    %946 = vmatpush1.msra.mxu0 0.0
    %947 = vmatprep.subr.mxu0 0.0
    %948 = vmatpush1.msra.mxu0 0.0
    %949 = vmatprep.subr.mxu0 0.0
    %950 = vmatpush1.msra.mxu0 0.0
    %951 = vmatprep.subr.mxu0 0.0
    %952 = vmatpush1.msra.mxu0 0.0
    %953 = vmatprep.subr.mxu0 0.0
    %954 = vmatpush1.msra.mxu0 0.0
    %955 = vmatprep.subr.mxu0 0.0
    %956 = vmatpush1.msra.mxu0 0.0
    %957 = vmatprep.subr.mxu0 0.0
    %958 = vmatpush1.msra.mxu0 0.0
    %959 = vmatprep.subr.mxu0 0.0
    %960 = vmatpush1.msra.mxu0 0.0
    %961 = vmatprep.subr.mxu0 0.0
    %962 = vmatpush1.msra.mxu0 0.0
    %963 = vmatprep.subr.mxu0 0.0
    %964 = vmatpush1.msra.mxu0 0.0
    %965 = vmatprep.subr.mxu0 0.0
    %966 = vmatpush1.msra.mxu0 0.0
    %967 = vmatprep.subr.mxu0 0.0
    %968 = vmatpush1.msra.mxu0 0.0
    %969 = vmatprep.subr.mxu0 0.0
    %970 = vmatpush1.msra.mxu0 0.0
    %971 = vmatprep.subr.mxu0 0.0
    %972 = vmatpush1.msra.mxu0 0.0
    %973 = vmatprep.subr.mxu0 0.0
    %974 = vmatpush1.msra.mxu0 0.0
    %975 = vmatprep.subr.mxu0 0.0
    %976 = vmatpush1.msra.mxu0 0.0
    %977 = vmatprep.subr.mxu0 0.0
    %978 = vmatpush1.msra.mxu0 0.0
    %979 = vmatprep.subr.mxu0 0.0
    %980 = vmatpush1.msra.mxu0 0.0
    %981 = vmatprep.subr.mxu0 0.0
    %982 = vmatpush1.msra.mxu0 0.0
    %983 = vmatprep.subr.mxu0 0.0
    %984 = vmatpush1.msra.mxu0 0.0
    %985 = vmatprep.subr.mxu0 0.0
    %986 = vmatpush1.msra.mxu0 0.0
    %987 = vmatprep.subr.mxu0 0.0
    %988 = vmatpush1.msra.mxu0 0.0
    %989 = vmatprep.subr.mxu0 0.0
    %990 = vmatpush1.msra.mxu0 0.0
    %991 = vmatprep.subr.mxu0 0.0
    %992 = vmatpush1.msra.mxu0 0.0
    %993 = vmatprep.subr.mxu0 0.0
    %994 = vmatpush1.msra.mxu0 0.0
    %995 = vmatprep.subr.mxu0 0.0
    %996 = vmatpush1.msra.mxu0 0.0
    %997 = vmatprep.subr.mxu0 0.0
    %998 = vmatpush1.msra.mxu0 0.0
    %999 = vmatprep.subr.mxu0 0.0
    %1000 = vmatpush1.msra.mxu0 0.0
    %1001 = vmatprep.subr.mxu0 0.0
    %1002 = vmatpush1.msra.mxu0 0.0
    %1003 = vmatprep.subr.mxu0 0.0
    %1004 = vmatpush1.msra.mxu0 0.0
    %1005 = vmatprep.mubr.f32.mxu0 0.0
    %v1006 = vand.u32 %v564, 4294901760
    %1007 = vmatmul.mubr.f32.gmra.mrb[0].mxu0 %v1006
    %v1008 = vpop.f32.mrb[0].mxu0
    %v1009 = vadd.f32 %v937, %v1008
    %v1010 = vpop.f32.mrb[0].mxu0
    %1011 = vdwg.mxu0
    %v1012 = vmax.f32 %v1009, 0.0
    %1013 = vrot.lane.b32.xlu0 %v1012, 1
    %v1014 = vpop.permute.xlu0 %1013
    %v1015 = vadd.s32 %v555, 4294967295
    %vm1016 = vcmp.ge.s32.totalorder %v1015, 0
    %vm1017 = vcmp.lt.s32.totalorder %v1015, 128
    %vm1018 = vmand %vm1016, %vm1017
    %v1019 = vsel %vm1018, 1, 0
    %vm1020 = vcmp.eq.s32.totalorder %v1019, 1
    %v1021 = vsel %vm1020, %v1014, 0.0
    %1022 = vrot.lane.b32.xlu0 %v1012, 127
    %v1023 = vpop.permute.xlu0 %1022
    %v1024 = vadd.s32 %v555, 1
    %vm1025 = vcmp.ge.s32.totalorder %v1024, 0
    %vm1026 = vcmp.lt.s32.totalorder %v1024, 128
    %vm1027 = vmand %vm1025, %vm1026
    %v1028 = vsel %vm1027, 1, 0
    %vm1029 = vcmp.eq.s32.totalorder %v1028, 1
    %v1030 = vsel %vm1029, %v1023, 0.0
    %1032 = vset.pattern.permute.xlu0 0
    %1033 = vperm.xlu0 %1032, %v24
    %v1034 = vpop.permute.xlu0 %1033
    %1036 = vrot.lane.b32.xlu0 %v21, 120
    %v1037 = vpop.permute.xlu0 %1036
    %vm1038 = vcmask 195584
    %v1039 = vsel %vm1038, %v1037, 0
    %1041 = vmatprep.subr.mxu0 0.0
    %v1042 = vand.u32 %v1021, 4294901760
    %1043 = vmatpush1.msra.mxu0 %v1042
    %1044 = vmatprep.subr.mxu0 0.0
    %v1045 = vand.u32 %v1012, 4294901760
    %1046 = vmatpush1.msra.mxu0 %v1045
    %1047 = vmatprep.subr.mxu0 0.0
    %v1048 = vand.u32 %v1030, 4294901760
    %1049 = vmatpush1.msra.mxu0 %v1048
    %1050 = vmatprep.subr.mxu0 0.0
    %1051 = vmatpush1.msra.mxu0 0.0
    %1052 = vmatprep.subr.mxu0 0.0
    %1053 = vmatpush1.msra.mxu0 0.0
    %1054 = vmatprep.subr.mxu0 0.0
    %1055 = vmatpush1.msra.mxu0 0.0
    %1056 = vmatprep.subr.mxu0 0.0
    %1057 = vmatpush1.msra.mxu0 0.0
    %1058 = vmatprep.subr.mxu0 0.0
    %1059 = vmatpush1.msra.mxu0 0.0
    %1060 = vmatprep.subr.mxu0 0.0
    %1061 = vmatpush1.msra.mxu0 0.0
    %1062 = vmatprep.subr.mxu0 0.0
    %1063 = vmatpush1.msra.mxu0 0.0
    %1064 = vmatprep.subr.mxu0 0.0
    %1065 = vmatpush1.msra.mxu0 0.0
    %1066 = vmatprep.subr.mxu0 0.0
    %1067 = vmatpush1.msra.mxu0 0.0
    %1068 = vmatprep.subr.mxu0 0.0
    %1069 = vmatpush1.msra.mxu0 0.0
    %1070 = vmatprep.subr.mxu0 0.0
    %1071 = vmatpush1.msra.mxu0 0.0
    %1072 = vmatprep.subr.mxu0 0.0
    %1073 = vmatpush1.msra.mxu0 0.0
    %1074 = vmatprep.subr.mxu0 0.0
    %1075 = vmatpush1.msra.mxu0 0.0
    %1076 = vmatprep.subr.mxu0 0.0
    %1077 = vmatpush1.msra.mxu0 0.0
    %1078 = vmatprep.subr.mxu0 0.0
    %1079 = vmatpush1.msra.mxu0 0.0
    %1080 = vmatprep.subr.mxu0 0.0
    %1081 = vmatpush1.msra.mxu0 0.0
    %1082 = vmatprep.subr.mxu0 0.0
    %1083 = vmatpush1.msra.mxu0 0.0
    %1084 = vmatprep.subr.mxu0 0.0
    %1085 = vmatpush1.msra.mxu0 0.0
    %1086 = vmatprep.subr.mxu0 0.0
    %1087 = vmatpush1.msra.mxu0 0.0
    %1088 = vmatprep.subr.mxu0 0.0
    %1089 = vmatpush1.msra.mxu0 0.0
    %1090 = vmatprep.subr.mxu0 0.0
    %1091 = vmatpush1.msra.mxu0 0.0
    %1092 = vmatprep.subr.mxu0 0.0
    %1093 = vmatpush1.msra.mxu0 0.0
    %1094 = vmatprep.subr.mxu0 0.0
    %1095 = vmatpush1.msra.mxu0 0.0
    %1096 = vmatprep.subr.mxu0 0.0
    %1097 = vmatpush1.msra.mxu0 0.0
    %1098 = vmatprep.subr.mxu0 0.0
    %1099 = vmatpush1.msra.mxu0 0.0
    %1100 = vmatprep.subr.mxu0 0.0
    %1101 = vmatpush1.msra.mxu0 0.0
    %1102 = vmatprep.subr.mxu0 0.0
    %1103 = vmatpush1.msra.mxu0 0.0
    %1104 = vmatprep.subr.mxu0 0.0
    %1105 = vmatpush1.msra.mxu0 0.0
    %1106 = vmatprep.subr.mxu0 0.0
    %1107 = vmatpush1.msra.mxu0 0.0
    %1108 = vmatprep.mubr.f32.mxu0 0.0
    %v1109 = vand.u32 %v1039, 4294901760
    %v1110 = vsub.f32 %v1039, %v1109
    %v1111 = vand.u32 %v1110, 4294901760
    %v1112 = vsub.f32 %v1110, %v1111
    %v1113 = vand.u32 %v1112, 4294901760
    %1114 = vmatmul.mubr.f32.gmra.mrb[0].mxu0 %v1113
    %v1115 = vpop.f32.mrb[0].mxu0
    %v1116 = vadd.f32 %v1034, %v1115
    %v1117 = vpop.f32.mrb[0].mxu0
    %1118 = vdwg.mxu0
    %1119 = vmatprep.subr.mxu0 0.0
    %v1120 = vand.u32 %v1021, 4294901760
    %v1121 = vsub.f32 %v1021, %v1120
    %v1122 = vand.u32 %v1121, 4294901760
    %v1123 = vsub.f32 %v1121, %v1122
    %v1124 = vand.u32 %v1123, 4294901760
    %1125 = vmatpush1.msra.mxu0 %v1124
    %1126 = vmatprep.subr.mxu0 0.0
    %v1127 = vand.u32 %v1012, 4294901760
    %v1128 = vsub.f32 %v1012, %v1127
    %v1129 = vand.u32 %v1128, 4294901760
    %v1130 = vsub.f32 %v1128, %v1129
    %v1131 = vand.u32 %v1130, 4294901760
    %1132 = vmatpush1.msra.mxu0 %v1131
    %1133 = vmatprep.subr.mxu0 0.0
    %v1134 = vand.u32 %v1030, 4294901760
    %v1135 = vsub.f32 %v1030, %v1134
    %v1136 = vand.u32 %v1135, 4294901760
    %v1137 = vsub.f32 %v1135, %v1136
    %v1138 = vand.u32 %v1137, 4294901760
    %1139 = vmatpush1.msra.mxu0 %v1138
    %1140 = vmatprep.subr.mxu0 0.0
    %1141 = vmatpush1.msra.mxu0 0.0
    %1142 = vmatprep.subr.mxu0 0.0
    %1143 = vmatpush1.msra.mxu0 0.0
    %1144 = vmatprep.subr.mxu0 0.0
    %1145 = vmatpush1.msra.mxu0 0.0
    %1146 = vmatprep.subr.mxu0 0.0
    %1147 = vmatpush1.msra.mxu0 0.0
    %1148 = vmatprep.subr.mxu0 0.0
    %1149 = vmatpush1.msra.mxu0 0.0
    %1150 = vmatprep.subr.mxu0 0.0
    %1151 = vmatpush1.msra.mxu0 0.0
    %1152 = vmatprep.subr.mxu0 0.0
    %1153 = vmatpush1.msra.mxu0 0.0
    %1154 = vmatprep.subr.mxu0 0.0
    %1155 = vmatpush1.msra.mxu0 0.0
    %1156 = vmatprep.subr.mxu0 0.0
    %1157 = vmatpush1.msra.mxu0 0.0
    %1158 = vmatprep.subr.mxu0 0.0
    %1159 = vmatpush1.msra.mxu0 0.0
    %1160 = vmatprep.subr.mxu0 0.0
    %1161 = vmatpush1.msra.mxu0 0.0
    %1162 = vmatprep.subr.mxu0 0.0
    %1163 = vmatpush1.msra.mxu0 0.0
    %1164 = vmatprep.subr.mxu0 0.0
    %1165 = vmatpush1.msra.mxu0 0.0
    %1166 = vmatprep.subr.mxu0 0.0
    %1167 = vmatpush1.msra.mxu0 0.0
    %1168 = vmatprep.subr.mxu0 0.0
    %1169 = vmatpush1.msra.mxu0 0.0
    %1170 = vmatprep.subr.mxu0 0.0
    %1171 = vmatpush1.msra.mxu0 0.0
    %1172 = vmatprep.subr.mxu0 0.0
    %1173 = vmatpush1.msra.mxu0 0.0
    %1174 = vmatprep.subr.mxu0 0.0
    %1175 = vmatpush1.msra.mxu0 0.0
    %1176 = vmatprep.subr.mxu0 0.0
    %1177 = vmatpush1.msra.mxu0 0.0
    %1178 = vmatprep.subr.mxu0 0.0
    %1179 = vmatpush1.msra.mxu0 0.0
    %1180 = vmatprep.subr.mxu0 0.0
    %1181 = vmatpush1.msra.mxu0 0.0
    %1182 = vmatprep.subr.mxu0 0.0
    %1183 = vmatpush1.msra.mxu0 0.0
    %1184 = vmatprep.subr.mxu0 0.0
    %1185 = vmatpush1.msra.mxu0 0.0
    %1186 = vmatprep.subr.mxu0 0.0
    %1187 = vmatpush1.msra.mxu0 0.0
    %1188 = vmatprep.subr.mxu0 0.0
    %1189 = vmatpush1.msra.mxu0 0.0
    %1190 = vmatprep.subr.mxu0 0.0
    %1191 = vmatpush1.msra.mxu0 0.0
    %1192 = vmatprep.subr.mxu0 0.0
    %1193 = vmatpush1.msra.mxu0 0.0
    %1194 = vmatprep.subr.mxu0 0.0
    %1195 = vmatpush1.msra.mxu0 0.0
    %1196 = vmatprep.subr.mxu0 0.0
    %1197 = vmatpush1.msra.mxu0 0.0
    %1198 = vmatprep.mubr.f32.mxu0 0.0
    %v1199 = vand.u32 %v1039, 4294901760
    %1200 = vmatmul.mubr.f32.gmra.mrb[0].mxu0 %v1199
    %v1201 = vpop.f32.mrb[0].mxu0
    %v1202 = vadd.f32 %v1116, %v1201
    %v1203 = vpop.f32.mrb[0].mxu0
    %1204 = vdwg.mxu0
    %1205 = vmatprep.subr.mxu0 0.0
    %v1206 = vand.u32 %v1021, 4294901760
    %v1207 = vsub.f32 %v1021, %v1206
    %1208 = vmatpush1.msra.mxu0 %v1207
    %1209 = vmatprep.subr.mxu0 0.0
    %v1210 = vand.u32 %v1012, 4294901760
    %v1211 = vsub.f32 %v1012, %v1210
    %1212 = vmatpush1.msra.mxu0 %v1211
    %1213 = vmatprep.subr.mxu0 0.0
    %v1214 = vand.u32 %v1030, 4294901760
    %v1215 = vsub.f32 %v1030, %v1214
    %1216 = vmatpush1.msra.mxu0 %v1215
    %1217 = vmatprep.subr.mxu0 0.0
    %1218 = vmatpush1.msra.mxu0 0.0
    %1219 = vmatprep.subr.mxu0 0.0
    %1220 = vmatpush1.msra.mxu0 0.0
    %1221 = vmatprep.subr.mxu0 0.0
    %1222 = vmatpush1.msra.mxu0 0.0
    %1223 = vmatprep.subr.mxu0 0.0
    %1224 = vmatpush1.msra.mxu0 0.0
    %1225 = vmatprep.subr.mxu0 0.0
    %1226 = vmatpush1.msra.mxu0 0.0
    %1227 = vmatprep.subr.mxu0 0.0
    %1228 = vmatpush1.msra.mxu0 0.0
    %1229 = vmatprep.subr.mxu0 0.0
    %1230 = vmatpush1.msra.mxu0 0.0
    %1231 = vmatprep.subr.mxu0 0.0
    %1232 = vmatpush1.msra.mxu0 0.0
    %1233 = vmatprep.subr.mxu0 0.0
    %1234 = vmatpush1.msra.mxu0 0.0
    %1235 = vmatprep.subr.mxu0 0.0
    %1236 = vmatpush1.msra.mxu0 0.0
    %1237 = vmatprep.subr.mxu0 0.0
    %1238 = vmatpush1.msra.mxu0 0.0
    %1239 = vmatprep.subr.mxu0 0.0
    %1240 = vmatpush1.msra.mxu0 0.0
    %1241 = vmatprep.subr.mxu0 0.0
    %1242 = vmatpush1.msra.mxu0 0.0
    %1243 = vmatprep.subr.mxu0 0.0
    %1244 = vmatpush1.msra.mxu0 0.0
    %1245 = vmatprep.subr.mxu0 0.0
    %1246 = vmatpush1.msra.mxu0 0.0
    %1247 = vmatprep.subr.mxu0 0.0
    %1248 = vmatpush1.msra.mxu0 0.0
    %1249 = vmatprep.subr.mxu0 0.0
    %1250 = vmatpush1.msra.mxu0 0.0
    %1251 = vmatprep.subr.mxu0 0.0
    %1252 = vmatpush1.msra.mxu0 0.0
    %1253 = vmatprep.subr.mxu0 0.0
    %1254 = vmatpush1.msra.mxu0 0.0
    %1255 = vmatprep.subr.mxu0 0.0
    %1256 = vmatpush1.msra.mxu0 0.0
    %1257 = vmatprep.subr.mxu0 0.0
    %1258 = vmatpush1.msra.mxu0 0.0
    %1259 = vmatprep.subr.mxu0 0.0
    %1260 = vmatpush1.msra.mxu0 0.0
    %1261 = vmatprep.subr.mxu0 0.0
    %1262 = vmatpush1.msra.mxu0 0.0
    %1263 = vmatprep.subr.mxu0 0.0
    %1264 = vmatpush1.msra.mxu0 0.0
    %1265 = vmatprep.subr.mxu0 0.0
    %1266 = vmatpush1.msra.mxu0 0.0
    %1267 = vmatprep.subr.mxu0 0.0
    %1268 = vmatpush1.msra.mxu0 0.0
    %1269 = vmatprep.subr.mxu0 0.0
    %1270 = vmatpush1.msra.mxu0 0.0
    %1271 = vmatprep.subr.mxu0 0.0
    %1272 = vmatpush1.msra.mxu0 0.0
    %1273 = vmatprep.subr.mxu0 0.0
    %1274 = vmatpush1.msra.mxu0 0.0
    %1275 = vmatprep.mubr.f32.mxu0 0.0
    %v1276 = vand.u32 %v1039, 4294901760
    %v1277 = vsub.f32 %v1039, %v1276
    %1278 = vmatmul.mubr.f32.gmra.mrb[0].mxu0 %v1277
    %v1279 = vpop.f32.mrb[0].mxu0
    %v1280 = vadd.f32 %v1202, %v1279
    %v1281 = vpop.f32.mrb[0].mxu0
    %1282 = vdwg.mxu0
    %1283 = vmatprep.subr.mxu0 0.0
    %v1284 = vand.u32 %v1021, 4294901760
    %1285 = vmatpush1.msra.mxu0 %v1284
    %1286 = vmatprep.subr.mxu0 0.0
    %v1287 = vand.u32 %v1012, 4294901760
    %1288 = vmatpush1.msra.mxu0 %v1287
    %1289 = vmatprep.subr.mxu0 0.0
    %v1290 = vand.u32 %v1030, 4294901760
    %1291 = vmatpush1.msra.mxu0 %v1290
    %1292 = vmatprep.subr.mxu0 0.0
    %1293 = vmatpush1.msra.mxu0 0.0
    %1294 = vmatprep.subr.mxu0 0.0
    %1295 = vmatpush1.msra.mxu0 0.0
    %1296 = vmatprep.subr.mxu0 0.0
    %1297 = vmatpush1.msra.mxu0 0.0
    %1298 = vmatprep.subr.mxu0 0.0
    %1299 = vmatpush1.msra.mxu0 0.0
    %1300 = vmatprep.subr.mxu0 0.0
    %1301 = vmatpush1.msra.mxu0 0.0
    %1302 = vmatprep.subr.mxu0 0.0
    %1303 = vmatpush1.msra.mxu0 0.0
    %1304 = vmatprep.subr.mxu0 0.0
    %1305 = vmatpush1.msra.mxu0 0.0
    %1306 = vmatprep.subr.mxu0 0.0
    %1307 = vmatpush1.msra.mxu0 0.0
    %1308 = vmatprep.subr.mxu0 0.0
    %1309 = vmatpush1.msra.mxu0 0.0
    %1310 = vmatprep.subr.mxu0 0.0
    %1311 = vmatpush1.msra.mxu0 0.0
    %1312 = vmatprep.subr.mxu0 0.0
    %1313 = vmatpush1.msra.mxu0 0.0
    %1314 = vmatprep.subr.mxu0 0.0
    %1315 = vmatpush1.msra.mxu0 0.0
    %1316 = vmatprep.subr.mxu0 0.0
    %1317 = vmatpush1.msra.mxu0 0.0
    %1318 = vmatprep.subr.mxu0 0.0
    %1319 = vmatpush1.msra.mxu0 0.0
    %1320 = vmatprep.subr.mxu0 0.0
    %1321 = vmatpush1.msra.mxu0 0.0
    %1322 = vmatprep.subr.mxu0 0.0
    %1323 = vmatpush1.msra.mxu0 0.0
    %1324 = vmatprep.subr.mxu0 0.0
    %1325 = vmatpush1.msra.mxu0 0.0
    %1326 = vmatprep.subr.mxu0 0.0
    %1327 = vmatpush1.msra.mxu0 0.0
    %1328 = vmatprep.subr.mxu0 0.0
    %1329 = vmatpush1.msra.mxu0 0.0
    %1330 = vmatprep.subr.mxu0 0.0
    %1331 = vmatpush1.msra.mxu0 0.0
    %1332 = vmatprep.subr.mxu0 0.0
    %1333 = vmatpush1.msra.mxu0 0.0
    %1334 = vmatprep.subr.mxu0 0.0
    %1335 = vmatpush1.msra.mxu0 0.0
    %1336 = vmatprep.subr.mxu0 0.0
    %1337 = vmatpush1.msra.mxu0 0.0
    %1338 = vmatprep.subr.mxu0 0.0
    %1339 = vmatpush1.msra.mxu0 0.0
    %1340 = vmatprep.subr.mxu0 0.0
    %1341 = vmatpush1.msra.mxu0 0.0
    %1342 = vmatprep.subr.mxu0 0.0
    %1343 = vmatpush1.msra.mxu0 0.0
    %1344 = vmatprep.subr.mxu0 0.0
    %1345 = vmatpush1.msra.mxu0 0.0
    %1346 = vmatprep.subr.mxu0 0.0
    %1347 = vmatpush1.msra.mxu0 0.0
    %1348 = vmatprep.subr.mxu0 0.0
    %1349 = vmatpush1.msra.mxu0 0.0
    %1350 = vmatprep.mubr.f32.mxu0 0.0
    %v1351 = vand.u32 %v1039, 4294901760
    %v1352 = vsub.f32 %v1039, %v1351
    %v1353 = vand.u32 %v1352, 4294901760
    %1354 = vmatmul.mubr.f32.gmra.mrb[0].mxu0 %v1353
    %v1355 = vpop.f32.mrb[0].mxu0
    %v1356 = vadd.f32 %v1280, %v1355
    %v1357 = vpop.f32.mrb[0].mxu0
    %1358 = vdwg.mxu0
    %1359 = vmatprep.subr.mxu0 0.0
    %v1360 = vand.u32 %v1021, 4294901760
    %v1361 = vsub.f32 %v1021, %v1360
    %v1362 = vand.u32 %v1361, 4294901760
    %1363 = vmatpush1.msra.mxu0 %v1362
    %1364 = vmatprep.subr.mxu0 0.0
    %v1365 = vand.u32 %v1012, 4294901760
    %v1366 = vsub.f32 %v1012, %v1365
    %v1367 = vand.u32 %v1366, 4294901760
    %1368 = vmatpush1.msra.mxu0 %v1367
    %1369 = vmatprep.subr.mxu0 0.0
    %v1370 = vand.u32 %v1030, 4294901760
    %v1371 = vsub.f32 %v1030, %v1370
    %v1372 = vand.u32 %v1371, 4294901760
    %1373 = vmatpush1.msra.mxu0 %v1372
    %1374 = vmatprep.subr.mxu0 0.0
    %1375 = vmatpush1.msra.mxu0 0.0
    %1376 = vmatprep.subr.mxu0 0.0
    %1377 = vmatpush1.msra.mxu0 0.0
    %1378 = vmatprep.subr.mxu0 0.0
    %1379 = vmatpush1.msra.mxu0 0.0
    %1380 = vmatprep.subr.mxu0 0.0
    %1381 = vmatpush1.msra.mxu0 0.0
    %1382 = vmatprep.subr.mxu0 0.0
    %1383 = vmatpush1.msra.mxu0 0.0
    %1384 = vmatprep.subr.mxu0 0.0
    %1385 = vmatpush1.msra.mxu0 0.0
    %1386 = vmatprep.subr.mxu0 0.0
    %1387 = vmatpush1.msra.mxu0 0.0
    %1388 = vmatprep.subr.mxu0 0.0
    %1389 = vmatpush1.msra.mxu0 0.0
    %1390 = vmatprep.subr.mxu0 0.0
    %1391 = vmatpush1.msra.mxu0 0.0
    %1392 = vmatprep.subr.mxu0 0.0
    %1393 = vmatpush1.msra.mxu0 0.0
    %1394 = vmatprep.subr.mxu0 0.0
    %1395 = vmatpush1.msra.mxu0 0.0
    %1396 = vmatprep.subr.mxu0 0.0
    %1397 = vmatpush1.msra.mxu0 0.0
    %1398 = vmatprep.subr.mxu0 0.0
    %1399 = vmatpush1.msra.mxu0 0.0
    %1400 = vmatprep.subr.mxu0 0.0
    %1401 = vmatpush1.msra.mxu0 0.0
    %1402 = vmatprep.subr.mxu0 0.0
    %1403 = vmatpush1.msra.mxu0 0.0
    %1404 = vmatprep.subr.mxu0 0.0
    %1405 = vmatpush1.msra.mxu0 0.0
    %1406 = vmatprep.subr.mxu0 0.0
    %1407 = vmatpush1.msra.mxu0 0.0
    %1408 = vmatprep.subr.mxu0 0.0
    %1409 = vmatpush1.msra.mxu0 0.0
    %1410 = vmatprep.subr.mxu0 0.0
    %1411 = vmatpush1.msra.mxu0 0.0
    %1412 = vmatprep.subr.mxu0 0.0
    %1413 = vmatpush1.msra.mxu0 0.0
    %1414 = vmatprep.subr.mxu0 0.0
    %1415 = vmatpush1.msra.mxu0 0.0
    %1416 = vmatprep.subr.mxu0 0.0
    %1417 = vmatpush1.msra.mxu0 0.0
    %1418 = vmatprep.subr.mxu0 0.0
    %1419 = vmatpush1.msra.mxu0 0.0
    %1420 = vmatprep.subr.mxu0 0.0
    %1421 = vmatpush1.msra.mxu0 0.0
    %1422 = vmatprep.subr.mxu0 0.0
    %1423 = vmatpush1.msra.mxu0 0.0
    %1424 = vmatprep.subr.mxu0 0.0
    %1425 = vmatpush1.msra.mxu0 0.0
    %1426 = vmatprep.subr.mxu0 0.0
    %1427 = vmatpush1.msra.mxu0 0.0
    %1428 = vmatprep.subr.mxu0 0.0
    %1429 = vmatpush1.msra.mxu0 0.0
    %1430 = vmatprep.subr.mxu0 0.0
    %1431 = vmatpush1.msra.mxu0 0.0
    %1432 = vmatprep.mubr.f32.mxu0 0.0
    %v1433 = vand.u32 %v1039, 4294901760
    %1434 = vmatmul.mubr.f32.gmra.mrb[0].mxu0 %v1433
    %v1435 = vpop.f32.mrb[0].mxu0
    %v1436 = vadd.f32 %v1356, %v1435
    %v1437 = vpop.f32.mrb[0].mxu0
    %1438 = vdwg.mxu0
    %1439 = vmatprep.subr.mxu0 0.0
    %v1440 = vand.u32 %v1021, 4294901760
    %1441 = vmatpush1.msra.mxu0 %v1440
    %1442 = vmatprep.subr.mxu0 0.0
    %v1443 = vand.u32 %v1012, 4294901760
    %1444 = vmatpush1.msra.mxu0 %v1443
    %1445 = vmatprep.subr.mxu0 0.0
    %v1446 = vand.u32 %v1030, 4294901760
    %1447 = vmatpush1.msra.mxu0 %v1446
    %1448 = vmatprep.subr.mxu0 0.0
    %1449 = vmatpush1.msra.mxu0 0.0
    %1450 = vmatprep.subr.mxu0 0.0
    %1451 = vmatpush1.msra.mxu0 0.0
    %1452 = vmatprep.subr.mxu0 0.0
    %1453 = vmatpush1.msra.mxu0 0.0
    %1454 = vmatprep.subr.mxu0 0.0
    %1455 = vmatpush1.msra.mxu0 0.0
    %1456 = vmatprep.subr.mxu0 0.0
    %1457 = vmatpush1.msra.mxu0 0.0
    %1458 = vmatprep.subr.mxu0 0.0
    %1459 = vmatpush1.msra.mxu0 0.0
    %1460 = vmatprep.subr.mxu0 0.0
    %1461 = vmatpush1.msra.mxu0 0.0
    %1462 = vmatprep.subr.mxu0 0.0
    %1463 = vmatpush1.msra.mxu0 0.0
    %1464 = vmatprep.subr.mxu0 0.0
    %1465 = vmatpush1.msra.mxu0 0.0
    %1466 = vmatprep.subr.mxu0 0.0
    %1467 = vmatpush1.msra.mxu0 0.0
    %1468 = vmatprep.subr.mxu0 0.0
    %1469 = vmatpush1.msra.mxu0 0.0
    %1470 = vmatprep.subr.mxu0 0.0
    %1471 = vmatpush1.msra.mxu0 0.0
    %1472 = vmatprep.subr.mxu0 0.0
    %1473 = vmatpush1.msra.mxu0 0.0
    %1474 = vmatprep.subr.mxu0 0.0
    %1475 = vmatpush1.msra.mxu0 0.0
    %1476 = vmatprep.subr.mxu0 0.0
    %1477 = vmatpush1.msra.mxu0 0.0
    %1478 = vmatprep.subr.mxu0 0.0
    %1479 = vmatpush1.msra.mxu0 0.0
    %1480 = vmatprep.subr.mxu0 0.0
    %1481 = vmatpush1.msra.mxu0 0.0
    %1482 = vmatprep.subr.mxu0 0.0
    %1483 = vmatpush1.msra.mxu0 0.0
    %1484 = vmatprep.subr.mxu0 0.0
    %1485 = vmatpush1.msra.mxu0 0.0
    %1486 = vmatprep.subr.mxu0 0.0
    %1487 = vmatpush1.msra.mxu0 0.0
    %1488 = vmatprep.subr.mxu0 0.0
    %1489 = vmatpush1.msra.mxu0 0.0
    %1490 = vmatprep.subr.mxu0 0.0
    %1491 = vmatpush1.msra.mxu0 0.0
    %1492 = vmatprep.subr.mxu0 0.0
    %1493 = vmatpush1.msra.mxu0 0.0
    %1494 = vmatprep.subr.mxu0 0.0
    %1495 = vmatpush1.msra.mxu0 0.0
    %1496 = vmatprep.subr.mxu0 0.0
    %1497 = vmatpush1.msra.mxu0 0.0
    %1498 = vmatprep.subr.mxu0 0.0
    %1499 = vmatpush1.msra.mxu0 0.0
    %1500 = vmatprep.subr.mxu0 0.0
    %1501 = vmatpush1.msra.mxu0 0.0
    %1502 = vmatprep.subr.mxu0 0.0
    %1503 = vmatpush1.msra.mxu0 0.0
    %1504 = vmatprep.subr.mxu0 0.0
    %1505 = vmatpush1.msra.mxu0 0.0
    %1506 = vmatprep.mubr.f32.mxu0 0.0
    %v1507 = vand.u32 %v1039, 4294901760
    %1508 = vmatmul.mubr.f32.gmra.mrb[0].mxu0 %v1507
    %v1509 = vpop.f32.mrb[0].mxu0
    %v1510 = vadd.f32 %v1436, %v1509
    %v1511 = vpop.f32.mrb[0].mxu0
    %1512 = vdwg.mxu0
    %1513 = vadd.xlane.f32.xlu0 %v1510
    %v1514 = vpop.xlane.xlu0 %1513
    %s1515 = scalar_lea.vmem %s0, 8
    %v1516 = vld [vmem:[%s1515] sm:$0xff]
    %1517 = vmatprep.subr.mxu0 0.0
    %v1518 = vand.u32 %v1516, 4294901760
    %1519 = vmatpush1.msra.mxu0 %v1518
    %1520 = vmatprep.subr.mxu0 0.0
    %1521 = vmatpush1.msra.mxu0 0.0
    %1522 = vmatprep.subr.mxu0 0.0
    %1523 = vmatpush1.msra.mxu0 0.0
    %1524 = vmatprep.subr.mxu0 0.0
    %1525 = vmatpush1.msra.mxu0 0.0
    %1526 = vmatprep.subr.mxu0 0.0
    %1527 = vmatpush1.msra.mxu0 0.0
    %1528 = vmatprep.subr.mxu0 0.0
    %1529 = vmatpush1.msra.mxu0 0.0
    %1530 = vmatprep.subr.mxu0 0.0
    %1531 = vmatpush1.msra.mxu0 0.0
    %1532 = vmatprep.subr.mxu0 0.0
    %1533 = vmatpush1.msra.mxu0 0.0
    %1534 = vmatprep.subr.mxu0 0.0
    %1535 = vmatpush1.msra.mxu0 0.0
    %1536 = vmatprep.subr.mxu0 0.0
    %1537 = vmatpush1.msra.mxu0 0.0
    %1538 = vmatprep.subr.mxu0 0.0
    %1539 = vmatpush1.msra.mxu0 0.0
    %1540 = vmatprep.subr.mxu0 0.0
    %1541 = vmatpush1.msra.mxu0 0.0
    %1542 = vmatprep.subr.mxu0 0.0
    %1543 = vmatpush1.msra.mxu0 0.0
    %1544 = vmatprep.subr.mxu0 0.0
    %1545 = vmatpush1.msra.mxu0 0.0
    %1546 = vmatprep.subr.mxu0 0.0
    %1547 = vmatpush1.msra.mxu0 0.0
    %1548 = vmatprep.subr.mxu0 0.0
    %1549 = vmatpush1.msra.mxu0 0.0
    %1550 = vmatprep.subr.mxu0 0.0
    %1551 = vmatpush1.msra.mxu0 0.0
    %1552 = vmatprep.subr.mxu0 0.0
    %1553 = vmatpush1.msra.mxu0 0.0
    %1554 = vmatprep.subr.mxu0 0.0
    %1555 = vmatpush1.msra.mxu0 0.0
    %1556 = vmatprep.subr.mxu0 0.0
    %1557 = vmatpush1.msra.mxu0 0.0
    %1558 = vmatprep.subr.mxu0 0.0
    %1559 = vmatpush1.msra.mxu0 0.0
    %1560 = vmatprep.subr.mxu0 0.0
    %1561 = vmatpush1.msra.mxu0 0.0
    %1562 = vmatprep.subr.mxu0 0.0
    %1563 = vmatpush1.msra.mxu0 0.0
    %1564 = vmatprep.subr.mxu0 0.0
    %1565 = vmatpush1.msra.mxu0 0.0
    %1566 = vmatprep.subr.mxu0 0.0
    %1567 = vmatpush1.msra.mxu0 0.0
    %1568 = vmatprep.subr.mxu0 0.0
    %1569 = vmatpush1.msra.mxu0 0.0
    %1570 = vmatprep.subr.mxu0 0.0
    %1571 = vmatpush1.msra.mxu0 0.0
    %1572 = vmatprep.subr.mxu0 0.0
    %1573 = vmatpush1.msra.mxu0 0.0
    %1574 = vmatprep.subr.mxu0 0.0
    %1575 = vmatpush1.msra.mxu0 0.0
    %1576 = vmatprep.subr.mxu0 0.0
    %1577 = vmatpush1.msra.mxu0 0.0
    %1578 = vmatprep.subr.mxu0 0.0
    %1579 = vmatpush1.msra.mxu0 0.0
    %1580 = vmatprep.subr.mxu0 0.0
    %1581 = vmatpush1.msra.mxu0 0.0
    %1582 = vmatprep.mubr.f32.mxu0 0.0
    %v1583 = vand.u32 %v564, 4294901760
    %v1584 = vsub.f32 %v564, %v1583
    %v1585 = vand.u32 %v1584, 4294901760
    %v1586 = vsub.f32 %v1584, %v1585
    %v1587 = vand.u32 %v1586, 4294901760
    %1588 = vmatmul.mubr.f32.gmra.mrb[0].mxu0 %v1587
    %v1589 = vpop.f32.mrb[0].mxu0
    %v1590 = vadd.f32 %v560, %v1589
    %v1591 = vpop.f32.mrb[0].mxu0
    %1592 = vdwg.mxu0
    %1593 = vmatprep.subr.mxu0 0.0
    %v1594 = vand.u32 %v1516, 4294901760
    %v1595 = vsub.f32 %v1516, %v1594
    %v1596 = vand.u32 %v1595, 4294901760
    %v1597 = vsub.f32 %v1595, %v1596
    %v1598 = vand.u32 %v1597, 4294901760
    %1599 = vmatpush1.msra.mxu0 %v1598
    %1600 = vmatprep.subr.mxu0 0.0
    %1601 = vmatpush1.msra.mxu0 0.0
    %1602 = vmatprep.subr.mxu0 0.0
    %1603 = vmatpush1.msra.mxu0 0.0
    %1604 = vmatprep.subr.mxu0 0.0
    %1605 = vmatpush1.msra.mxu0 0.0
    %1606 = vmatprep.subr.mxu0 0.0
    %1607 = vmatpush1.msra.mxu0 0.0
    %1608 = vmatprep.subr.mxu0 0.0
    %1609 = vmatpush1.msra.mxu0 0.0
    %1610 = vmatprep.subr.mxu0 0.0
    %1611 = vmatpush1.msra.mxu0 0.0
    %1612 = vmatprep.subr.mxu0 0.0
    %1613 = vmatpush1.msra.mxu0 0.0
    %1614 = vmatprep.subr.mxu0 0.0
    %1615 = vmatpush1.msra.mxu0 0.0
    %1616 = vmatprep.subr.mxu0 0.0
    %1617 = vmatpush1.msra.mxu0 0.0
    %1618 = vmatprep.subr.mxu0 0.0
    %1619 = vmatpush1.msra.mxu0 0.0
    %1620 = vmatprep.subr.mxu0 0.0
    %1621 = vmatpush1.msra.mxu0 0.0
    %1622 = vmatprep.subr.mxu0 0.0
    %1623 = vmatpush1.msra.mxu0 0.0
    %1624 = vmatprep.subr.mxu0 0.0
    %1625 = vmatpush1.msra.mxu0 0.0
    %1626 = vmatprep.subr.mxu0 0.0
    %1627 = vmatpush1.msra.mxu0 0.0
    %1628 = vmatprep.subr.mxu0 0.0
    %1629 = vmatpush1.msra.mxu0 0.0
    %1630 = vmatprep.subr.mxu0 0.0
    %1631 = vmatpush1.msra.mxu0 0.0
    %1632 = vmatprep.subr.mxu0 0.0
    %1633 = vmatpush1.msra.mxu0 0.0
    %1634 = vmatprep.subr.mxu0 0.0
    %1635 = vmatpush1.msra.mxu0 0.0
    %1636 = vmatprep.subr.mxu0 0.0
    %1637 = vmatpush1.msra.mxu0 0.0
    %1638 = vmatprep.subr.mxu0 0.0
    %1639 = vmatpush1.msra.mxu0 0.0
    %1640 = vmatprep.subr.mxu0 0.0
    %1641 = vmatpush1.msra.mxu0 0.0
    %1642 = vmatprep.subr.mxu0 0.0
    %1643 = vmatpush1.msra.mxu0 0.0
    %1644 = vmatprep.subr.mxu0 0.0
    %1645 = vmatpush1.msra.mxu0 0.0
    %1646 = vmatprep.subr.mxu0 0.0
    %1647 = vmatpush1.msra.mxu0 0.0
    %1648 = vmatprep.subr.mxu0 0.0
    %1649 = vmatpush1.msra.mxu0 0.0
    %1650 = vmatprep.subr.mxu0 0.0
    %1651 = vmatpush1.msra.mxu0 0.0
    %1652 = vmatprep.subr.mxu0 0.0
    %1653 = vmatpush1.msra.mxu0 0.0
    %1654 = vmatprep.subr.mxu0 0.0
    %1655 = vmatpush1.msra.mxu0 0.0
    %1656 = vmatprep.subr.mxu0 0.0
    %1657 = vmatpush1.msra.mxu0 0.0
    %1658 = vmatprep.subr.mxu0 0.0
    %1659 = vmatpush1.msra.mxu0 0.0
    %1660 = vmatprep.subr.mxu0 0.0
    %1661 = vmatpush1.msra.mxu0 0.0
    %1662 = vmatprep.mubr.f32.mxu0 0.0
    %v1663 = vand.u32 %v564, 4294901760
    %1664 = vmatmul.mubr.f32.gmra.mrb[0].mxu0 %v1663
    %v1665 = vpop.f32.mrb[0].mxu0
    %v1666 = vadd.f32 %v1590, %v1665
    %v1667 = vpop.f32.mrb[0].mxu0
    %1668 = vdwg.mxu0
    %1669 = vmatprep.subr.mxu0 0.0
    %v1670 = vand.u32 %v1516, 4294901760
    %v1671 = vsub.f32 %v1516, %v1670
    %1672 = vmatpush1.msra.mxu0 %v1671
    %1673 = vmatprep.subr.mxu0 0.0
    %1674 = vmatpush1.msra.mxu0 0.0
    %1675 = vmatprep.subr.mxu0 0.0
    %1676 = vmatpush1.msra.mxu0 0.0
    %1677 = vmatprep.subr.mxu0 0.0
    %1678 = vmatpush1.msra.mxu0 0.0
    %1679 = vmatprep.subr.mxu0 0.0
    %1680 = vmatpush1.msra.mxu0 0.0
    %1681 = vmatprep.subr.mxu0 0.0
    %1682 = vmatpush1.msra.mxu0 0.0
    %1683 = vmatprep.subr.mxu0 0.0
    %1684 = vmatpush1.msra.mxu0 0.0
    %1685 = vmatprep.subr.mxu0 0.0
    %1686 = vmatpush1.msra.mxu0 0.0
    %1687 = vmatprep.subr.mxu0 0.0
    %1688 = vmatpush1.msra.mxu0 0.0
    %1689 = vmatprep.subr.mxu0 0.0
    %1690 = vmatpush1.msra.mxu0 0.0
    %1691 = vmatprep.subr.mxu0 0.0
    %1692 = vmatpush1.msra.mxu0 0.0
    %1693 = vmatprep.subr.mxu0 0.0
    %1694 = vmatpush1.msra.mxu0 0.0
    %1695 = vmatprep.subr.mxu0 0.0
    %1696 = vmatpush1.msra.mxu0 0.0
    %1697 = vmatprep.subr.mxu0 0.0
    %1698 = vmatpush1.msra.mxu0 0.0
    %1699 = vmatprep.subr.mxu0 0.0
    %1700 = vmatpush1.msra.mxu0 0.0
    %1701 = vmatprep.subr.mxu0 0.0
    %1702 = vmatpush1.msra.mxu0 0.0
    %1703 = vmatprep.subr.mxu0 0.0
    %1704 = vmatpush1.msra.mxu0 0.0
    %1705 = vmatprep.subr.mxu0 0.0
    %1706 = vmatpush1.msra.mxu0 0.0
    %1707 = vmatprep.subr.mxu0 0.0
    %1708 = vmatpush1.msra.mxu0 0.0
    %1709 = vmatprep.subr.mxu0 0.0
    %1710 = vmatpush1.msra.mxu0 0.0
    %1711 = vmatprep.subr.mxu0 0.0
    %1712 = vmatpush1.msra.mxu0 0.0
    %1713 = vmatprep.subr.mxu0 0.0
    %1714 = vmatpush1.msra.mxu0 0.0
    %1715 = vmatprep.subr.mxu0 0.0
    %1716 = vmatpush1.msra.mxu0 0.0
    %1717 = vmatprep.subr.mxu0 0.0
    %1718 = vmatpush1.msra.mxu0 0.0
    %1719 = vmatprep.subr.mxu0 0.0
    %1720 = vmatpush1.msra.mxu0 0.0
    %1721 = vmatprep.subr.mxu0 0.0
    %1722 = vmatpush1.msra.mxu0 0.0
    %1723 = vmatprep.subr.mxu0 0.0
    %1724 = vmatpush1.msra.mxu0 0.0
    %1725 = vmatprep.subr.mxu0 0.0
    %1726 = vmatpush1.msra.mxu0 0.0
    %1727 = vmatprep.subr.mxu0 0.0
    %1728 = vmatpush1.msra.mxu0 0.0
    %1729 = vmatprep.subr.mxu0 0.0
    %1730 = vmatpush1.msra.mxu0 0.0
    %1731 = vmatprep.subr.mxu0 0.0
    %1732 = vmatpush1.msra.mxu0 0.0
    %1733 = vmatprep.subr.mxu0 0.0
    %1734 = vmatpush1.msra.mxu0 0.0
    %1735 = vmatprep.mubr.f32.mxu0 0.0
    %v1736 = vand.u32 %v564, 4294901760
    %v1737 = vsub.f32 %v564, %v1736
    %1738 = vmatmul.mubr.f32.gmra.mrb[0].mxu0 %v1737
    %v1739 = vpop.f32.mrb[0].mxu0
    %v1740 = vadd.f32 %v1666, %v1739
    %v1741 = vpop.f32.mrb[0].mxu0
    %1742 = vdwg.mxu0
    %1743 = vmatprep.subr.mxu0 0.0
    %v1744 = vand.u32 %v1516, 4294901760
    %1745 = vmatpush1.msra.mxu0 %v1744
    %1746 = vmatprep.subr.mxu0 0.0
    %1747 = vmatpush1.msra.mxu0 0.0
    %1748 = vmatprep.subr.mxu0 0.0
    %1749 = vmatpush1.msra.mxu0 0.0
    %1750 = vmatprep.subr.mxu0 0.0
    %1751 = vmatpush1.msra.mxu0 0.0
    %1752 = vmatprep.subr.mxu0 0.0
    %1753 = vmatpush1.msra.mxu0 0.0
    %1754 = vmatprep.subr.mxu0 0.0
    %1755 = vmatpush1.msra.mxu0 0.0
    %1756 = vmatprep.subr.mxu0 0.0
    %1757 = vmatpush1.msra.mxu0 0.0
    %1758 = vmatprep.subr.mxu0 0.0
    %1759 = vmatpush1.msra.mxu0 0.0
    %1760 = vmatprep.subr.mxu0 0.0
    %1761 = vmatpush1.msra.mxu0 0.0
    %1762 = vmatprep.subr.mxu0 0.0
    %1763 = vmatpush1.msra.mxu0 0.0
    %1764 = vmatprep.subr.mxu0 0.0
    %1765 = vmatpush1.msra.mxu0 0.0
    %1766 = vmatprep.subr.mxu0 0.0
    %1767 = vmatpush1.msra.mxu0 0.0
    %1768 = vmatprep.subr.mxu0 0.0
    %1769 = vmatpush1.msra.mxu0 0.0
    %1770 = vmatprep.subr.mxu0 0.0
    %1771 = vmatpush1.msra.mxu0 0.0
    %1772 = vmatprep.subr.mxu0 0.0
    %1773 = vmatpush1.msra.mxu0 0.0
    %1774 = vmatprep.subr.mxu0 0.0
    %1775 = vmatpush1.msra.mxu0 0.0
    %1776 = vmatprep.subr.mxu0 0.0
    %1777 = vmatpush1.msra.mxu0 0.0
    %1778 = vmatprep.subr.mxu0 0.0
    %1779 = vmatpush1.msra.mxu0 0.0
    %1780 = vmatprep.subr.mxu0 0.0
    %1781 = vmatpush1.msra.mxu0 0.0
    %1782 = vmatprep.subr.mxu0 0.0
    %1783 = vmatpush1.msra.mxu0 0.0
    %1784 = vmatprep.subr.mxu0 0.0
    %1785 = vmatpush1.msra.mxu0 0.0
    %1786 = vmatprep.subr.mxu0 0.0
    %1787 = vmatpush1.msra.mxu0 0.0
    %1788 = vmatprep.subr.mxu0 0.0
    %1789 = vmatpush1.msra.mxu0 0.0
    %1790 = vmatprep.subr.mxu0 0.0
    %1791 = vmatpush1.msra.mxu0 0.0
    %1792 = vmatprep.subr.mxu0 0.0
    %1793 = vmatpush1.msra.mxu0 0.0
    %1794 = vmatprep.subr.mxu0 0.0
    %1795 = vmatpush1.msra.mxu0 0.0
    %1796 = vmatprep.subr.mxu0 0.0
    %1797 = vmatpush1.msra.mxu0 0.0
    %1798 = vmatprep.subr.mxu0 0.0
    %1799 = vmatpush1.msra.mxu0 0.0
    %1800 = vmatprep.subr.mxu0 0.0
    %1801 = vmatpush1.msra.mxu0 0.0
    %1802 = vmatprep.subr.mxu0 0.0
    %1803 = vmatpush1.msra.mxu0 0.0
    %1804 = vmatprep.subr.mxu0 0.0
    %1805 = vmatpush1.msra.mxu0 0.0
    %1806 = vmatprep.subr.mxu0 0.0
    %1807 = vmatpush1.msra.mxu0 0.0
    %1808 = vmatprep.mubr.f32.mxu0 0.0
    %v1809 = vand.u32 %v564, 4294901760
    %v1810 = vsub.f32 %v564, %v1809
    %v1811 = vand.u32 %v1810, 4294901760
    %1812 = vmatmul.mubr.f32.gmra.mrb[0].mxu0 %v1811
    %v1813 = vpop.f32.mrb[0].mxu0
    %v1814 = vadd.f32 %v1740, %v1813
    %v1815 = vpop.f32.mrb[0].mxu0
    %1816 = vdwg.mxu0
    %1817 = vmatprep.subr.mxu0 0.0
    %v1818 = vand.u32 %v1516, 4294901760
    %v1819 = vsub.f32 %v1516, %v1818
    %v1820 = vand.u32 %v1819, 4294901760
    %1821 = vmatpush1.msra.mxu0 %v1820
    %1822 = vmatprep.subr.mxu0 0.0
    %1823 = vmatpush1.msra.mxu0 0.0
    %1824 = vmatprep.subr.mxu0 0.0
    %1825 = vmatpush1.msra.mxu0 0.0
    %1826 = vmatprep.subr.mxu0 0.0
    %1827 = vmatpush1.msra.mxu0 0.0
    %1828 = vmatprep.subr.mxu0 0.0
    %1829 = vmatpush1.msra.mxu0 0.0
    %1830 = vmatprep.subr.mxu0 0.0
    %1831 = vmatpush1.msra.mxu0 0.0
    %1832 = vmatprep.subr.mxu0 0.0
    %1833 = vmatpush1.msra.mxu0 0.0
    %1834 = vmatprep.subr.mxu0 0.0
    %1835 = vmatpush1.msra.mxu0 0.0
    %1836 = vmatprep.subr.mxu0 0.0
    %1837 = vmatpush1.msra.mxu0 0.0
    %1838 = vmatprep.subr.mxu0 0.0
    %1839 = vmatpush1.msra.mxu0 0.0
    %1840 = vmatprep.subr.mxu0 0.0
    %1841 = vmatpush1.msra.mxu0 0.0
    %1842 = vmatprep.subr.mxu0 0.0
    %1843 = vmatpush1.msra.mxu0 0.0
    %1844 = vmatprep.subr.mxu0 0.0
    %1845 = vmatpush1.msra.mxu0 0.0
    %1846 = vmatprep.subr.mxu0 0.0
    %1847 = vmatpush1.msra.mxu0 0.0
    %1848 = vmatprep.subr.mxu0 0.0
    %1849 = vmatpush1.msra.mxu0 0.0
    %1850 = vmatprep.subr.mxu0 0.0
    %1851 = vmatpush1.msra.mxu0 0.0
    %1852 = vmatprep.subr.mxu0 0.0
    %1853 = vmatpush1.msra.mxu0 0.0
    %1854 = vmatprep.subr.mxu0 0.0
    %1855 = vmatpush1.msra.mxu0 0.0
    %1856 = vmatprep.subr.mxu0 0.0
    %1857 = vmatpush1.msra.mxu0 0.0
    %1858 = vmatprep.subr.mxu0 0.0
    %1859 = vmatpush1.msra.mxu0 0.0
    %1860 = vmatprep.subr.mxu0 0.0
    %1861 = vmatpush1.msra.mxu0 0.0
    %1862 = vmatprep.subr.mxu0 0.0
    %1863 = vmatpush1.msra.mxu0 0.0
    %1864 = vmatprep.subr.mxu0 0.0
    %1865 = vmatpush1.msra.mxu0 0.0
    %1866 = vmatprep.subr.mxu0 0.0
    %1867 = vmatpush1.msra.mxu0 0.0
    %1868 = vmatprep.subr.mxu0 0.0
    %1869 = vmatpush1.msra.mxu0 0.0
    %1870 = vmatprep.subr.mxu0 0.0
    %1871 = vmatpush1.msra.mxu0 0.0
    %1872 = vmatprep.subr.mxu0 0.0
    %1873 = vmatpush1.msra.mxu0 0.0
    %1874 = vmatprep.subr.mxu0 0.0
    %1875 = vmatpush1.msra.mxu0 0.0
    %1876 = vmatprep.subr.mxu0 0.0
    %1877 = vmatpush1.msra.mxu0 0.0
    %1878 = vmatprep.subr.mxu0 0.0
    %1879 = vmatpush1.msra.mxu0 0.0
    %1880 = vmatprep.subr.mxu0 0.0
    %1881 = vmatpush1.msra.mxu0 0.0
    %1882 = vmatprep.subr.mxu0 0.0
    %1883 = vmatpush1.msra.mxu0 0.0
    %1884 = vmatprep.mubr.f32.mxu0 0.0
    %v1885 = vand.u32 %v564, 4294901760
    %1886 = vmatmul.mubr.f32.gmra.mrb[0].mxu0 %v1885
    %v1887 = vpop.f32.mrb[0].mxu0
    %v1888 = vadd.f32 %v1814, %v1887
    %v1889 = vpop.f32.mrb[0].mxu0
    %1890 = vdwg.mxu0
    %1891 = vmatprep.subr.mxu0 0.0
    %v1892 = vand.u32 %v1516, 4294901760
    %1893 = vmatpush1.msra.mxu0 %v1892
    %1894 = vmatprep.subr.mxu0 0.0
    %1895 = vmatpush1.msra.mxu0 0.0
    %1896 = vmatprep.subr.mxu0 0.0
    %1897 = vmatpush1.msra.mxu0 0.0
    %1898 = vmatprep.subr.mxu0 0.0
    %1899 = vmatpush1.msra.mxu0 0.0
    %1900 = vmatprep.subr.mxu0 0.0
    %1901 = vmatpush1.msra.mxu0 0.0
    %1902 = vmatprep.subr.mxu0 0.0
    %1903 = vmatpush1.msra.mxu0 0.0
    %1904 = vmatprep.subr.mxu0 0.0
    %1905 = vmatpush1.msra.mxu0 0.0
    %1906 = vmatprep.subr.mxu0 0.0
    %1907 = vmatpush1.msra.mxu0 0.0
    %1908 = vmatprep.subr.mxu0 0.0
    %1909 = vmatpush1.msra.mxu0 0.0
    %1910 = vmatprep.subr.mxu0 0.0
    %1911 = vmatpush1.msra.mxu0 0.0
    %1912 = vmatprep.subr.mxu0 0.0
    %1913 = vmatpush1.msra.mxu0 0.0
    %1914 = vmatprep.subr.mxu0 0.0
    %1915 = vmatpush1.msra.mxu0 0.0
    %1916 = vmatprep.subr.mxu0 0.0
    %1917 = vmatpush1.msra.mxu0 0.0
    %1918 = vmatprep.subr.mxu0 0.0
    %1919 = vmatpush1.msra.mxu0 0.0
    %1920 = vmatprep.subr.mxu0 0.0
    %1921 = vmatpush1.msra.mxu0 0.0
    %1922 = vmatprep.subr.mxu0 0.0
    %1923 = vmatpush1.msra.mxu0 0.0
    %1924 = vmatprep.subr.mxu0 0.0
    %1925 = vmatpush1.msra.mxu0 0.0
    %1926 = vmatprep.subr.mxu0 0.0
    %1927 = vmatpush1.msra.mxu0 0.0
    %1928 = vmatprep.subr.mxu0 0.0
    %1929 = vmatpush1.msra.mxu0 0.0
    %1930 = vmatprep.subr.mxu0 0.0
    %1931 = vmatpush1.msra.mxu0 0.0
    %1932 = vmatprep.subr.mxu0 0.0
    %1933 = vmatpush1.msra.mxu0 0.0
    %1934 = vmatprep.subr.mxu0 0.0
    %1935 = vmatpush1.msra.mxu0 0.0
    %1936 = vmatprep.subr.mxu0 0.0
    %1937 = vmatpush1.msra.mxu0 0.0
    %1938 = vmatprep.subr.mxu0 0.0
    %1939 = vmatpush1.msra.mxu0 0.0
    %1940 = vmatprep.subr.mxu0 0.0
    %1941 = vmatpush1.msra.mxu0 0.0
    %1942 = vmatprep.subr.mxu0 0.0
    %1943 = vmatpush1.msra.mxu0 0.0
    %1944 = vmatprep.subr.mxu0 0.0
    %1945 = vmatpush1.msra.mxu0 0.0
    %1946 = vmatprep.subr.mxu0 0.0
    %1947 = vmatpush1.msra.mxu0 0.0
    %1948 = vmatprep.subr.mxu0 0.0
    %1949 = vmatpush1.msra.mxu0 0.0
    %1950 = vmatprep.subr.mxu0 0.0
    %1951 = vmatpush1.msra.mxu0 0.0
    %1952 = vmatprep.subr.mxu0 0.0
    %1953 = vmatpush1.msra.mxu0 0.0
    %1954 = vmatprep.subr.mxu0 0.0
    %1955 = vmatpush1.msra.mxu0 0.0
    %1956 = vmatprep.mubr.f32.mxu0 0.0
    %v1957 = vand.u32 %v564, 4294901760
    %1958 = vmatmul.mubr.f32.gmra.mrb[0].mxu0 %v1957
    %v1959 = vpop.f32.mrb[0].mxu0
    %v1960 = vadd.f32 %v1888, %v1959
    %v1961 = vpop.f32.mrb[0].mxu0
    %1962 = vdwg.mxu0
    %v1963 = vmax.f32 %v1960, 0.0
    %1964 = vrot.lane.b32.xlu0 %v1963, 1
    %v1965 = vpop.permute.xlu0 %1964
    %v1966 = vsel %vm1020, %v1965, 0.0
    %1967 = vrot.lane.b32.xlu0 %v1963, 127
    %v1968 = vpop.permute.xlu0 %1967
    %v1969 = vsel %vm1029, %v1968, 0.0
    %1970 = vmatprep.subr.mxu0 0.0
    %v1971 = vand.u32 %v1966, 4294901760
    %1972 = vmatpush1.msra.mxu0 %v1971
    %1973 = vmatprep.subr.mxu0 0.0
    %v1974 = vand.u32 %v1963, 4294901760
    %1975 = vmatpush1.msra.mxu0 %v1974
    %1976 = vmatprep.subr.mxu0 0.0
    %v1977 = vand.u32 %v1969, 4294901760
    %1978 = vmatpush1.msra.mxu0 %v1977
    %1979 = vmatprep.subr.mxu0 0.0
    %1980 = vmatpush1.msra.mxu0 0.0
    %1981 = vmatprep.subr.mxu0 0.0
    %1982 = vmatpush1.msra.mxu0 0.0
    %1983 = vmatprep.subr.mxu0 0.0
    %1984 = vmatpush1.msra.mxu0 0.0
    %1985 = vmatprep.subr.mxu0 0.0
    %1986 = vmatpush1.msra.mxu0 0.0
    %1987 = vmatprep.subr.mxu0 0.0
    %1988 = vmatpush1.msra.mxu0 0.0
    %1989 = vmatprep.subr.mxu0 0.0
    %1990 = vmatpush1.msra.mxu0 0.0
    %1991 = vmatprep.subr.mxu0 0.0
    %1992 = vmatpush1.msra.mxu0 0.0
    %1993 = vmatprep.subr.mxu0 0.0
    %1994 = vmatpush1.msra.mxu0 0.0
    %1995 = vmatprep.subr.mxu0 0.0
    %1996 = vmatpush1.msra.mxu0 0.0
    %1997 = vmatprep.subr.mxu0 0.0
    %1998 = vmatpush1.msra.mxu0 0.0
    %1999 = vmatprep.subr.mxu0 0.0
    %2000 = vmatpush1.msra.mxu0 0.0
    %2001 = vmatprep.subr.mxu0 0.0
    %2002 = vmatpush1.msra.mxu0 0.0
    %2003 = vmatprep.subr.mxu0 0.0
    %2004 = vmatpush1.msra.mxu0 0.0
    %2005 = vmatprep.subr.mxu0 0.0
    %2006 = vmatpush1.msra.mxu0 0.0
    %2007 = vmatprep.subr.mxu0 0.0
    %2008 = vmatpush1.msra.mxu0 0.0
    %2009 = vmatprep.subr.mxu0 0.0
    %2010 = vmatpush1.msra.mxu0 0.0
    %2011 = vmatprep.subr.mxu0 0.0
    %2012 = vmatpush1.msra.mxu0 0.0
    %2013 = vmatprep.subr.mxu0 0.0
    %2014 = vmatpush1.msra.mxu0 0.0
    %2015 = vmatprep.subr.mxu0 0.0
    %2016 = vmatpush1.msra.mxu0 0.0
    %2017 = vmatprep.subr.mxu0 0.0
    %2018 = vmatpush1.msra.mxu0 0.0
    %2019 = vmatprep.subr.mxu0 0.0
    %2020 = vmatpush1.msra.mxu0 0.0
    %2021 = vmatprep.subr.mxu0 0.0
    %2022 = vmatpush1.msra.mxu0 0.0
    %2023 = vmatprep.subr.mxu0 0.0
    %2024 = vmatpush1.msra.mxu0 0.0
    %2025 = vmatprep.subr.mxu0 0.0
    %2026 = vmatpush1.msra.mxu0 0.0
    %2027 = vmatprep.subr.mxu0 0.0
    %2028 = vmatpush1.msra.mxu0 0.0
    %2029 = vmatprep.subr.mxu0 0.0
    %2030 = vmatpush1.msra.mxu0 0.0
    %2031 = vmatprep.subr.mxu0 0.0
    %2032 = vmatpush1.msra.mxu0 0.0
    %2033 = vmatprep.subr.mxu0 0.0
    %2034 = vmatpush1.msra.mxu0 0.0
    %2035 = vmatprep.subr.mxu0 0.0
    %2036 = vmatpush1.msra.mxu0 0.0
    %2037 = vmatprep.mubr.f32.mxu0 0.0
    %v2038 = vand.u32 %v1039, 4294901760
    %v2039 = vsub.f32 %v1039, %v2038
    %v2040 = vand.u32 %v2039, 4294901760
    %v2041 = vsub.f32 %v2039, %v2040
    %v2042 = vand.u32 %v2041, 4294901760
    %2043 = vmatmul.mubr.f32.gmra.mrb[0].mxu0 %v2042
    %v2044 = vpop.f32.mrb[0].mxu0
    %v2045 = vadd.f32 %v1034, %v2044
    %v2046 = vpop.f32.mrb[0].mxu0
    %2047 = vdwg.mxu0
    %2048 = vmatprep.subr.mxu0 0.0
    %v2049 = vand.u32 %v1966, 4294901760
    %v2050 = vsub.f32 %v1966, %v2049
    %v2051 = vand.u32 %v2050, 4294901760
    %v2052 = vsub.f32 %v2050, %v2051
    %v2053 = vand.u32 %v2052, 4294901760
    %2054 = vmatpush1.msra.mxu0 %v2053
    %2055 = vmatprep.subr.mxu0 0.0
    %v2056 = vand.u32 %v1963, 4294901760
    %v2057 = vsub.f32 %v1963, %v2056
    %v2058 = vand.u32 %v2057, 4294901760
    %v2059 = vsub.f32 %v2057, %v2058
    %v2060 = vand.u32 %v2059, 4294901760
    %2061 = vmatpush1.msra.mxu0 %v2060
    %2062 = vmatprep.subr.mxu0 0.0
    %v2063 = vand.u32 %v1969, 4294901760
    %v2064 = vsub.f32 %v1969, %v2063
    %v2065 = vand.u32 %v2064, 4294901760
    %v2066 = vsub.f32 %v2064, %v2065
    %v2067 = vand.u32 %v2066, 4294901760
    %2068 = vmatpush1.msra.mxu0 %v2067
    %2069 = vmatprep.subr.mxu0 0.0
    %2070 = vmatpush1.msra.mxu0 0.0
    %2071 = vmatprep.subr.mxu0 0.0
    %2072 = vmatpush1.msra.mxu0 0.0
    %2073 = vmatprep.subr.mxu0 0.0
    %2074 = vmatpush1.msra.mxu0 0.0
    %2075 = vmatprep.subr.mxu0 0.0
    %2076 = vmatpush1.msra.mxu0 0.0
    %2077 = vmatprep.subr.mxu0 0.0
    %2078 = vmatpush1.msra.mxu0 0.0
    %2079 = vmatprep.subr.mxu0 0.0
    %2080 = vmatpush1.msra.mxu0 0.0
    %2081 = vmatprep.subr.mxu0 0.0
    %2082 = vmatpush1.msra.mxu0 0.0
    %2083 = vmatprep.subr.mxu0 0.0
    %2084 = vmatpush1.msra.mxu0 0.0
    %2085 = vmatprep.subr.mxu0 0.0
    %2086 = vmatpush1.msra.mxu0 0.0
    %2087 = vmatprep.subr.mxu0 0.0
    %2088 = vmatpush1.msra.mxu0 0.0
    %2089 = vmatprep.subr.mxu0 0.0
    %2090 = vmatpush1.msra.mxu0 0.0
    %2091 = vmatprep.subr.mxu0 0.0
    %2092 = vmatpush1.msra.mxu0 0.0
    %2093 = vmatprep.subr.mxu0 0.0
    %2094 = vmatpush1.msra.mxu0 0.0
    %2095 = vmatprep.subr.mxu0 0.0
    %2096 = vmatpush1.msra.mxu0 0.0
    %2097 = vmatprep.subr.mxu0 0.0
    %2098 = vmatpush1.msra.mxu0 0.0
    %2099 = vmatprep.subr.mxu0 0.0
    %2100 = vmatpush1.msra.mxu0 0.0
    %2101 = vmatprep.subr.mxu0 0.0
    %2102 = vmatpush1.msra.mxu0 0.0
    %2103 = vmatprep.subr.mxu0 0.0
    %2104 = vmatpush1.msra.mxu0 0.0
    %2105 = vmatprep.subr.mxu0 0.0
    %2106 = vmatpush1.msra.mxu0 0.0
    %2107 = vmatprep.subr.mxu0 0.0
    %2108 = vmatpush1.msra.mxu0 0.0
    %2109 = vmatprep.subr.mxu0 0.0
    %2110 = vmatpush1.msra.mxu0 0.0
    %2111 = vmatprep.subr.mxu0 0.0
    %2112 = vmatpush1.msra.mxu0 0.0
    %2113 = vmatprep.subr.mxu0 0.0
    %2114 = vmatpush1.msra.mxu0 0.0
    %2115 = vmatprep.subr.mxu0 0.0
    %2116 = vmatpush1.msra.mxu0 0.0
    %2117 = vmatprep.subr.mxu0 0.0
    %2118 = vmatpush1.msra.mxu0 0.0
    %2119 = vmatprep.subr.mxu0 0.0
    %2120 = vmatpush1.msra.mxu0 0.0
    %2121 = vmatprep.subr.mxu0 0.0
    %2122 = vmatpush1.msra.mxu0 0.0
    %2123 = vmatprep.subr.mxu0 0.0
    %2124 = vmatpush1.msra.mxu0 0.0
    %2125 = vmatprep.subr.mxu0 0.0
    %2126 = vmatpush1.msra.mxu0 0.0
    %2127 = vmatprep.mubr.f32.mxu0 0.0
    %v2128 = vand.u32 %v1039, 4294901760
    %2129 = vmatmul.mubr.f32.gmra.mrb[0].mxu0 %v2128
    %v2130 = vpop.f32.mrb[0].mxu0
    %v2131 = vadd.f32 %v2045, %v2130
    %v2132 = vpop.f32.mrb[0].mxu0
    %2133 = vdwg.mxu0
    %2134 = vmatprep.subr.mxu0 0.0
    %v2135 = vand.u32 %v1966, 4294901760
    %v2136 = vsub.f32 %v1966, %v2135
    %2137 = vmatpush1.msra.mxu0 %v2136
    %2138 = vmatprep.subr.mxu0 0.0
    %v2139 = vand.u32 %v1963, 4294901760
    %v2140 = vsub.f32 %v1963, %v2139
    %2141 = vmatpush1.msra.mxu0 %v2140
    %2142 = vmatprep.subr.mxu0 0.0
    %v2143 = vand.u32 %v1969, 4294901760
    %v2144 = vsub.f32 %v1969, %v2143
    %2145 = vmatpush1.msra.mxu0 %v2144
    %2146 = vmatprep.subr.mxu0 0.0
    %2147 = vmatpush1.msra.mxu0 0.0
    %2148 = vmatprep.subr.mxu0 0.0
    %2149 = vmatpush1.msra.mxu0 0.0
    %2150 = vmatprep.subr.mxu0 0.0
    %2151 = vmatpush1.msra.mxu0 0.0
    %2152 = vmatprep.subr.mxu0 0.0
    %2153 = vmatpush1.msra.mxu0 0.0
    %2154 = vmatprep.subr.mxu0 0.0
    %2155 = vmatpush1.msra.mxu0 0.0
    %2156 = vmatprep.subr.mxu0 0.0
    %2157 = vmatpush1.msra.mxu0 0.0
    %2158 = vmatprep.subr.mxu0 0.0
    %2159 = vmatpush1.msra.mxu0 0.0
    %2160 = vmatprep.subr.mxu0 0.0
    %2161 = vmatpush1.msra.mxu0 0.0
    %2162 = vmatprep.subr.mxu0 0.0
    %2163 = vmatpush1.msra.mxu0 0.0
    %2164 = vmatprep.subr.mxu0 0.0
    %2165 = vmatpush1.msra.mxu0 0.0
    %2166 = vmatprep.subr.mxu0 0.0
    %2167 = vmatpush1.msra.mxu0 0.0
    %2168 = vmatprep.subr.mxu0 0.0
    %2169 = vmatpush1.msra.mxu0 0.0
    %2170 = vmatprep.subr.mxu0 0.0
    %2171 = vmatpush1.msra.mxu0 0.0
    %2172 = vmatprep.subr.mxu0 0.0
    %2173 = vmatpush1.msra.mxu0 0.0
    %2174 = vmatprep.subr.mxu0 0.0
    %2175 = vmatpush1.msra.mxu0 0.0
    %2176 = vmatprep.subr.mxu0 0.0
    %2177 = vmatpush1.msra.mxu0 0.0
    %2178 = vmatprep.subr.mxu0 0.0
    %2179 = vmatpush1.msra.mxu0 0.0
    %2180 = vmatprep.subr.mxu0 0.0
    %2181 = vmatpush1.msra.mxu0 0.0
    %2182 = vmatprep.subr.mxu0 0.0
    %2183 = vmatpush1.msra.mxu0 0.0
    %2184 = vmatprep.subr.mxu0 0.0
    %2185 = vmatpush1.msra.mxu0 0.0
    %2186 = vmatprep.subr.mxu0 0.0
    %2187 = vmatpush1.msra.mxu0 0.0
    %2188 = vmatprep.subr.mxu0 0.0
    %2189 = vmatpush1.msra.mxu0 0.0
    %2190 = vmatprep.subr.mxu0 0.0
    %2191 = vmatpush1.msra.mxu0 0.0
    %2192 = vmatprep.subr.mxu0 0.0
    %2193 = vmatpush1.msra.mxu0 0.0
    %2194 = vmatprep.subr.mxu0 0.0
    %2195 = vmatpush1.msra.mxu0 0.0
    %2196 = vmatprep.subr.mxu0 0.0
    %2197 = vmatpush1.msra.mxu0 0.0
    %2198 = vmatprep.subr.mxu0 0.0
    %2199 = vmatpush1.msra.mxu0 0.0
    %2200 = vmatprep.subr.mxu0 0.0
    %2201 = vmatpush1.msra.mxu0 0.0
    %2202 = vmatprep.subr.mxu0 0.0
    %2203 = vmatpush1.msra.mxu0 0.0
    %2204 = vmatprep.mubr.f32.mxu0 0.0
    %v2205 = vand.u32 %v1039, 4294901760
    %v2206 = vsub.f32 %v1039, %v2205
    %2207 = vmatmul.mubr.f32.gmra.mrb[0].mxu0 %v2206
    %v2208 = vpop.f32.mrb[0].mxu0
    %v2209 = vadd.f32 %v2131, %v2208
    %v2210 = vpop.f32.mrb[0].mxu0
    %2211 = vdwg.mxu0
    %2212 = vmatprep.subr.mxu0 0.0
    %v2213 = vand.u32 %v1966, 4294901760
    %2214 = vmatpush1.msra.mxu0 %v2213
    %2215 = vmatprep.subr.mxu0 0.0
    %v2216 = vand.u32 %v1963, 4294901760
    %2217 = vmatpush1.msra.mxu0 %v2216
    %2218 = vmatprep.subr.mxu0 0.0
    %v2219 = vand.u32 %v1969, 4294901760
    %2220 = vmatpush1.msra.mxu0 %v2219
    %2221 = vmatprep.subr.mxu0 0.0
    %2222 = vmatpush1.msra.mxu0 0.0
    %2223 = vmatprep.subr.mxu0 0.0
    %2224 = vmatpush1.msra.mxu0 0.0
    %2225 = vmatprep.subr.mxu0 0.0
    %2226 = vmatpush1.msra.mxu0 0.0
    %2227 = vmatprep.subr.mxu0 0.0
    %2228 = vmatpush1.msra.mxu0 0.0
    %2229 = vmatprep.subr.mxu0 0.0
    %2230 = vmatpush1.msra.mxu0 0.0
    %2231 = vmatprep.subr.mxu0 0.0
    %2232 = vmatpush1.msra.mxu0 0.0
    %2233 = vmatprep.subr.mxu0 0.0
    %2234 = vmatpush1.msra.mxu0 0.0
    %2235 = vmatprep.subr.mxu0 0.0
    %2236 = vmatpush1.msra.mxu0 0.0
    %2237 = vmatprep.subr.mxu0 0.0
    %2238 = vmatpush1.msra.mxu0 0.0
    %2239 = vmatprep.subr.mxu0 0.0
    %2240 = vmatpush1.msra.mxu0 0.0
    %2241 = vmatprep.subr.mxu0 0.0
    %2242 = vmatpush1.msra.mxu0 0.0
    %2243 = vmatprep.subr.mxu0 0.0
    %2244 = vmatpush1.msra.mxu0 0.0
    %2245 = vmatprep.subr.mxu0 0.0
    %2246 = vmatpush1.msra.mxu0 0.0
    %2247 = vmatprep.subr.mxu0 0.0
    %2248 = vmatpush1.msra.mxu0 0.0
    %2249 = vmatprep.subr.mxu0 0.0
    %2250 = vmatpush1.msra.mxu0 0.0
    %2251 = vmatprep.subr.mxu0 0.0
    %2252 = vmatpush1.msra.mxu0 0.0
    %2253 = vmatprep.subr.mxu0 0.0
    %2254 = vmatpush1.msra.mxu0 0.0
    %2255 = vmatprep.subr.mxu0 0.0
    %2256 = vmatpush1.msra.mxu0 0.0
    %2257 = vmatprep.subr.mxu0 0.0
    %2258 = vmatpush1.msra.mxu0 0.0
    %2259 = vmatprep.subr.mxu0 0.0
    %2260 = vmatpush1.msra.mxu0 0.0
    %2261 = vmatprep.subr.mxu0 0.0
    %2262 = vmatpush1.msra.mxu0 0.0
    %2263 = vmatprep.subr.mxu0 0.0
    %2264 = vmatpush1.msra.mxu0 0.0
    %2265 = vmatprep.subr.mxu0 0.0
    %2266 = vmatpush1.msra.mxu0 0.0
    %2267 = vmatprep.subr.mxu0 0.0
    %2268 = vmatpush1.msra.mxu0 0.0
    %2269 = vmatprep.subr.mxu0 0.0
    %2270 = vmatpush1.msra.mxu0 0.0
    %2271 = vmatprep.subr.mxu0 0.0
    %2272 = vmatpush1.msra.mxu0 0.0
    %2273 = vmatprep.subr.mxu0 0.0
    %2274 = vmatpush1.msra.mxu0 0.0
    %2275 = vmatprep.subr.mxu0 0.0
    %2276 = vmatpush1.msra.mxu0 0.0
    %2277 = vmatprep.subr.mxu0 0.0
    %2278 = vmatpush1.msra.mxu0 0.0
    %2279 = vmatprep.mubr.f32.mxu0 0.0
    %v2280 = vand.u32 %v1039, 4294901760
    %v2281 = vsub.f32 %v1039, %v2280
    %v2282 = vand.u32 %v2281, 4294901760
    %2283 = vmatmul.mubr.f32.gmra.mrb[0].mxu0 %v2282
    %v2284 = vpop.f32.mrb[0].mxu0
    %v2285 = vadd.f32 %v2209, %v2284
    %v2286 = vpop.f32.mrb[0].mxu0
    %2287 = vdwg.mxu0
    %2288 = vmatprep.subr.mxu0 0.0
    %v2289 = vand.u32 %v1966, 4294901760
    %v2290 = vsub.f32 %v1966, %v2289
    %v2291 = vand.u32 %v2290, 4294901760
    %2292 = vmatpush1.msra.mxu0 %v2291
    %2293 = vmatprep.subr.mxu0 0.0
    %v2294 = vand.u32 %v1963, 4294901760
    %v2295 = vsub.f32 %v1963, %v2294
    %v2296 = vand.u32 %v2295, 4294901760
    %2297 = vmatpush1.msra.mxu0 %v2296
    %2298 = vmatprep.subr.mxu0 0.0
    %v2299 = vand.u32 %v1969, 4294901760
    %v2300 = vsub.f32 %v1969, %v2299
    %v2301 = vand.u32 %v2300, 4294901760
    %2302 = vmatpush1.msra.mxu0 %v2301
    %2303 = vmatprep.subr.mxu0 0.0
    %2304 = vmatpush1.msra.mxu0 0.0
    %2305 = vmatprep.subr.mxu0 0.0
    %2306 = vmatpush1.msra.mxu0 0.0
    %2307 = vmatprep.subr.mxu0 0.0
    %2308 = vmatpush1.msra.mxu0 0.0
    %2309 = vmatprep.subr.mxu0 0.0
    %2310 = vmatpush1.msra.mxu0 0.0
    %2311 = vmatprep.subr.mxu0 0.0
    %2312 = vmatpush1.msra.mxu0 0.0
    %2313 = vmatprep.subr.mxu0 0.0
    %2314 = vmatpush1.msra.mxu0 0.0
    %2315 = vmatprep.subr.mxu0 0.0
    %2316 = vmatpush1.msra.mxu0 0.0
    %2317 = vmatprep.subr.mxu0 0.0
    %2318 = vmatpush1.msra.mxu0 0.0
    %2319 = vmatprep.subr.mxu0 0.0
    %2320 = vmatpush1.msra.mxu0 0.0
    %2321 = vmatprep.subr.mxu0 0.0
    %2322 = vmatpush1.msra.mxu0 0.0
    %2323 = vmatprep.subr.mxu0 0.0
    %2324 = vmatpush1.msra.mxu0 0.0
    %2325 = vmatprep.subr.mxu0 0.0
    %2326 = vmatpush1.msra.mxu0 0.0
    %2327 = vmatprep.subr.mxu0 0.0
    %2328 = vmatpush1.msra.mxu0 0.0
    %2329 = vmatprep.subr.mxu0 0.0
    %2330 = vmatpush1.msra.mxu0 0.0
    %2331 = vmatprep.subr.mxu0 0.0
    %2332 = vmatpush1.msra.mxu0 0.0
    %2333 = vmatprep.subr.mxu0 0.0
    %2334 = vmatpush1.msra.mxu0 0.0
    %2335 = vmatprep.subr.mxu0 0.0
    %2336 = vmatpush1.msra.mxu0 0.0
    %2337 = vmatprep.subr.mxu0 0.0
    %2338 = vmatpush1.msra.mxu0 0.0
    %2339 = vmatprep.subr.mxu0 0.0
    %2340 = vmatpush1.msra.mxu0 0.0
    %2341 = vmatprep.subr.mxu0 0.0
    %2342 = vmatpush1.msra.mxu0 0.0
    %2343 = vmatprep.subr.mxu0 0.0
    %2344 = vmatpush1.msra.mxu0 0.0
    %2345 = vmatprep.subr.mxu0 0.0
    %2346 = vmatpush1.msra.mxu0 0.0
    %2347 = vmatprep.subr.mxu0 0.0
    %2348 = vmatpush1.msra.mxu0 0.0
    %2349 = vmatprep.subr.mxu0 0.0
    %2350 = vmatpush1.msra.mxu0 0.0
    %2351 = vmatprep.subr.mxu0 0.0
    %2352 = vmatpush1.msra.mxu0 0.0
    %2353 = vmatprep.subr.mxu0 0.0
    %2354 = vmatpush1.msra.mxu0 0.0
    %2355 = vmatprep.subr.mxu0 0.0
    %2356 = vmatpush1.msra.mxu0 0.0
    %2357 = vmatprep.subr.mxu0 0.0
    %2358 = vmatpush1.msra.mxu0 0.0
    %2359 = vmatprep.subr.mxu0 0.0
    %2360 = vmatpush1.msra.mxu0 0.0
    %2361 = vmatprep.mubr.f32.mxu0 0.0
    %v2362 = vand.u32 %v1039, 4294901760
    %2363 = vmatmul.mubr.f32.gmra.mrb[0].mxu0 %v2362
    %v2364 = vpop.f32.mrb[0].mxu0
    %v2365 = vadd.f32 %v2285, %v2364
    %v2366 = vpop.f32.mrb[0].mxu0
    %2367 = vdwg.mxu0
    %2368 = vmatprep.subr.mxu0 0.0
    %v2369 = vand.u32 %v1966, 4294901760
    %2370 = vmatpush1.msra.mxu0 %v2369
    %2371 = vmatprep.subr.mxu0 0.0
    %v2372 = vand.u32 %v1963, 4294901760
    %2373 = vmatpush1.msra.mxu0 %v2372
    %2374 = vmatprep.subr.mxu0 0.0
    %v2375 = vand.u32 %v1969, 4294901760
    %2376 = vmatpush1.msra.mxu0 %v2375
    %2377 = vmatprep.subr.mxu0 0.0
    %2378 = vmatpush1.msra.mxu0 0.0
    %2379 = vmatprep.subr.mxu0 0.0
    %2380 = vmatpush1.msra.mxu0 0.0
    %2381 = vmatprep.subr.mxu0 0.0
    %2382 = vmatpush1.msra.mxu0 0.0
    %2383 = vmatprep.subr.mxu0 0.0
    %2384 = vmatpush1.msra.mxu0 0.0
    %2385 = vmatprep.subr.mxu0 0.0
    %2386 = vmatpush1.msra.mxu0 0.0
    %2387 = vmatprep.subr.mxu0 0.0
    %2388 = vmatpush1.msra.mxu0 0.0
    %2389 = vmatprep.subr.mxu0 0.0
    %2390 = vmatpush1.msra.mxu0 0.0
    %2391 = vmatprep.subr.mxu0 0.0
    %2392 = vmatpush1.msra.mxu0 0.0
    %2393 = vmatprep.subr.mxu0 0.0
    %2394 = vmatpush1.msra.mxu0 0.0
    %2395 = vmatprep.subr.mxu0 0.0
    %2396 = vmatpush1.msra.mxu0 0.0
    %2397 = vmatprep.subr.mxu0 0.0
    %2398 = vmatpush1.msra.mxu0 0.0
    %2399 = vmatprep.subr.mxu0 0.0
    %2400 = vmatpush1.msra.mxu0 0.0
    %2401 = vmatprep.subr.mxu0 0.0
    %2402 = vmatpush1.msra.mxu0 0.0
    %2403 = vmatprep.subr.mxu0 0.0
    %2404 = vmatpush1.msra.mxu0 0.0
    %2405 = vmatprep.subr.mxu0 0.0
    %2406 = vmatpush1.msra.mxu0 0.0
    %2407 = vmatprep.subr.mxu0 0.0
    %2408 = vmatpush1.msra.mxu0 0.0
    %2409 = vmatprep.subr.mxu0 0.0
    %2410 = vmatpush1.msra.mxu0 0.0
    %2411 = vmatprep.subr.mxu0 0.0
    %2412 = vmatpush1.msra.mxu0 0.0
    %2413 = vmatprep.subr.mxu0 0.0
    %2414 = vmatpush1.msra.mxu0 0.0
    %2415 = vmatprep.subr.mxu0 0.0
    %2416 = vmatpush1.msra.mxu0 0.0
    %2417 = vmatprep.subr.mxu0 0.0
    %2418 = vmatpush1.msra.mxu0 0.0
    %2419 = vmatprep.subr.mxu0 0.0
    %2420 = vmatpush1.msra.mxu0 0.0
    %2421 = vmatprep.subr.mxu0 0.0
    %2422 = vmatpush1.msra.mxu0 0.0
    %2423 = vmatprep.subr.mxu0 0.0
    %2424 = vmatpush1.msra.mxu0 0.0
    %2425 = vmatprep.subr.mxu0 0.0
    %2426 = vmatpush1.msra.mxu0 0.0
    %2427 = vmatprep.subr.mxu0 0.0
    %2428 = vmatpush1.msra.mxu0 0.0
    %2429 = vmatprep.subr.mxu0 0.0
    %2430 = vmatpush1.msra.mxu0 0.0
    %2431 = vmatprep.subr.mxu0 0.0
    %2432 = vmatpush1.msra.mxu0 0.0
    %2433 = vmatprep.subr.mxu0 0.0
    %2434 = vmatpush1.msra.mxu0 0.0
    %2435 = vmatprep.mubr.f32.mxu0 0.0
    %v2436 = vand.u32 %v1039, 4294901760
    %2437 = vmatmul.mubr.f32.gmra.mrb[0].mxu0 %v2436
    %v2438 = vpop.f32.mrb[0].mxu0
    %v2439 = vadd.f32 %v2365, %v2438
    %v2440 = vpop.f32.mrb[0].mxu0
    %2441 = vdwg.mxu0
    %2442 = vadd.xlane.f32.xlu0 %v2439
    %v2443 = vpop.xlane.xlu0 %2442
    %v2444 = vadd.f32 %v1514, %v2443
    %s2445 = scalar_lea.vmem %s0, 16
    %v2446 = vld [vmem:[%s2445] sm:$0xff]
    %2447 = vmatprep.subr.mxu0 0.0
    %v2448 = vand.u32 %v2446, 4294901760
    %2449 = vmatpush1.msra.mxu0 %v2448
    %2450 = vmatprep.subr.mxu0 0.0
    %2451 = vmatpush1.msra.mxu0 0.0
    %2452 = vmatprep.subr.mxu0 0.0
    %2453 = vmatpush1.msra.mxu0 0.0
    %2454 = vmatprep.subr.mxu0 0.0
    %2455 = vmatpush1.msra.mxu0 0.0
    %2456 = vmatprep.subr.mxu0 0.0
    %2457 = vmatpush1.msra.mxu0 0.0
    %2458 = vmatprep.subr.mxu0 0.0
    %2459 = vmatpush1.msra.mxu0 0.0
    %2460 = vmatprep.subr.mxu0 0.0
    %2461 = vmatpush1.msra.mxu0 0.0
    %2462 = vmatprep.subr.mxu0 0.0
    %2463 = vmatpush1.msra.mxu0 0.0
    %2464 = vmatprep.subr.mxu0 0.0
    %2465 = vmatpush1.msra.mxu0 0.0
    %2466 = vmatprep.subr.mxu0 0.0
    %2467 = vmatpush1.msra.mxu0 0.0
    %2468 = vmatprep.subr.mxu0 0.0
    %2469 = vmatpush1.msra.mxu0 0.0
    %2470 = vmatprep.subr.mxu0 0.0
    %2471 = vmatpush1.msra.mxu0 0.0
    %2472 = vmatprep.subr.mxu0 0.0
    %2473 = vmatpush1.msra.mxu0 0.0
    %2474 = vmatprep.subr.mxu0 0.0
    %2475 = vmatpush1.msra.mxu0 0.0
    %2476 = vmatprep.subr.mxu0 0.0
    %2477 = vmatpush1.msra.mxu0 0.0
    %2478 = vmatprep.subr.mxu0 0.0
    %2479 = vmatpush1.msra.mxu0 0.0
    %2480 = vmatprep.subr.mxu0 0.0
    %2481 = vmatpush1.msra.mxu0 0.0
    %2482 = vmatprep.subr.mxu0 0.0
    %2483 = vmatpush1.msra.mxu0 0.0
    %2484 = vmatprep.subr.mxu0 0.0
    %2485 = vmatpush1.msra.mxu0 0.0
    %2486 = vmatprep.subr.mxu0 0.0
    %2487 = vmatpush1.msra.mxu0 0.0
    %2488 = vmatprep.subr.mxu0 0.0
    %2489 = vmatpush1.msra.mxu0 0.0
    %2490 = vmatprep.subr.mxu0 0.0
    %2491 = vmatpush1.msra.mxu0 0.0
    %2492 = vmatprep.subr.mxu0 0.0
    %2493 = vmatpush1.msra.mxu0 0.0
    %2494 = vmatprep.subr.mxu0 0.0
    %2495 = vmatpush1.msra.mxu0 0.0
    %2496 = vmatprep.subr.mxu0 0.0
    %2497 = vmatpush1.msra.mxu0 0.0
    %2498 = vmatprep.subr.mxu0 0.0
    %2499 = vmatpush1.msra.mxu0 0.0
    %2500 = vmatprep.subr.mxu0 0.0
    %2501 = vmatpush1.msra.mxu0 0.0
    %2502 = vmatprep.subr.mxu0 0.0
    %2503 = vmatpush1.msra.mxu0 0.0
    %2504 = vmatprep.subr.mxu0 0.0
    %2505 = vmatpush1.msra.mxu0 0.0
    %2506 = vmatprep.subr.mxu0 0.0
    %2507 = vmatpush1.msra.mxu0 0.0
    %2508 = vmatprep.subr.mxu0 0.0
    %2509 = vmatpush1.msra.mxu0 0.0
    %2510 = vmatprep.subr.mxu0 0.0
    %2511 = vmatpush1.msra.mxu0 0.0
    %2512 = vmatprep.mubr.f32.mxu0 0.0
    %v2513 = vand.u32 %v564, 4294901760
    %v2514 = vsub.f32 %v564, %v2513
    %v2515 = vand.u32 %v2514, 4294901760
    %v2516 = vsub.f32 %v2514, %v2515
    %v2517 = vand.u32 %v2516, 4294901760
    %2518 = vmatmul.mubr.f32.gmra.mrb[0].mxu0 %v2517
    %v2519 = vpop.f32.mrb[0].mxu0
    %v2520 = vadd.f32 %v560, %v2519
    %v2521 = vpop.f32.mrb[0].mxu0
    %2522 = vdwg.mxu0
    %2523 = vmatprep.subr.mxu0 0.0
    %v2524 = vand.u32 %v2446, 4294901760
    %v2525 = vsub.f32 %v2446, %v2524
    %v2526 = vand.u32 %v2525, 4294901760
    %v2527 = vsub.f32 %v2525, %v2526
    %v2528 = vand.u32 %v2527, 4294901760
    %2529 = vmatpush1.msra.mxu0 %v2528
    %2530 = vmatprep.subr.mxu0 0.0
    %2531 = vmatpush1.msra.mxu0 0.0
    %2532 = vmatprep.subr.mxu0 0.0
    %2533 = vmatpush1.msra.mxu0 0.0
    %2534 = vmatprep.subr.mxu0 0.0
    %2535 = vmatpush1.msra.mxu0 0.0
    %2536 = vmatprep.subr.mxu0 0.0
    %2537 = vmatpush1.msra.mxu0 0.0
    %2538 = vmatprep.subr.mxu0 0.0
    %2539 = vmatpush1.msra.mxu0 0.0
    %2540 = vmatprep.subr.mxu0 0.0
    %2541 = vmatpush1.msra.mxu0 0.0
    %2542 = vmatprep.subr.mxu0 0.0
    %2543 = vmatpush1.msra.mxu0 0.0
    %2544 = vmatprep.subr.mxu0 0.0
    %2545 = vmatpush1.msra.mxu0 0.0
    %2546 = vmatprep.subr.mxu0 0.0
    %2547 = vmatpush1.msra.mxu0 0.0
    %2548 = vmatprep.subr.mxu0 0.0
    %2549 = vmatpush1.msra.mxu0 0.0
    %2550 = vmatprep.subr.mxu0 0.0
    %2551 = vmatpush1.msra.mxu0 0.0
    %2552 = vmatprep.subr.mxu0 0.0
    %2553 = vmatpush1.msra.mxu0 0.0
    %2554 = vmatprep.subr.mxu0 0.0
    %2555 = vmatpush1.msra.mxu0 0.0
    %2556 = vmatprep.subr.mxu0 0.0
    %2557 = vmatpush1.msra.mxu0 0.0
    %2558 = vmatprep.subr.mxu0 0.0
    %2559 = vmatpush1.msra.mxu0 0.0
    %2560 = vmatprep.subr.mxu0 0.0
    %2561 = vmatpush1.msra.mxu0 0.0
    %2562 = vmatprep.subr.mxu0 0.0
    %2563 = vmatpush1.msra.mxu0 0.0
    %2564 = vmatprep.subr.mxu0 0.0
    %2565 = vmatpush1.msra.mxu0 0.0
    %2566 = vmatprep.subr.mxu0 0.0
    %2567 = vmatpush1.msra.mxu0 0.0
    %2568 = vmatprep.subr.mxu0 0.0
    %2569 = vmatpush1.msra.mxu0 0.0
    %2570 = vmatprep.subr.mxu0 0.0
    %2571 = vmatpush1.msra.mxu0 0.0
    %2572 = vmatprep.subr.mxu0 0.0
    %2573 = vmatpush1.msra.mxu0 0.0
    %2574 = vmatprep.subr.mxu0 0.0
    %2575 = vmatpush1.msra.mxu0 0.0
    %2576 = vmatprep.subr.mxu0 0.0
    %2577 = vmatpush1.msra.mxu0 0.0
    %2578 = vmatprep.subr.mxu0 0.0
    %2579 = vmatpush1.msra.mxu0 0.0
    %2580 = vmatprep.subr.mxu0 0.0
    %2581 = vmatpush1.msra.mxu0 0.0
    %2582 = vmatprep.subr.mxu0 0.0
    %2583 = vmatpush1.msra.mxu0 0.0
    %2584 = vmatprep.subr.mxu0 0.0
    %2585 = vmatpush1.msra.mxu0 0.0
    %2586 = vmatprep.subr.mxu0 0.0
    %2587 = vmatpush1.msra.mxu0 0.0
    %2588 = vmatprep.subr.mxu0 0.0
    %2589 = vmatpush1.msra.mxu0 0.0
    %2590 = vmatprep.subr.mxu0 0.0
    %2591 = vmatpush1.msra.mxu0 0.0
    %2592 = vmatprep.mubr.f32.mxu0 0.0
    %v2593 = vand.u32 %v564, 4294901760
    %2594 = vmatmul.mubr.f32.gmra.mrb[0].mxu0 %v2593
    %v2595 = vpop.f32.mrb[0].mxu0
    %v2596 = vadd.f32 %v2520, %v2595
    %v2597 = vpop.f32.mrb[0].mxu0
    %2598 = vdwg.mxu0
    %2599 = vmatprep.subr.mxu0 0.0
    %v2600 = vand.u32 %v2446, 4294901760
    %v2601 = vsub.f32 %v2446, %v2600
    %2602 = vmatpush1.msra.mxu0 %v2601
    %2603 = vmatprep.subr.mxu0 0.0
    %2604 = vmatpush1.msra.mxu0 0.0
    %2605 = vmatprep.subr.mxu0 0.0
    %2606 = vmatpush1.msra.mxu0 0.0
    %2607 = vmatprep.subr.mxu0 0.0
    %2608 = vmatpush1.msra.mxu0 0.0
    %2609 = vmatprep.subr.mxu0 0.0
    %2610 = vmatpush1.msra.mxu0 0.0
    %2611 = vmatprep.subr.mxu0 0.0
    %2612 = vmatpush1.msra.mxu0 0.0
    %2613 = vmatprep.subr.mxu0 0.0
    %2614 = vmatpush1.msra.mxu0 0.0
    %2615 = vmatprep.subr.mxu0 0.0
    %2616 = vmatpush1.msra.mxu0 0.0
    %2617 = vmatprep.subr.mxu0 0.0
    %2618 = vmatpush1.msra.mxu0 0.0
    %2619 = vmatprep.subr.mxu0 0.0
    %2620 = vmatpush1.msra.mxu0 0.0
    %2621 = vmatprep.subr.mxu0 0.0
    %2622 = vmatpush1.msra.mxu0 0.0
    %2623 = vmatprep.subr.mxu0 0.0
    %2624 = vmatpush1.msra.mxu0 0.0
    %2625 = vmatprep.subr.mxu0 0.0
    %2626 = vmatpush1.msra.mxu0 0.0
    %2627 = vmatprep.subr.mxu0 0.0
    %2628 = vmatpush1.msra.mxu0 0.0
    %2629 = vmatprep.subr.mxu0 0.0
    %2630 = vmatpush1.msra.mxu0 0.0
    %2631 = vmatprep.subr.mxu0 0.0
    %2632 = vmatpush1.msra.mxu0 0.0
    %2633 = vmatprep.subr.mxu0 0.0
    %2634 = vmatpush1.msra.mxu0 0.0
    %2635 = vmatprep.subr.mxu0 0.0
    %2636 = vmatpush1.msra.mxu0 0.0
    %2637 = vmatprep.subr.mxu0 0.0
    %2638 = vmatpush1.msra.mxu0 0.0
    %2639 = vmatprep.subr.mxu0 0.0
    %2640 = vmatpush1.msra.mxu0 0.0
    %2641 = vmatprep.subr.mxu0 0.0
    %2642 = vmatpush1.msra.mxu0 0.0
    %2643 = vmatprep.subr.mxu0 0.0
    %2644 = vmatpush1.msra.mxu0 0.0
    %2645 = vmatprep.subr.mxu0 0.0
    %2646 = vmatpush1.msra.mxu0 0.0
    %2647 = vmatprep.subr.mxu0 0.0
    %2648 = vmatpush1.msra.mxu0 0.0
    %2649 = vmatprep.subr.mxu0 0.0
    %2650 = vmatpush1.msra.mxu0 0.0
    %2651 = vmatprep.subr.mxu0 0.0
    %2652 = vmatpush1.msra.mxu0 0.0
    %2653 = vmatprep.subr.mxu0 0.0
    %2654 = vmatpush1.msra.mxu0 0.0
    %2655 = vmatprep.subr.mxu0 0.0
    %2656 = vmatpush1.msra.mxu0 0.0
    %2657 = vmatprep.subr.mxu0 0.0
    %2658 = vmatpush1.msra.mxu0 0.0
    %2659 = vmatprep.subr.mxu0 0.0
    %2660 = vmatpush1.msra.mxu0 0.0
    %2661 = vmatprep.subr.mxu0 0.0
    %2662 = vmatpush1.msra.mxu0 0.0
    %2663 = vmatprep.subr.mxu0 0.0
    %2664 = vmatpush1.msra.mxu0 0.0
    %2665 = vmatprep.mubr.f32.mxu0 0.0
    %v2666 = vand.u32 %v564, 4294901760
    %v2667 = vsub.f32 %v564, %v2666
    %2668 = vmatmul.mubr.f32.gmra.mrb[0].mxu0 %v2667
    %v2669 = vpop.f32.mrb[0].mxu0
    %v2670 = vadd.f32 %v2596, %v2669
    %v2671 = vpop.f32.mrb[0].mxu0
    %2672 = vdwg.mxu0
    %2673 = vmatprep.subr.mxu0 0.0
    %v2674 = vand.u32 %v2446, 4294901760
    %2675 = vmatpush1.msra.mxu0 %v2674
    %2676 = vmatprep.subr.mxu0 0.0
    %2677 = vmatpush1.msra.mxu0 0.0
    %2678 = vmatprep.subr.mxu0 0.0
    %2679 = vmatpush1.msra.mxu0 0.0
    %2680 = vmatprep.subr.mxu0 0.0
    %2681 = vmatpush1.msra.mxu0 0.0
    %2682 = vmatprep.subr.mxu0 0.0
    %2683 = vmatpush1.msra.mxu0 0.0
    %2684 = vmatprep.subr.mxu0 0.0
    %2685 = vmatpush1.msra.mxu0 0.0
    %2686 = vmatprep.subr.mxu0 0.0
    %2687 = vmatpush1.msra.mxu0 0.0
    %2688 = vmatprep.subr.mxu0 0.0
    %2689 = vmatpush1.msra.mxu0 0.0
    %2690 = vmatprep.subr.mxu0 0.0
    %2691 = vmatpush1.msra.mxu0 0.0
    %2692 = vmatprep.subr.mxu0 0.0
    %2693 = vmatpush1.msra.mxu0 0.0
    %2694 = vmatprep.subr.mxu0 0.0
    %2695 = vmatpush1.msra.mxu0 0.0
    %2696 = vmatprep.subr.mxu0 0.0
    %2697 = vmatpush1.msra.mxu0 0.0
    %2698 = vmatprep.subr.mxu0 0.0
    %2699 = vmatpush1.msra.mxu0 0.0
    %2700 = vmatprep.subr.mxu0 0.0
    %2701 = vmatpush1.msra.mxu0 0.0
    %2702 = vmatprep.subr.mxu0 0.0
    %2703 = vmatpush1.msra.mxu0 0.0
    %2704 = vmatprep.subr.mxu0 0.0
    %2705 = vmatpush1.msra.mxu0 0.0
    %2706 = vmatprep.subr.mxu0 0.0
    %2707 = vmatpush1.msra.mxu0 0.0
    %2708 = vmatprep.subr.mxu0 0.0
    %2709 = vmatpush1.msra.mxu0 0.0
    %2710 = vmatprep.subr.mxu0 0.0
    %2711 = vmatpush1.msra.mxu0 0.0
    %2712 = vmatprep.subr.mxu0 0.0
    %2713 = vmatpush1.msra.mxu0 0.0
    %2714 = vmatprep.subr.mxu0 0.0
    %2715 = vmatpush1.msra.mxu0 0.0
    %2716 = vmatprep.subr.mxu0 0.0
    %2717 = vmatpush1.msra.mxu0 0.0
    %2718 = vmatprep.subr.mxu0 0.0
    %2719 = vmatpush1.msra.mxu0 0.0
    %2720 = vmatprep.subr.mxu0 0.0
    %2721 = vmatpush1.msra.mxu0 0.0
    %2722 = vmatprep.subr.mxu0 0.0
    %2723 = vmatpush1.msra.mxu0 0.0
    %2724 = vmatprep.subr.mxu0 0.0
    %2725 = vmatpush1.msra.mxu0 0.0
    %2726 = vmatprep.subr.mxu0 0.0
    %2727 = vmatpush1.msra.mxu0 0.0
    %2728 = vmatprep.subr.mxu0 0.0
    %2729 = vmatpush1.msra.mxu0 0.0
    %2730 = vmatprep.subr.mxu0 0.0
    %2731 = vmatpush1.msra.mxu0 0.0
    %2732 = vmatprep.subr.mxu0 0.0
    %2733 = vmatpush1.msra.mxu0 0.0
    %2734 = vmatprep.subr.mxu0 0.0
    %2735 = vmatpush1.msra.mxu0 0.0
    %2736 = vmatprep.subr.mxu0 0.0
    %2737 = vmatpush1.msra.mxu0 0.0
    %2738 = vmatprep.mubr.f32.mxu0 0.0
    %v2739 = vand.u32 %v564, 4294901760
    %v2740 = vsub.f32 %v564, %v2739
    %v2741 = vand.u32 %v2740, 4294901760
    %2742 = vmatmul.mubr.f32.gmra.mrb[0].mxu0 %v2741
    %v2743 = vpop.f32.mrb[0].mxu0
    %v2744 = vadd.f32 %v2670, %v2743
    %v2745 = vpop.f32.mrb[0].mxu0
    %2746 = vdwg.mxu0
    %2747 = vmatprep.subr.mxu0 0.0
    %v2748 = vand.u32 %v2446, 4294901760
    %v2749 = vsub.f32 %v2446, %v2748
    %v2750 = vand.u32 %v2749, 4294901760
    %2751 = vmatpush1.msra.mxu0 %v2750
    %2752 = vmatprep.subr.mxu0 0.0
    %2753 = vmatpush1.msra.mxu0 0.0
    %2754 = vmatprep.subr.mxu0 0.0
    %2755 = vmatpush1.msra.mxu0 0.0
    %2756 = vmatprep.subr.mxu0 0.0
    %2757 = vmatpush1.msra.mxu0 0.0
    %2758 = vmatprep.subr.mxu0 0.0
    %2759 = vmatpush1.msra.mxu0 0.0
    %2760 = vmatprep.subr.mxu0 0.0
    %2761 = vmatpush1.msra.mxu0 0.0
    %2762 = vmatprep.subr.mxu0 0.0
    %2763 = vmatpush1.msra.mxu0 0.0
    %2764 = vmatprep.subr.mxu0 0.0
    %2765 = vmatpush1.msra.mxu0 0.0
    %2766 = vmatprep.subr.mxu0 0.0
    %2767 = vmatpush1.msra.mxu0 0.0
    %2768 = vmatprep.subr.mxu0 0.0
    %2769 = vmatpush1.msra.mxu0 0.0
    %2770 = vmatprep.subr.mxu0 0.0
    %2771 = vmatpush1.msra.mxu0 0.0
    %2772 = vmatprep.subr.mxu0 0.0
    %2773 = vmatpush1.msra.mxu0 0.0
    %2774 = vmatprep.subr.mxu0 0.0
    %2775 = vmatpush1.msra.mxu0 0.0
    %2776 = vmatprep.subr.mxu0 0.0
    %2777 = vmatpush1.msra.mxu0 0.0
    %2778 = vmatprep.subr.mxu0 0.0
    %2779 = vmatpush1.msra.mxu0 0.0
    %2780 = vmatprep.subr.mxu0 0.0
    %2781 = vmatpush1.msra.mxu0 0.0
    %2782 = vmatprep.subr.mxu0 0.0
    %2783 = vmatpush1.msra.mxu0 0.0
    %2784 = vmatprep.subr.mxu0 0.0
    %2785 = vmatpush1.msra.mxu0 0.0
    %2786 = vmatprep.subr.mxu0 0.0
    %2787 = vmatpush1.msra.mxu0 0.0
    %2788 = vmatprep.subr.mxu0 0.0
    %2789 = vmatpush1.msra.mxu0 0.0
    %2790 = vmatprep.subr.mxu0 0.0
    %2791 = vmatpush1.msra.mxu0 0.0
    %2792 = vmatprep.subr.mxu0 0.0
    %2793 = vmatpush1.msra.mxu0 0.0
    %2794 = vmatprep.subr.mxu0 0.0
    %2795 = vmatpush1.msra.mxu0 0.0
    %2796 = vmatprep.subr.mxu0 0.0
    %2797 = vmatpush1.msra.mxu0 0.0
    %2798 = vmatprep.subr.mxu0 0.0
    %2799 = vmatpush1.msra.mxu0 0.0
    %2800 = vmatprep.subr.mxu0 0.0
    %2801 = vmatpush1.msra.mxu0 0.0
    %2802 = vmatprep.subr.mxu0 0.0
    %2803 = vmatpush1.msra.mxu0 0.0
    %2804 = vmatprep.subr.mxu0 0.0
    %2805 = vmatpush1.msra.mxu0 0.0
    %2806 = vmatprep.subr.mxu0 0.0
    %2807 = vmatpush1.msra.mxu0 0.0
    %2808 = vmatprep.subr.mxu0 0.0
    %2809 = vmatpush1.msra.mxu0 0.0
    %2810 = vmatprep.subr.mxu0 0.0
    %2811 = vmatpush1.msra.mxu0 0.0
    %2812 = vmatprep.subr.mxu0 0.0
    %2813 = vmatpush1.msra.mxu0 0.0
    %2814 = vmatprep.mubr.f32.mxu0 0.0
    %v2815 = vand.u32 %v564, 4294901760
    %2816 = vmatmul.mubr.f32.gmra.mrb[0].mxu0 %v2815
    %v2817 = vpop.f32.mrb[0].mxu0
    %v2818 = vadd.f32 %v2744, %v2817
    %v2819 = vpop.f32.mrb[0].mxu0
    %2820 = vdwg.mxu0
    %2821 = vmatprep.subr.mxu0 0.0
    %v2822 = vand.u32 %v2446, 4294901760
    %2823 = vmatpush1.msra.mxu0 %v2822
    %2824 = vmatprep.subr.mxu0 0.0
    %2825 = vmatpush1.msra.mxu0 0.0
    %2826 = vmatprep.subr.mxu0 0.0
    %2827 = vmatpush1.msra.mxu0 0.0
    %2828 = vmatprep.subr.mxu0 0.0
    %2829 = vmatpush1.msra.mxu0 0.0
    %2830 = vmatprep.subr.mxu0 0.0
    %2831 = vmatpush1.msra.mxu0 0.0
    %2832 = vmatprep.subr.mxu0 0.0
    %2833 = vmatpush1.msra.mxu0 0.0
    %2834 = vmatprep.subr.mxu0 0.0
    %2835 = vmatpush1.msra.mxu0 0.0
    %2836 = vmatprep.subr.mxu0 0.0
    %2837 = vmatpush1.msra.mxu0 0.0
    %2838 = vmatprep.subr.mxu0 0.0
    %2839 = vmatpush1.msra.mxu0 0.0
    %2840 = vmatprep.subr.mxu0 0.0
    %2841 = vmatpush1.msra.mxu0 0.0
    %2842 = vmatprep.subr.mxu0 0.0
    %2843 = vmatpush1.msra.mxu0 0.0
    %2844 = vmatprep.subr.mxu0 0.0
    %2845 = vmatpush1.msra.mxu0 0.0
    %2846 = vmatprep.subr.mxu0 0.0
    %2847 = vmatpush1.msra.mxu0 0.0
    %2848 = vmatprep.subr.mxu0 0.0
    %2849 = vmatpush1.msra.mxu0 0.0
    %2850 = vmatprep.subr.mxu0 0.0
    %2851 = vmatpush1.msra.mxu0 0.0
    %2852 = vmatprep.subr.mxu0 0.0
    %2853 = vmatpush1.msra.mxu0 0.0
    %2854 = vmatprep.subr.mxu0 0.0
    %2855 = vmatpush1.msra.mxu0 0.0
    %2856 = vmatprep.subr.mxu0 0.0
    %2857 = vmatpush1.msra.mxu0 0.0
    %2858 = vmatprep.subr.mxu0 0.0
    %2859 = vmatpush1.msra.mxu0 0.0
    %2860 = vmatprep.subr.mxu0 0.0
    %2861 = vmatpush1.msra.mxu0 0.0
    %2862 = vmatprep.subr.mxu0 0.0
    %2863 = vmatpush1.msra.mxu0 0.0
    %2864 = vmatprep.subr.mxu0 0.0
    %2865 = vmatpush1.msra.mxu0 0.0
    %2866 = vmatprep.subr.mxu0 0.0
    %2867 = vmatpush1.msra.mxu0 0.0
    %2868 = vmatprep.subr.mxu0 0.0
    %2869 = vmatpush1.msra.mxu0 0.0
    %2870 = vmatprep.subr.mxu0 0.0
    %2871 = vmatpush1.msra.mxu0 0.0
    %2872 = vmatprep.subr.mxu0 0.0
    %2873 = vmatpush1.msra.mxu0 0.0
    %2874 = vmatprep.subr.mxu0 0.0
    %2875 = vmatpush1.msra.mxu0 0.0
    %2876 = vmatprep.subr.mxu0 0.0
    %2877 = vmatpush1.msra.mxu0 0.0
    %2878 = vmatprep.subr.mxu0 0.0
    %2879 = vmatpush1.msra.mxu0 0.0
    %2880 = vmatprep.subr.mxu0 0.0
    %2881 = vmatpush1.msra.mxu0 0.0
    %2882 = vmatprep.subr.mxu0 0.0
    %2883 = vmatpush1.msra.mxu0 0.0
    %2884 = vmatprep.subr.mxu0 0.0
    %2885 = vmatpush1.msra.mxu0 0.0
    %2886 = vmatprep.mubr.f32.mxu0 0.0
    %v2887 = vand.u32 %v564, 4294901760
    %2888 = vmatmul.mubr.f32.gmra.mrb[0].mxu0 %v2887
    %v2889 = vpop.f32.mrb[0].mxu0
    %v2890 = vadd.f32 %v2818, %v2889
    %v2891 = vpop.f32.mrb[0].mxu0
    %2892 = vdwg.mxu0
    %v2893 = vmax.f32 %v2890, 0.0
    %2894 = vrot.lane.b32.xlu0 %v2893, 1
    %v2895 = vpop.permute.xlu0 %2894
    %v2896 = vsel %vm1020, %v2895, 0.0
    %2897 = vrot.lane.b32.xlu0 %v2893, 127
    %v2898 = vpop.permute.xlu0 %2897
    %v2899 = vsel %vm1029, %v2898, 0.0
    %2900 = vmatprep.subr.mxu0 0.0
    %v2901 = vand.u32 %v2896, 4294901760
    %2902 = vmatpush1.msra.mxu0 %v2901
    %2903 = vmatprep.subr.mxu0 0.0
    %v2904 = vand.u32 %v2893, 4294901760
    %2905 = vmatpush1.msra.mxu0 %v2904
    %2906 = vmatprep.subr.mxu0 0.0
    %v2907 = vand.u32 %v2899, 4294901760
    %2908 = vmatpush1.msra.mxu0 %v2907
    %2909 = vmatprep.subr.mxu0 0.0
    %2910 = vmatpush1.msra.mxu0 0.0
    %2911 = vmatprep.subr.mxu0 0.0
    %2912 = vmatpush1.msra.mxu0 0.0
    %2913 = vmatprep.subr.mxu0 0.0
    %2914 = vmatpush1.msra.mxu0 0.0
    %2915 = vmatprep.subr.mxu0 0.0
    %2916 = vmatpush1.msra.mxu0 0.0
    %2917 = vmatprep.subr.mxu0 0.0
    %2918 = vmatpush1.msra.mxu0 0.0
    %2919 = vmatprep.subr.mxu0 0.0
    %2920 = vmatpush1.msra.mxu0 0.0
    %2921 = vmatprep.subr.mxu0 0.0
    %2922 = vmatpush1.msra.mxu0 0.0
    %2923 = vmatprep.subr.mxu0 0.0
    %2924 = vmatpush1.msra.mxu0 0.0
    %2925 = vmatprep.subr.mxu0 0.0
    %2926 = vmatpush1.msra.mxu0 0.0
    %2927 = vmatprep.subr.mxu0 0.0
    %2928 = vmatpush1.msra.mxu0 0.0
    %2929 = vmatprep.subr.mxu0 0.0
    %2930 = vmatpush1.msra.mxu0 0.0
    %2931 = vmatprep.subr.mxu0 0.0
    %2932 = vmatpush1.msra.mxu0 0.0
    %2933 = vmatprep.subr.mxu0 0.0
    %2934 = vmatpush1.msra.mxu0 0.0
    %2935 = vmatprep.subr.mxu0 0.0
    %2936 = vmatpush1.msra.mxu0 0.0
    %2937 = vmatprep.subr.mxu0 0.0
    %2938 = vmatpush1.msra.mxu0 0.0
    %2939 = vmatprep.subr.mxu0 0.0
    %2940 = vmatpush1.msra.mxu0 0.0
    %2941 = vmatprep.subr.mxu0 0.0
    %2942 = vmatpush1.msra.mxu0 0.0
    %2943 = vmatprep.subr.mxu0 0.0
    %2944 = vmatpush1.msra.mxu0 0.0
    %2945 = vmatprep.subr.mxu0 0.0
    %2946 = vmatpush1.msra.mxu0 0.0
    %2947 = vmatprep.subr.mxu0 0.0
    %2948 = vmatpush1.msra.mxu0 0.0
    %2949 = vmatprep.subr.mxu0 0.0
    %2950 = vmatpush1.msra.mxu0 0.0
    %2951 = vmatprep.subr.mxu0 0.0
    %2952 = vmatpush1.msra.mxu0 0.0
    %2953 = vmatprep.subr.mxu0 0.0
    %2954 = vmatpush1.msra.mxu0 0.0
    %2955 = vmatprep.subr.mxu0 0.0
    %2956 = vmatpush1.msra.mxu0 0.0
    %2957 = vmatprep.subr.mxu0 0.0
    %2958 = vmatpush1.msra.mxu0 0.0
    %2959 = vmatprep.subr.mxu0 0.0
    %2960 = vmatpush1.msra.mxu0 0.0
    %2961 = vmatprep.subr.mxu0 0.0
    %2962 = vmatpush1.msra.mxu0 0.0
    %2963 = vmatprep.subr.mxu0 0.0
    %2964 = vmatpush1.msra.mxu0 0.0
    %2965 = vmatprep.subr.mxu0 0.0
    %2966 = vmatpush1.msra.mxu0 0.0
    %2967 = vmatprep.mubr.f32.mxu0 0.0
    %v2968 = vand.u32 %v1039, 4294901760
    %v2969 = vsub.f32 %v1039, %v2968
    %v2970 = vand.u32 %v2969, 4294901760
    %v2971 = vsub.f32 %v2969, %v2970
    %v2972 = vand.u32 %v2971, 4294901760
    %2973 = vmatmul.mubr.f32.gmra.mrb[0].mxu0 %v2972
    %v2974 = vpop.f32.mrb[0].mxu0
    %v2975 = vadd.f32 %v1034, %v2974
    %v2976 = vpop.f32.mrb[0].mxu0
    %2977 = vdwg.mxu0
    %2978 = vmatprep.subr.mxu0 0.0
    %v2979 = vand.u32 %v2896, 4294901760
    %v2980 = vsub.f32 %v2896, %v2979
    %v2981 = vand.u32 %v2980, 4294901760
    %v2982 = vsub.f32 %v2980, %v2981
    %v2983 = vand.u32 %v2982, 4294901760
    %2984 = vmatpush1.msra.mxu0 %v2983
    %2985 = vmatprep.subr.mxu0 0.0
    %v2986 = vand.u32 %v2893, 4294901760
    %v2987 = vsub.f32 %v2893, %v2986
    %v2988 = vand.u32 %v2987, 4294901760
    %v2989 = vsub.f32 %v2987, %v2988
    %v2990 = vand.u32 %v2989, 4294901760
    %2991 = vmatpush1.msra.mxu0 %v2990
    %2992 = vmatprep.subr.mxu0 0.0
    %v2993 = vand.u32 %v2899, 4294901760
    %v2994 = vsub.f32 %v2899, %v2993
    %v2995 = vand.u32 %v2994, 4294901760
    %v2996 = vsub.f32 %v2994, %v2995
    %v2997 = vand.u32 %v2996, 4294901760
    %2998 = vmatpush1.msra.mxu0 %v2997
    %2999 = vmatprep.subr.mxu0 0.0
    %3000 = vmatpush1.msra.mxu0 0.0
    %3001 = vmatprep.subr.mxu0 0.0
    %3002 = vmatpush1.msra.mxu0 0.0
    %3003 = vmatprep.subr.mxu0 0.0
    %3004 = vmatpush1.msra.mxu0 0.0
    %3005 = vmatprep.subr.mxu0 0.0
    %3006 = vmatpush1.msra.mxu0 0.0
    %3007 = vmatprep.subr.mxu0 0.0
    %3008 = vmatpush1.msra.mxu0 0.0
    %3009 = vmatprep.subr.mxu0 0.0
    %3010 = vmatpush1.msra.mxu0 0.0
    %3011 = vmatprep.subr.mxu0 0.0
    %3012 = vmatpush1.msra.mxu0 0.0
    %3013 = vmatprep.subr.mxu0 0.0
    %3014 = vmatpush1.msra.mxu0 0.0
    %3015 = vmatprep.subr.mxu0 0.0
    %3016 = vmatpush1.msra.mxu0 0.0
    %3017 = vmatprep.subr.mxu0 0.0
    %3018 = vmatpush1.msra.mxu0 0.0
    %3019 = vmatprep.subr.mxu0 0.0
    %3020 = vmatpush1.msra.mxu0 0.0
    %3021 = vmatprep.subr.mxu0 0.0
    %3022 = vmatpush1.msra.mxu0 0.0
    %3023 = vmatprep.subr.mxu0 0.0
    %3024 = vmatpush1.msra.mxu0 0.0
    %3025 = vmatprep.subr.mxu0 0.0
    %3026 = vmatpush1.msra.mxu0 0.0
    %3027 = vmatprep.subr.mxu0 0.0
    %3028 = vmatpush1.msra.mxu0 0.0
    %3029 = vmatprep.subr.mxu0 0.0
    %3030 = vmatpush1.msra.mxu0 0.0
    %3031 = vmatprep.subr.mxu0 0.0
    %3032 = vmatpush1.msra.mxu0 0.0
    %3033 = vmatprep.subr.mxu0 0.0
    %3034 = vmatpush1.msra.mxu0 0.0
    %3035 = vmatprep.subr.mxu0 0.0
    %3036 = vmatpush1.msra.mxu0 0.0
    %3037 = vmatprep.subr.mxu0 0.0
    %3038 = vmatpush1.msra.mxu0 0.0
    %3039 = vmatprep.subr.mxu0 0.0
    %3040 = vmatpush1.msra.mxu0 0.0
    %3041 = vmatprep.subr.mxu0 0.0
    %3042 = vmatpush1.msra.mxu0 0.0
    %3043 = vmatprep.subr.mxu0 0.0
    %3044 = vmatpush1.msra.mxu0 0.0
    %3045 = vmatprep.subr.mxu0 0.0
    %3046 = vmatpush1.msra.mxu0 0.0
    %3047 = vmatprep.subr.mxu0 0.0
    %3048 = vmatpush1.msra.mxu0 0.0
    %3049 = vmatprep.subr.mxu0 0.0
    %3050 = vmatpush1.msra.mxu0 0.0
    %3051 = vmatprep.subr.mxu0 0.0
    %3052 = vmatpush1.msra.mxu0 0.0
    %3053 = vmatprep.subr.mxu0 0.0
    %3054 = vmatpush1.msra.mxu0 0.0
    %3055 = vmatprep.subr.mxu0 0.0
    %3056 = vmatpush1.msra.mxu0 0.0
    %3057 = vmatprep.mubr.f32.mxu0 0.0
    %v3058 = vand.u32 %v1039, 4294901760
    %3059 = vmatmul.mubr.f32.gmra.mrb[0].mxu0 %v3058
    %v3060 = vpop.f32.mrb[0].mxu0
    %v3061 = vadd.f32 %v2975, %v3060
    %v3062 = vpop.f32.mrb[0].mxu0
    %3063 = vdwg.mxu0
    %3064 = vmatprep.subr.mxu0 0.0
    %v3065 = vand.u32 %v2896, 4294901760
    %v3066 = vsub.f32 %v2896, %v3065
    %3067 = vmatpush1.msra.mxu0 %v3066
    %3068 = vmatprep.subr.mxu0 0.0
    %v3069 = vand.u32 %v2893, 4294901760
    %v3070 = vsub.f32 %v2893, %v3069
    %3071 = vmatpush1.msra.mxu0 %v3070
    %3072 = vmatprep.subr.mxu0 0.0
    %v3073 = vand.u32 %v2899, 4294901760
    %v3074 = vsub.f32 %v2899, %v3073
    %3075 = vmatpush1.msra.mxu0 %v3074
    %3076 = vmatprep.subr.mxu0 0.0
    %3077 = vmatpush1.msra.mxu0 0.0
    %3078 = vmatprep.subr.mxu0 0.0
    %3079 = vmatpush1.msra.mxu0 0.0
    %3080 = vmatprep.subr.mxu0 0.0
    %3081 = vmatpush1.msra.mxu0 0.0
    %3082 = vmatprep.subr.mxu0 0.0
    %3083 = vmatpush1.msra.mxu0 0.0
    %3084 = vmatprep.subr.mxu0 0.0
    %3085 = vmatpush1.msra.mxu0 0.0
    %3086 = vmatprep.subr.mxu0 0.0
    %3087 = vmatpush1.msra.mxu0 0.0
    %3088 = vmatprep.subr.mxu0 0.0
    %3089 = vmatpush1.msra.mxu0 0.0
    %3090 = vmatprep.subr.mxu0 0.0
    %3091 = vmatpush1.msra.mxu0 0.0
    %3092 = vmatprep.subr.mxu0 0.0
    %3093 = vmatpush1.msra.mxu0 0.0
    %3094 = vmatprep.subr.mxu0 0.0
    %3095 = vmatpush1.msra.mxu0 0.0
    %3096 = vmatprep.subr.mxu0 0.0
    %3097 = vmatpush1.msra.mxu0 0.0
    %3098 = vmatprep.subr.mxu0 0.0
    %3099 = vmatpush1.msra.mxu0 0.0
    %3100 = vmatprep.subr.mxu0 0.0
    %3101 = vmatpush1.msra.mxu0 0.0
    %3102 = vmatprep.subr.mxu0 0.0
    %3103 = vmatpush1.msra.mxu0 0.0
    %3104 = vmatprep.subr.mxu0 0.0
    %3105 = vmatpush1.msra.mxu0 0.0
    %3106 = vmatprep.subr.mxu0 0.0
    %3107 = vmatpush1.msra.mxu0 0.0
    %3108 = vmatprep.subr.mxu0 0.0
    %3109 = vmatpush1.msra.mxu0 0.0
    %3110 = vmatprep.subr.mxu0 0.0
    %3111 = vmatpush1.msra.mxu0 0.0
    %3112 = vmatprep.subr.mxu0 0.0
    %3113 = vmatpush1.msra.mxu0 0.0
    %3114 = vmatprep.subr.mxu0 0.0
    %3115 = vmatpush1.msra.mxu0 0.0
    %3116 = vmatprep.subr.mxu0 0.0
    %3117 = vmatpush1.msra.mxu0 0.0
    %3118 = vmatprep.subr.mxu0 0.0
    %3119 = vmatpush1.msra.mxu0 0.0
    %3120 = vmatprep.subr.mxu0 0.0
    %3121 = vmatpush1.msra.mxu0 0.0
    %3122 = vmatprep.subr.mxu0 0.0
    %3123 = vmatpush1.msra.mxu0 0.0
    %3124 = vmatprep.subr.mxu0 0.0
    %3125 = vmatpush1.msra.mxu0 0.0
    %3126 = vmatprep.subr.mxu0 0.0
    %3127 = vmatpush1.msra.mxu0 0.0
    %3128 = vmatprep.subr.mxu0 0.0
    %3129 = vmatpush1.msra.mxu0 0.0
    %3130 = vmatprep.subr.mxu0 0.0
    %3131 = vmatpush1.msra.mxu0 0.0
    %3132 = vmatprep.subr.mxu0 0.0
    %3133 = vmatpush1.msra.mxu0 0.0
    %3134 = vmatprep.mubr.f32.mxu0 0.0
    %v3135 = vand.u32 %v1039, 4294901760
    %v3136 = vsub.f32 %v1039, %v3135
    %3137 = vmatmul.mubr.f32.gmra.mrb[0].mxu0 %v3136
    %v3138 = vpop.f32.mrb[0].mxu0
    %v3139 = vadd.f32 %v3061, %v3138
    %v3140 = vpop.f32.mrb[0].mxu0
    %3141 = vdwg.mxu0
    %3142 = vmatprep.subr.mxu0 0.0
    %v3143 = vand.u32 %v2896, 4294901760
    %3144 = vmatpush1.msra.mxu0 %v3143
    %3145 = vmatprep.subr.mxu0 0.0
    %v3146 = vand.u32 %v2893, 4294901760
    %3147 = vmatpush1.msra.mxu0 %v3146
    %3148 = vmatprep.subr.mxu0 0.0
    %v3149 = vand.u32 %v2899, 4294901760
    %3150 = vmatpush1.msra.mxu0 %v3149
    %3151 = vmatprep.subr.mxu0 0.0
    %3152 = vmatpush1.msra.mxu0 0.0
    %3153 = vmatprep.subr.mxu0 0.0
    %3154 = vmatpush1.msra.mxu0 0.0
    %3155 = vmatprep.subr.mxu0 0.0
    %3156 = vmatpush1.msra.mxu0 0.0
    %3157 = vmatprep.subr.mxu0 0.0
    %3158 = vmatpush1.msra.mxu0 0.0
    %3159 = vmatprep.subr.mxu0 0.0
    %3160 = vmatpush1.msra.mxu0 0.0
    %3161 = vmatprep.subr.mxu0 0.0
    %3162 = vmatpush1.msra.mxu0 0.0
    %3163 = vmatprep.subr.mxu0 0.0
    %3164 = vmatpush1.msra.mxu0 0.0
    %3165 = vmatprep.subr.mxu0 0.0
    %3166 = vmatpush1.msra.mxu0 0.0
    %3167 = vmatprep.subr.mxu0 0.0
    %3168 = vmatpush1.msra.mxu0 0.0
    %3169 = vmatprep.subr.mxu0 0.0
    %3170 = vmatpush1.msra.mxu0 0.0
    %3171 = vmatprep.subr.mxu0 0.0
    %3172 = vmatpush1.msra.mxu0 0.0
    %3173 = vmatprep.subr.mxu0 0.0
    %3174 = vmatpush1.msra.mxu0 0.0
    %3175 = vmatprep.subr.mxu0 0.0
    %3176 = vmatpush1.msra.mxu0 0.0
    %3177 = vmatprep.subr.mxu0 0.0
    %3178 = vmatpush1.msra.mxu0 0.0
    %3179 = vmatprep.subr.mxu0 0.0
    %3180 = vmatpush1.msra.mxu0 0.0
    %3181 = vmatprep.subr.mxu0 0.0
    %3182 = vmatpush1.msra.mxu0 0.0
    %3183 = vmatprep.subr.mxu0 0.0
    %3184 = vmatpush1.msra.mxu0 0.0
    %3185 = vmatprep.subr.mxu0 0.0
    %3186 = vmatpush1.msra.mxu0 0.0
    %3187 = vmatprep.subr.mxu0 0.0
    %3188 = vmatpush1.msra.mxu0 0.0
    %3189 = vmatprep.subr.mxu0 0.0
    %3190 = vmatpush1.msra.mxu0 0.0
    %3191 = vmatprep.subr.mxu0 0.0
    %3192 = vmatpush1.msra.mxu0 0.0
    %3193 = vmatprep.subr.mxu0 0.0
    %3194 = vmatpush1.msra.mxu0 0.0
    %3195 = vmatprep.subr.mxu0 0.0
    %3196 = vmatpush1.msra.mxu0 0.0
    %3197 = vmatprep.subr.mxu0 0.0
    %3198 = vmatpush1.msra.mxu0 0.0
    %3199 = vmatprep.subr.mxu0 0.0
    %3200 = vmatpush1.msra.mxu0 0.0
    %3201 = vmatprep.subr.mxu0 0.0
    %3202 = vmatpush1.msra.mxu0 0.0
    %3203 = vmatprep.subr.mxu0 0.0
    %3204 = vmatpush1.msra.mxu0 0.0
    %3205 = vmatprep.subr.mxu0 0.0
    %3206 = vmatpush1.msra.mxu0 0.0
    %3207 = vmatprep.subr.mxu0 0.0
    %3208 = vmatpush1.msra.mxu0 0.0
    %3209 = vmatprep.mubr.f32.mxu0 0.0
    %v3210 = vand.u32 %v1039, 4294901760
    %v3211 = vsub.f32 %v1039, %v3210
    %v3212 = vand.u32 %v3211, 4294901760
    %3213 = vmatmul.mubr.f32.gmra.mrb[0].mxu0 %v3212
    %v3214 = vpop.f32.mrb[0].mxu0
    %v3215 = vadd.f32 %v3139, %v3214
    %v3216 = vpop.f32.mrb[0].mxu0
    %3217 = vdwg.mxu0
    %3218 = vmatprep.subr.mxu0 0.0
    %v3219 = vand.u32 %v2896, 4294901760
    %v3220 = vsub.f32 %v2896, %v3219
    %v3221 = vand.u32 %v3220, 4294901760
    %3222 = vmatpush1.msra.mxu0 %v3221
    %3223 = vmatprep.subr.mxu0 0.0
    %v3224 = vand.u32 %v2893, 4294901760
    %v3225 = vsub.f32 %v2893, %v3224
    %v3226 = vand.u32 %v3225, 4294901760
    %3227 = vmatpush1.msra.mxu0 %v3226
    %3228 = vmatprep.subr.mxu0 0.0
    %v3229 = vand.u32 %v2899, 4294901760
    %v3230 = vsub.f32 %v2899, %v3229
    %v3231 = vand.u32 %v3230, 4294901760
    %3232 = vmatpush1.msra.mxu0 %v3231
    %3233 = vmatprep.subr.mxu0 0.0
    %3234 = vmatpush1.msra.mxu0 0.0
    %3235 = vmatprep.subr.mxu0 0.0
    %3236 = vmatpush1.msra.mxu0 0.0
    %3237 = vmatprep.subr.mxu0 0.0
    %3238 = vmatpush1.msra.mxu0 0.0
    %3239 = vmatprep.subr.mxu0 0.0
    %3240 = vmatpush1.msra.mxu0 0.0
    %3241 = vmatprep.subr.mxu0 0.0
    %3242 = vmatpush1.msra.mxu0 0.0
    %3243 = vmatprep.subr.mxu0 0.0
    %3244 = vmatpush1.msra.mxu0 0.0
    %3245 = vmatprep.subr.mxu0 0.0
    %3246 = vmatpush1.msra.mxu0 0.0
    %3247 = vmatprep.subr.mxu0 0.0
    %3248 = vmatpush1.msra.mxu0 0.0
    %3249 = vmatprep.subr.mxu0 0.0
    %3250 = vmatpush1.msra.mxu0 0.0
    %3251 = vmatprep.subr.mxu0 0.0
    %3252 = vmatpush1.msra.mxu0 0.0
    %3253 = vmatprep.subr.mxu0 0.0
    %3254 = vmatpush1.msra.mxu0 0.0
    %3255 = vmatprep.subr.mxu0 0.0
    %3256 = vmatpush1.msra.mxu0 0.0
    %3257 = vmatprep.subr.mxu0 0.0
    %3258 = vmatpush1.msra.mxu0 0.0
    %3259 = vmatprep.subr.mxu0 0.0
    %3260 = vmatpush1.msra.mxu0 0.0
    %3261 = vmatprep.subr.mxu0 0.0
    %3262 = vmatpush1.msra.mxu0 0.0
    %3263 = vmatprep.subr.mxu0 0.0
    %3264 = vmatpush1.msra.mxu0 0.0
    %3265 = vmatprep.subr.mxu0 0.0
    %3266 = vmatpush1.msra.mxu0 0.0
    %3267 = vmatprep.subr.mxu0 0.0
    %3268 = vmatpush1.msra.mxu0 0.0
    %3269 = vmatprep.subr.mxu0 0.0
    %3270 = vmatpush1.msra.mxu0 0.0
    %3271 = vmatprep.subr.mxu0 0.0
    %3272 = vmatpush1.msra.mxu0 0.0
    %3273 = vmatprep.subr.mxu0 0.0
    %3274 = vmatpush1.msra.mxu0 0.0
    %3275 = vmatprep.subr.mxu0 0.0
    %3276 = vmatpush1.msra.mxu0 0.0
    %3277 = vmatprep.subr.mxu0 0.0
    %3278 = vmatpush1.msra.mxu0 0.0
    %3279 = vmatprep.subr.mxu0 0.0
    %3280 = vmatpush1.msra.mxu0 0.0
    %3281 = vmatprep.subr.mxu0 0.0
    %3282 = vmatpush1.msra.mxu0 0.0
    %3283 = vmatprep.subr.mxu0 0.0
    %3284 = vmatpush1.msra.mxu0 0.0
    %3285 = vmatprep.subr.mxu0 0.0
    %3286 = vmatpush1.msra.mxu0 0.0
    %3287 = vmatprep.subr.mxu0 0.0
    %3288 = vmatpush1.msra.mxu0 0.0
    %3289 = vmatprep.subr.mxu0 0.0
    %3290 = vmatpush1.msra.mxu0 0.0
    %3291 = vmatprep.mubr.f32.mxu0 0.0
    %v3292 = vand.u32 %v1039, 4294901760
    %3293 = vmatmul.mubr.f32.gmra.mrb[0].mxu0 %v3292
    %v3294 = vpop.f32.mrb[0].mxu0
    %v3295 = vadd.f32 %v3215, %v3294
    %v3296 = vpop.f32.mrb[0].mxu0
    %3297 = vdwg.mxu0
    %3298 = vmatprep.subr.mxu0 0.0
    %v3299 = vand.u32 %v2896, 4294901760
    %3300 = vmatpush1.msra.mxu0 %v3299
    %3301 = vmatprep.subr.mxu0 0.0
    %v3302 = vand.u32 %v2893, 4294901760
    %3303 = vmatpush1.msra.mxu0 %v3302
    %3304 = vmatprep.subr.mxu0 0.0
    %v3305 = vand.u32 %v2899, 4294901760
    %3306 = vmatpush1.msra.mxu0 %v3305
    %3307 = vmatprep.subr.mxu0 0.0
    %3308 = vmatpush1.msra.mxu0 0.0
    %3309 = vmatprep.subr.mxu0 0.0
    %3310 = vmatpush1.msra.mxu0 0.0
    %3311 = vmatprep.subr.mxu0 0.0
    %3312 = vmatpush1.msra.mxu0 0.0
    %3313 = vmatprep.subr.mxu0 0.0
    %3314 = vmatpush1.msra.mxu0 0.0
    %3315 = vmatprep.subr.mxu0 0.0
    %3316 = vmatpush1.msra.mxu0 0.0
    %3317 = vmatprep.subr.mxu0 0.0
    %3318 = vmatpush1.msra.mxu0 0.0
    %3319 = vmatprep.subr.mxu0 0.0
    %3320 = vmatpush1.msra.mxu0 0.0
    %3321 = vmatprep.subr.mxu0 0.0
    %3322 = vmatpush1.msra.mxu0 0.0
    %3323 = vmatprep.subr.mxu0 0.0
    %3324 = vmatpush1.msra.mxu0 0.0
    %3325 = vmatprep.subr.mxu0 0.0
    %3326 = vmatpush1.msra.mxu0 0.0
    %3327 = vmatprep.subr.mxu0 0.0
    %3328 = vmatpush1.msra.mxu0 0.0
    %3329 = vmatprep.subr.mxu0 0.0
    %3330 = vmatpush1.msra.mxu0 0.0
    %3331 = vmatprep.subr.mxu0 0.0
    %3332 = vmatpush1.msra.mxu0 0.0
    %3333 = vmatprep.subr.mxu0 0.0
    %3334 = vmatpush1.msra.mxu0 0.0
    %3335 = vmatprep.subr.mxu0 0.0
    %3336 = vmatpush1.msra.mxu0 0.0
    %3337 = vmatprep.subr.mxu0 0.0
    %3338 = vmatpush1.msra.mxu0 0.0
    %3339 = vmatprep.subr.mxu0 0.0
    %3340 = vmatpush1.msra.mxu0 0.0
    %3341 = vmatprep.subr.mxu0 0.0
    %3342 = vmatpush1.msra.mxu0 0.0
    %3343 = vmatprep.subr.mxu0 0.0
    %3344 = vmatpush1.msra.mxu0 0.0
    %3345 = vmatprep.subr.mxu0 0.0
    %3346 = vmatpush1.msra.mxu0 0.0
    %3347 = vmatprep.subr.mxu0 0.0
    %3348 = vmatpush1.msra.mxu0 0.0
    %3349 = vmatprep.subr.mxu0 0.0
    %3350 = vmatpush1.msra.mxu0 0.0
    %3351 = vmatprep.subr.mxu0 0.0
    %3352 = vmatpush1.msra.mxu0 0.0
    %3353 = vmatprep.subr.mxu0 0.0
    %3354 = vmatpush1.msra.mxu0 0.0
    %3355 = vmatprep.subr.mxu0 0.0
    %3356 = vmatpush1.msra.mxu0 0.0
    %3357 = vmatprep.subr.mxu0 0.0
    %3358 = vmatpush1.msra.mxu0 0.0
    %3359 = vmatprep.subr.mxu0 0.0
    %3360 = vmatpush1.msra.mxu0 0.0
    %3361 = vmatprep.subr.mxu0 0.0
    %3362 = vmatpush1.msra.mxu0 0.0
    %3363 = vmatprep.subr.mxu0 0.0
    %3364 = vmatpush1.msra.mxu0 0.0
    %3365 = vmatprep.mubr.f32.mxu0 0.0
    %v3366 = vand.u32 %v1039, 4294901760
    %3367 = vmatmul.mubr.f32.gmra.mrb[0].mxu0 %v3366
    %v3368 = vpop.f32.mrb[0].mxu0
    %v3369 = vadd.f32 %v3295, %v3368
    %v3370 = vpop.f32.mrb[0].mxu0
    %3371 = vdwg.mxu0
    %3372 = vadd.xlane.f32.xlu0 %v3369
    %v3373 = vpop.xlane.xlu0 %3372
    %v3374 = vadd.f32 %v2444, %v3373
    %s3375 = scalar_lea.vmem %s0, 24
    %v3376 = vld [vmem:[%s3375] sm:$0xff]
    %3377 = vmatprep.subr.mxu0 0.0
    %v3378 = vand.u32 %v3376, 4294901760
    %3379 = vmatpush1.msra.mxu0 %v3378
    %3380 = vmatprep.subr.mxu0 0.0
    %3381 = vmatpush1.msra.mxu0 0.0
    %3382 = vmatprep.subr.mxu0 0.0
    %3383 = vmatpush1.msra.mxu0 0.0
    %3384 = vmatprep.subr.mxu0 0.0
    %3385 = vmatpush1.msra.mxu0 0.0
    %3386 = vmatprep.subr.mxu0 0.0
    %3387 = vmatpush1.msra.mxu0 0.0
    %3388 = vmatprep.subr.mxu0 0.0
    %3389 = vmatpush1.msra.mxu0 0.0
    %3390 = vmatprep.subr.mxu0 0.0
    %3391 = vmatpush1.msra.mxu0 0.0
    %3392 = vmatprep.subr.mxu0 0.0
    %3393 = vmatpush1.msra.mxu0 0.0
    %3394 = vmatprep.subr.mxu0 0.0
    %3395 = vmatpush1.msra.mxu0 0.0
    %3396 = vmatprep.subr.mxu0 0.0
    %3397 = vmatpush1.msra.mxu0 0.0
    %3398 = vmatprep.subr.mxu0 0.0
    %3399 = vmatpush1.msra.mxu0 0.0
    %3400 = vmatprep.subr.mxu0 0.0
    %3401 = vmatpush1.msra.mxu0 0.0
    %3402 = vmatprep.subr.mxu0 0.0
    %3403 = vmatpush1.msra.mxu0 0.0
    %3404 = vmatprep.subr.mxu0 0.0
    %3405 = vmatpush1.msra.mxu0 0.0
    %3406 = vmatprep.subr.mxu0 0.0
    %3407 = vmatpush1.msra.mxu0 0.0
    %3408 = vmatprep.subr.mxu0 0.0
    %3409 = vmatpush1.msra.mxu0 0.0
    %3410 = vmatprep.subr.mxu0 0.0
    %3411 = vmatpush1.msra.mxu0 0.0
    %3412 = vmatprep.subr.mxu0 0.0
    %3413 = vmatpush1.msra.mxu0 0.0
    %3414 = vmatprep.subr.mxu0 0.0
    %3415 = vmatpush1.msra.mxu0 0.0
    %3416 = vmatprep.subr.mxu0 0.0
    %3417 = vmatpush1.msra.mxu0 0.0
    %3418 = vmatprep.subr.mxu0 0.0
    %3419 = vmatpush1.msra.mxu0 0.0
    %3420 = vmatprep.subr.mxu0 0.0
    %3421 = vmatpush1.msra.mxu0 0.0
    %3422 = vmatprep.subr.mxu0 0.0
    %3423 = vmatpush1.msra.mxu0 0.0
    %3424 = vmatprep.subr.mxu0 0.0
    %3425 = vmatpush1.msra.mxu0 0.0
    %3426 = vmatprep.subr.mxu0 0.0
    %3427 = vmatpush1.msra.mxu0 0.0
    %3428 = vmatprep.subr.mxu0 0.0
    %3429 = vmatpush1.msra.mxu0 0.0
    %3430 = vmatprep.subr.mxu0 0.0
    %3431 = vmatpush1.msra.mxu0 0.0
    %3432 = vmatprep.subr.mxu0 0.0
    %3433 = vmatpush1.msra.mxu0 0.0
    %3434 = vmatprep.subr.mxu0 0.0
    %3435 = vmatpush1.msra.mxu0 0.0
    %3436 = vmatprep.subr.mxu0 0.0
    %3437 = vmatpush1.msra.mxu0 0.0
    %3438 = vmatprep.subr.mxu0 0.0
    %3439 = vmatpush1.msra.mxu0 0.0
    %3440 = vmatprep.subr.mxu0 0.0
    %3441 = vmatpush1.msra.mxu0 0.0
    %3442 = vmatprep.mubr.f32.mxu0 0.0
    %v3443 = vand.u32 %v564, 4294901760
    %v3444 = vsub.f32 %v564, %v3443
    %v3445 = vand.u32 %v3444, 4294901760
    %v3446 = vsub.f32 %v3444, %v3445
    %v3447 = vand.u32 %v3446, 4294901760
    %3448 = vmatmul.mubr.f32.gmra.mrb[0].mxu0 %v3447
    %v3449 = vpop.f32.mrb[0].mxu0
    %v3450 = vadd.f32 %v560, %v3449
    %v3451 = vpop.f32.mrb[0].mxu0
    %3452 = vdwg.mxu0
    %3453 = vmatprep.subr.mxu0 0.0
    %v3454 = vand.u32 %v3376, 4294901760
    %v3455 = vsub.f32 %v3376, %v3454
    %v3456 = vand.u32 %v3455, 4294901760
    %v3457 = vsub.f32 %v3455, %v3456
    %v3458 = vand.u32 %v3457, 4294901760
    %3459 = vmatpush1.msra.mxu0 %v3458
    %3460 = vmatprep.subr.mxu0 0.0
    %3461 = vmatpush1.msra.mxu0 0.0
    %3462 = vmatprep.subr.mxu0 0.0
    %3463 = vmatpush1.msra.mxu0 0.0
    %3464 = vmatprep.subr.mxu0 0.0
    %3465 = vmatpush1.msra.mxu0 0.0
    %3466 = vmatprep.subr.mxu0 0.0
    %3467 = vmatpush1.msra.mxu0 0.0
    %3468 = vmatprep.subr.mxu0 0.0
    %3469 = vmatpush1.msra.mxu0 0.0
    %3470 = vmatprep.subr.mxu0 0.0
    %3471 = vmatpush1.msra.mxu0 0.0
    %3472 = vmatprep.subr.mxu0 0.0
    %3473 = vmatpush1.msra.mxu0 0.0
    %3474 = vmatprep.subr.mxu0 0.0
    %3475 = vmatpush1.msra.mxu0 0.0
    %3476 = vmatprep.subr.mxu0 0.0
    %3477 = vmatpush1.msra.mxu0 0.0
    %3478 = vmatprep.subr.mxu0 0.0
    %3479 = vmatpush1.msra.mxu0 0.0
    %3480 = vmatprep.subr.mxu0 0.0
    %3481 = vmatpush1.msra.mxu0 0.0
    %3482 = vmatprep.subr.mxu0 0.0
    %3483 = vmatpush1.msra.mxu0 0.0
    %3484 = vmatprep.subr.mxu0 0.0
    %3485 = vmatpush1.msra.mxu0 0.0
    %3486 = vmatprep.subr.mxu0 0.0
    %3487 = vmatpush1.msra.mxu0 0.0
    %3488 = vmatprep.subr.mxu0 0.0
    %3489 = vmatpush1.msra.mxu0 0.0
    %3490 = vmatprep.subr.mxu0 0.0
    %3491 = vmatpush1.msra.mxu0 0.0
    %3492 = vmatprep.subr.mxu0 0.0
    %3493 = vmatpush1.msra.mxu0 0.0
    %3494 = vmatprep.subr.mxu0 0.0
    %3495 = vmatpush1.msra.mxu0 0.0
    %3496 = vmatprep.subr.mxu0 0.0
    %3497 = vmatpush1.msra.mxu0 0.0
    %3498 = vmatprep.subr.mxu0 0.0
    %3499 = vmatpush1.msra.mxu0 0.0
    %3500 = vmatprep.subr.mxu0 0.0
    %3501 = vmatpush1.msra.mxu0 0.0
    %3502 = vmatprep.subr.mxu0 0.0
    %3503 = vmatpush1.msra.mxu0 0.0
    %3504 = vmatprep.subr.mxu0 0.0
    %3505 = vmatpush1.msra.mxu0 0.0
    %3506 = vmatprep.subr.mxu0 0.0
    %3507 = vmatpush1.msra.mxu0 0.0
    %3508 = vmatprep.subr.mxu0 0.0
    %3509 = vmatpush1.msra.mxu0 0.0
    %3510 = vmatprep.subr.mxu0 0.0
    %3511 = vmatpush1.msra.mxu0 0.0
    %3512 = vmatprep.subr.mxu0 0.0
    %3513 = vmatpush1.msra.mxu0 0.0
    %3514 = vmatprep.subr.mxu0 0.0
    %3515 = vmatpush1.msra.mxu0 0.0
    %3516 = vmatprep.subr.mxu0 0.0
    %3517 = vmatpush1.msra.mxu0 0.0
    %3518 = vmatprep.subr.mxu0 0.0
    %3519 = vmatpush1.msra.mxu0 0.0
    %3520 = vmatprep.subr.mxu0 0.0
    %3521 = vmatpush1.msra.mxu0 0.0
    %3522 = vmatprep.mubr.f32.mxu0 0.0
    %v3523 = vand.u32 %v564, 4294901760
    %3524 = vmatmul.mubr.f32.gmra.mrb[0].mxu0 %v3523
    %v3525 = vpop.f32.mrb[0].mxu0
    %v3526 = vadd.f32 %v3450, %v3525
    %v3527 = vpop.f32.mrb[0].mxu0
    %3528 = vdwg.mxu0
    %3529 = vmatprep.subr.mxu0 0.0
    %v3530 = vand.u32 %v3376, 4294901760
    %v3531 = vsub.f32 %v3376, %v3530
    %3532 = vmatpush1.msra.mxu0 %v3531
    %3533 = vmatprep.subr.mxu0 0.0
    %3534 = vmatpush1.msra.mxu0 0.0
    %3535 = vmatprep.subr.mxu0 0.0
    %3536 = vmatpush1.msra.mxu0 0.0
    %3537 = vmatprep.subr.mxu0 0.0
    %3538 = vmatpush1.msra.mxu0 0.0
    %3539 = vmatprep.subr.mxu0 0.0
    %3540 = vmatpush1.msra.mxu0 0.0
    %3541 = vmatprep.subr.mxu0 0.0
    %3542 = vmatpush1.msra.mxu0 0.0
    %3543 = vmatprep.subr.mxu0 0.0
    %3544 = vmatpush1.msra.mxu0 0.0
    %3545 = vmatprep.subr.mxu0 0.0
    %3546 = vmatpush1.msra.mxu0 0.0
    %3547 = vmatprep.subr.mxu0 0.0
    %3548 = vmatpush1.msra.mxu0 0.0
    %3549 = vmatprep.subr.mxu0 0.0
    %3550 = vmatpush1.msra.mxu0 0.0
    %3551 = vmatprep.subr.mxu0 0.0
    %3552 = vmatpush1.msra.mxu0 0.0
    %3553 = vmatprep.subr.mxu0 0.0
    %3554 = vmatpush1.msra.mxu0 0.0
    %3555 = vmatprep.subr.mxu0 0.0
    %3556 = vmatpush1.msra.mxu0 0.0
    %3557 = vmatprep.subr.mxu0 0.0
    %3558 = vmatpush1.msra.mxu0 0.0
    %3559 = vmatprep.subr.mxu0 0.0
    %3560 = vmatpush1.msra.mxu0 0.0
    %3561 = vmatprep.subr.mxu0 0.0
    %3562 = vmatpush1.msra.mxu0 0.0
    %3563 = vmatprep.subr.mxu0 0.0
    %3564 = vmatpush1.msra.mxu0 0.0
    %3565 = vmatprep.subr.mxu0 0.0
    %3566 = vmatpush1.msra.mxu0 0.0
    %3567 = vmatprep.subr.mxu0 0.0
    %3568 = vmatpush1.msra.mxu0 0.0
    %3569 = vmatprep.subr.mxu0 0.0
    %3570 = vmatpush1.msra.mxu0 0.0
    %3571 = vmatprep.subr.mxu0 0.0
    %3572 = vmatpush1.msra.mxu0 0.0
    %3573 = vmatprep.subr.mxu0 0.0
    %3574 = vmatpush1.msra.mxu0 0.0
    %3575 = vmatprep.subr.mxu0 0.0
    %3576 = vmatpush1.msra.mxu0 0.0
    %3577 = vmatprep.subr.mxu0 0.0
    %3578 = vmatpush1.msra.mxu0 0.0
    %3579 = vmatprep.subr.mxu0 0.0
    %3580 = vmatpush1.msra.mxu0 0.0
    %3581 = vmatprep.subr.mxu0 0.0
    %3582 = vmatpush1.msra.mxu0 0.0
    %3583 = vmatprep.subr.mxu0 0.0
    %3584 = vmatpush1.msra.mxu0 0.0
    %3585 = vmatprep.subr.mxu0 0.0
    %3586 = vmatpush1.msra.mxu0 0.0
    %3587 = vmatprep.subr.mxu0 0.0
    %3588 = vmatpush1.msra.mxu0 0.0
    %3589 = vmatprep.subr.mxu0 0.0
    %3590 = vmatpush1.msra.mxu0 0.0
    %3591 = vmatprep.subr.mxu0 0.0
    %3592 = vmatpush1.msra.mxu0 0.0
    %3593 = vmatprep.subr.mxu0 0.0
    %3594 = vmatpush1.msra.mxu0 0.0
    %3595 = vmatprep.mubr.f32.mxu0 0.0
    %v3596 = vand.u32 %v564, 4294901760
    %v3597 = vsub.f32 %v564, %v3596
    %3598 = vmatmul.mubr.f32.gmra.mrb[0].mxu0 %v3597
    %v3599 = vpop.f32.mrb[0].mxu0
    %v3600 = vadd.f32 %v3526, %v3599
    %v3601 = vpop.f32.mrb[0].mxu0
    %3602 = vdwg.mxu0
    %3603 = vmatprep.subr.mxu0 0.0
    %v3604 = vand.u32 %v3376, 4294901760
    %3605 = vmatpush1.msra.mxu0 %v3604
    %3606 = vmatprep.subr.mxu0 0.0
    %3607 = vmatpush1.msra.mxu0 0.0
    %3608 = vmatprep.subr.mxu0 0.0
    %3609 = vmatpush1.msra.mxu0 0.0
    %3610 = vmatprep.subr.mxu0 0.0
    %3611 = vmatpush1.msra.mxu0 0.0
    %3612 = vmatprep.subr.mxu0 0.0
    %3613 = vmatpush1.msra.mxu0 0.0
    %3614 = vmatprep.subr.mxu0 0.0
    %3615 = vmatpush1.msra.mxu0 0.0
    %3616 = vmatprep.subr.mxu0 0.0
    %3617 = vmatpush1.msra.mxu0 0.0
    %3618 = vmatprep.subr.mxu0 0.0
    %3619 = vmatpush1.msra.mxu0 0.0
    %3620 = vmatprep.subr.mxu0 0.0
    %3621 = vmatpush1.msra.mxu0 0.0
    %3622 = vmatprep.subr.mxu0 0.0
    %3623 = vmatpush1.msra.mxu0 0.0
    %3624 = vmatprep.subr.mxu0 0.0
    %3625 = vmatpush1.msra.mxu0 0.0
    %3626 = vmatprep.subr.mxu0 0.0
    %3627 = vmatpush1.msra.mxu0 0.0
    %3628 = vmatprep.subr.mxu0 0.0
    %3629 = vmatpush1.msra.mxu0 0.0
    %3630 = vmatprep.subr.mxu0 0.0
    %3631 = vmatpush1.msra.mxu0 0.0
    %3632 = vmatprep.subr.mxu0 0.0
    %3633 = vmatpush1.msra.mxu0 0.0
    %3634 = vmatprep.subr.mxu0 0.0
    %3635 = vmatpush1.msra.mxu0 0.0
    %3636 = vmatprep.subr.mxu0 0.0
    %3637 = vmatpush1.msra.mxu0 0.0
    %3638 = vmatprep.subr.mxu0 0.0
    %3639 = vmatpush1.msra.mxu0 0.0
    %3640 = vmatprep.subr.mxu0 0.0
    %3641 = vmatpush1.msra.mxu0 0.0
    %3642 = vmatprep.subr.mxu0 0.0
    %3643 = vmatpush1.msra.mxu0 0.0
    %3644 = vmatprep.subr.mxu0 0.0
    %3645 = vmatpush1.msra.mxu0 0.0
    %3646 = vmatprep.subr.mxu0 0.0
    %3647 = vmatpush1.msra.mxu0 0.0
    %3648 = vmatprep.subr.mxu0 0.0
    %3649 = vmatpush1.msra.mxu0 0.0
    %3650 = vmatprep.subr.mxu0 0.0
    %3651 = vmatpush1.msra.mxu0 0.0
    %3652 = vmatprep.subr.mxu0 0.0
    %3653 = vmatpush1.msra.mxu0 0.0
    %3654 = vmatprep.subr.mxu0 0.0
    %3655 = vmatpush1.msra.mxu0 0.0
    %3656 = vmatprep.subr.mxu0 0.0
    %3657 = vmatpush1.msra.mxu0 0.0
    %3658 = vmatprep.subr.mxu0 0.0
    %3659 = vmatpush1.msra.mxu0 0.0
    %3660 = vmatprep.subr.mxu0 0.0
    %3661 = vmatpush1.msra.mxu0 0.0
    %3662 = vmatprep.subr.mxu0 0.0
    %3663 = vmatpush1.msra.mxu0 0.0
    %3664 = vmatprep.subr.mxu0 0.0
    %3665 = vmatpush1.msra.mxu0 0.0
    %3666 = vmatprep.subr.mxu0 0.0
    %3667 = vmatpush1.msra.mxu0 0.0
    %3668 = vmatprep.mubr.f32.mxu0 0.0
    %v3669 = vand.u32 %v564, 4294901760
    %v3670 = vsub.f32 %v564, %v3669
    %v3671 = vand.u32 %v3670, 4294901760
    %3672 = vmatmul.mubr.f32.gmra.mrb[0].mxu0 %v3671
    %v3673 = vpop.f32.mrb[0].mxu0
    %v3674 = vadd.f32 %v3600, %v3673
    %v3675 = vpop.f32.mrb[0].mxu0
    %3676 = vdwg.mxu0
    %3677 = vmatprep.subr.mxu0 0.0
    %v3678 = vand.u32 %v3376, 4294901760
    %v3679 = vsub.f32 %v3376, %v3678
    %v3680 = vand.u32 %v3679, 4294901760
    %3681 = vmatpush1.msra.mxu0 %v3680
    %3682 = vmatprep.subr.mxu0 0.0
    %3683 = vmatpush1.msra.mxu0 0.0
    %3684 = vmatprep.subr.mxu0 0.0
    %3685 = vmatpush1.msra.mxu0 0.0
    %3686 = vmatprep.subr.mxu0 0.0
    %3687 = vmatpush1.msra.mxu0 0.0
    %3688 = vmatprep.subr.mxu0 0.0
    %3689 = vmatpush1.msra.mxu0 0.0
    %3690 = vmatprep.subr.mxu0 0.0
    %3691 = vmatpush1.msra.mxu0 0.0
    %3692 = vmatprep.subr.mxu0 0.0
    %3693 = vmatpush1.msra.mxu0 0.0
    %3694 = vmatprep.subr.mxu0 0.0
    %3695 = vmatpush1.msra.mxu0 0.0
    %3696 = vmatprep.subr.mxu0 0.0
    %3697 = vmatpush1.msra.mxu0 0.0
    %3698 = vmatprep.subr.mxu0 0.0
    %3699 = vmatpush1.msra.mxu0 0.0
    %3700 = vmatprep.subr.mxu0 0.0
    %3701 = vmatpush1.msra.mxu0 0.0
    %3702 = vmatprep.subr.mxu0 0.0
    %3703 = vmatpush1.msra.mxu0 0.0
    %3704 = vmatprep.subr.mxu0 0.0
    %3705 = vmatpush1.msra.mxu0 0.0
    %3706 = vmatprep.subr.mxu0 0.0
    %3707 = vmatpush1.msra.mxu0 0.0
    %3708 = vmatprep.subr.mxu0 0.0
    %3709 = vmatpush1.msra.mxu0 0.0
    %3710 = vmatprep.subr.mxu0 0.0
    %3711 = vmatpush1.msra.mxu0 0.0
    %3712 = vmatprep.subr.mxu0 0.0
    %3713 = vmatpush1.msra.mxu0 0.0
    %3714 = vmatprep.subr.mxu0 0.0
    %3715 = vmatpush1.msra.mxu0 0.0
    %3716 = vmatprep.subr.mxu0 0.0
    %3717 = vmatpush1.msra.mxu0 0.0
    %3718 = vmatprep.subr.mxu0 0.0
    %3719 = vmatpush1.msra.mxu0 0.0
    %3720 = vmatprep.subr.mxu0 0.0
    %3721 = vmatpush1.msra.mxu0 0.0
    %3722 = vmatprep.subr.mxu0 0.0
    %3723 = vmatpush1.msra.mxu0 0.0
    %3724 = vmatprep.subr.mxu0 0.0
    %3725 = vmatpush1.msra.mxu0 0.0
    %3726 = vmatprep.subr.mxu0 0.0
    %3727 = vmatpush1.msra.mxu0 0.0
    %3728 = vmatprep.subr.mxu0 0.0
    %3729 = vmatpush1.msra.mxu0 0.0
    %3730 = vmatprep.subr.mxu0 0.0
    %3731 = vmatpush1.msra.mxu0 0.0
    %3732 = vmatprep.subr.mxu0 0.0
    %3733 = vmatpush1.msra.mxu0 0.0
    %3734 = vmatprep.subr.mxu0 0.0
    %3735 = vmatpush1.msra.mxu0 0.0
    %3736 = vmatprep.subr.mxu0 0.0
    %3737 = vmatpush1.msra.mxu0 0.0
    %3738 = vmatprep.subr.mxu0 0.0
    %3739 = vmatpush1.msra.mxu0 0.0
    %3740 = vmatprep.subr.mxu0 0.0
    %3741 = vmatpush1.msra.mxu0 0.0
    %3742 = vmatprep.subr.mxu0 0.0
    %3743 = vmatpush1.msra.mxu0 0.0
    %3744 = vmatprep.mubr.f32.mxu0 0.0
    %v3745 = vand.u32 %v564, 4294901760
    %3746 = vmatmul.mubr.f32.gmra.mrb[0].mxu0 %v3745
    %v3747 = vpop.f32.mrb[0].mxu0
    %v3748 = vadd.f32 %v3674, %v3747
    %v3749 = vpop.f32.mrb[0].mxu0
    %3750 = vdwg.mxu0
    %3751 = vmatprep.subr.mxu0 0.0
    %v3752 = vand.u32 %v3376, 4294901760
    %3753 = vmatpush1.msra.mxu0 %v3752
    %3754 = vmatprep.subr.mxu0 0.0
    %3755 = vmatpush1.msra.mxu0 0.0
    %3756 = vmatprep.subr.mxu0 0.0
    %3757 = vmatpush1.msra.mxu0 0.0
    %3758 = vmatprep.subr.mxu0 0.0
    %3759 = vmatpush1.msra.mxu0 0.0
    %3760 = vmatprep.subr.mxu0 0.0
    %3761 = vmatpush1.msra.mxu0 0.0
    %3762 = vmatprep.subr.mxu0 0.0
    %3763 = vmatpush1.msra.mxu0 0.0
    %3764 = vmatprep.subr.mxu0 0.0
    %3765 = vmatpush1.msra.mxu0 0.0
    %3766 = vmatprep.subr.mxu0 0.0
    %3767 = vmatpush1.msra.mxu0 0.0
    %3768 = vmatprep.subr.mxu0 0.0
    %3769 = vmatpush1.msra.mxu0 0.0
    %3770 = vmatprep.subr.mxu0 0.0
    %3771 = vmatpush1.msra.mxu0 0.0
    %3772 = vmatprep.subr.mxu0 0.0
    %3773 = vmatpush1.msra.mxu0 0.0
    %3774 = vmatprep.subr.mxu0 0.0
    %3775 = vmatpush1.msra.mxu0 0.0
    %3776 = vmatprep.subr.mxu0 0.0
    %3777 = vmatpush1.msra.mxu0 0.0
    %3778 = vmatprep.subr.mxu0 0.0
    %3779 = vmatpush1.msra.mxu0 0.0
    %3780 = vmatprep.subr.mxu0 0.0
    %3781 = vmatpush1.msra.mxu0 0.0
    %3782 = vmatprep.subr.mxu0 0.0
    %3783 = vmatpush1.msra.mxu0 0.0
    %3784 = vmatprep.subr.mxu0 0.0
    %3785 = vmatpush1.msra.mxu0 0.0
    %3786 = vmatprep.subr.mxu0 0.0
    %3787 = vmatpush1.msra.mxu0 0.0
    %3788 = vmatprep.subr.mxu0 0.0
    %3789 = vmatpush1.msra.mxu0 0.0
    %3790 = vmatprep.subr.mxu0 0.0
    %3791 = vmatpush1.msra.mxu0 0.0
    %3792 = vmatprep.subr.mxu0 0.0
    %3793 = vmatpush1.msra.mxu0 0.0
    %3794 = vmatprep.subr.mxu0 0.0
    %3795 = vmatpush1.msra.mxu0 0.0
    %3796 = vmatprep.subr.mxu0 0.0
    %3797 = vmatpush1.msra.mxu0 0.0
    %3798 = vmatprep.subr.mxu0 0.0
    %3799 = vmatpush1.msra.mxu0 0.0
    %3800 = vmatprep.subr.mxu0 0.0
    %3801 = vmatpush1.msra.mxu0 0.0
    %3802 = vmatprep.subr.mxu0 0.0
    %3803 = vmatpush1.msra.mxu0 0.0
    %3804 = vmatprep.subr.mxu0 0.0
    %3805 = vmatpush1.msra.mxu0 0.0
    %3806 = vmatprep.subr.mxu0 0.0
    %3807 = vmatpush1.msra.mxu0 0.0
    %3808 = vmatprep.subr.mxu0 0.0
    %3809 = vmatpush1.msra.mxu0 0.0
    %3810 = vmatprep.subr.mxu0 0.0
    %3811 = vmatpush1.msra.mxu0 0.0
    %3812 = vmatprep.subr.mxu0 0.0
    %3813 = vmatpush1.msra.mxu0 0.0
    %3814 = vmatprep.subr.mxu0 0.0
    %3815 = vmatpush1.msra.mxu0 0.0
    %3816 = vmatprep.mubr.f32.mxu0 0.0
    %v3817 = vand.u32 %v564, 4294901760
    %3818 = vmatmul.mubr.f32.gmra.mrb[0].mxu0 %v3817
    %v3819 = vpop.f32.mrb[0].mxu0
    %v3820 = vadd.f32 %v3748, %v3819
    %v3821 = vpop.f32.mrb[0].mxu0
    %3822 = vdwg.mxu0
    %v3823 = vmax.f32 %v3820, 0.0
    %3824 = vrot.lane.b32.xlu0 %v3823, 1
    %v3825 = vpop.permute.xlu0 %3824
    %v3826 = vsel %vm1020, %v3825, 0.0
    %3827 = vrot.lane.b32.xlu0 %v3823, 127
    %v3828 = vpop.permute.xlu0 %3827
    %v3829 = vsel %vm1029, %v3828, 0.0
    %3830 = vmatprep.subr.mxu0 0.0
    %v3831 = vand.u32 %v3826, 4294901760
    %3832 = vmatpush1.msra.mxu0 %v3831
    %3833 = vmatprep.subr.mxu0 0.0
    %v3834 = vand.u32 %v3823, 4294901760
    %3835 = vmatpush1.msra.mxu0 %v3834
    %3836 = vmatprep.subr.mxu0 0.0
    %v3837 = vand.u32 %v3829, 4294901760
    %3838 = vmatpush1.msra.mxu0 %v3837
    %3839 = vmatprep.subr.mxu0 0.0
    %3840 = vmatpush1.msra.mxu0 0.0
    %3841 = vmatprep.subr.mxu0 0.0
    %3842 = vmatpush1.msra.mxu0 0.0
    %3843 = vmatprep.subr.mxu0 0.0
    %3844 = vmatpush1.msra.mxu0 0.0
    %3845 = vmatprep.subr.mxu0 0.0
    %3846 = vmatpush1.msra.mxu0 0.0
    %3847 = vmatprep.subr.mxu0 0.0
    %3848 = vmatpush1.msra.mxu0 0.0
    %3849 = vmatprep.subr.mxu0 0.0
    %3850 = vmatpush1.msra.mxu0 0.0
    %3851 = vmatprep.subr.mxu0 0.0
    %3852 = vmatpush1.msra.mxu0 0.0
    %3853 = vmatprep.subr.mxu0 0.0
    %3854 = vmatpush1.msra.mxu0 0.0
    %3855 = vmatprep.subr.mxu0 0.0
    %3856 = vmatpush1.msra.mxu0 0.0
    %3857 = vmatprep.subr.mxu0 0.0
    %3858 = vmatpush1.msra.mxu0 0.0
    %3859 = vmatprep.subr.mxu0 0.0
    %3860 = vmatpush1.msra.mxu0 0.0
    %3861 = vmatprep.subr.mxu0 0.0
    %3862 = vmatpush1.msra.mxu0 0.0
    %3863 = vmatprep.subr.mxu0 0.0
    %3864 = vmatpush1.msra.mxu0 0.0
    %3865 = vmatprep.subr.mxu0 0.0
    %3866 = vmatpush1.msra.mxu0 0.0
    %3867 = vmatprep.subr.mxu0 0.0
    %3868 = vmatpush1.msra.mxu0 0.0
    %3869 = vmatprep.subr.mxu0 0.0
    %3870 = vmatpush1.msra.mxu0 0.0
    %3871 = vmatprep.subr.mxu0 0.0
    %3872 = vmatpush1.msra.mxu0 0.0
    %3873 = vmatprep.subr.mxu0 0.0
    %3874 = vmatpush1.msra.mxu0 0.0
    %3875 = vmatprep.subr.mxu0 0.0
    %3876 = vmatpush1.msra.mxu0 0.0
    %3877 = vmatprep.subr.mxu0 0.0
    %3878 = vmatpush1.msra.mxu0 0.0
    %3879 = vmatprep.subr.mxu0 0.0
    %3880 = vmatpush1.msra.mxu0 0.0
    %3881 = vmatprep.subr.mxu0 0.0
    %3882 = vmatpush1.msra.mxu0 0.0
    %3883 = vmatprep.subr.mxu0 0.0
    %3884 = vmatpush1.msra.mxu0 0.0
    %3885 = vmatprep.subr.mxu0 0.0
    %3886 = vmatpush1.msra.mxu0 0.0
    %3887 = vmatprep.subr.mxu0 0.0
    %3888 = vmatpush1.msra.mxu0 0.0
    %3889 = vmatprep.subr.mxu0 0.0
    %3890 = vmatpush1.msra.mxu0 0.0
    %3891 = vmatprep.subr.mxu0 0.0
    %3892 = vmatpush1.msra.mxu0 0.0
    %3893 = vmatprep.subr.mxu0 0.0
    %3894 = vmatpush1.msra.mxu0 0.0
    %3895 = vmatprep.subr.mxu0 0.0
    %3896 = vmatpush1.msra.mxu0 0.0
    %3897 = vmatprep.mubr.f32.mxu0 0.0
    %v3898 = vand.u32 %v1039, 4294901760
    %v3899 = vsub.f32 %v1039, %v3898
    %v3900 = vand.u32 %v3899, 4294901760
    %v3901 = vsub.f32 %v3899, %v3900
    %v3902 = vand.u32 %v3901, 4294901760
    %3903 = vmatmul.mubr.f32.gmra.mrb[0].mxu0 %v3902
    %v3904 = vpop.f32.mrb[0].mxu0
    %v3905 = vadd.f32 %v1034, %v3904
    %v3906 = vpop.f32.mrb[0].mxu0
    %3907 = vdwg.mxu0
    %3908 = vmatprep.subr.mxu0 0.0
    %v3909 = vand.u32 %v3826, 4294901760
    %v3910 = vsub.f32 %v3826, %v3909
    %v3911 = vand.u32 %v3910, 4294901760
    %v3912 = vsub.f32 %v3910, %v3911
    %v3913 = vand.u32 %v3912, 4294901760
    %3914 = vmatpush1.msra.mxu0 %v3913
    %3915 = vmatprep.subr.mxu0 0.0
    %v3916 = vand.u32 %v3823, 4294901760
    %v3917 = vsub.f32 %v3823, %v3916
    %v3918 = vand.u32 %v3917, 4294901760
    %v3919 = vsub.f32 %v3917, %v3918
    %v3920 = vand.u32 %v3919, 4294901760
    %3921 = vmatpush1.msra.mxu0 %v3920
    %3922 = vmatprep.subr.mxu0 0.0
    %v3923 = vand.u32 %v3829, 4294901760
    %v3924 = vsub.f32 %v3829, %v3923
    %v3925 = vand.u32 %v3924, 4294901760
    %v3926 = vsub.f32 %v3924, %v3925
    %v3927 = vand.u32 %v3926, 4294901760
    %3928 = vmatpush1.msra.mxu0 %v3927
    %3929 = vmatprep.subr.mxu0 0.0
    %3930 = vmatpush1.msra.mxu0 0.0
    %3931 = vmatprep.subr.mxu0 0.0
    %3932 = vmatpush1.msra.mxu0 0.0
    %3933 = vmatprep.subr.mxu0 0.0
    %3934 = vmatpush1.msra.mxu0 0.0
    %3935 = vmatprep.subr.mxu0 0.0
    %3936 = vmatpush1.msra.mxu0 0.0
    %3937 = vmatprep.subr.mxu0 0.0
    %3938 = vmatpush1.msra.mxu0 0.0
    %3939 = vmatprep.subr.mxu0 0.0
    %3940 = vmatpush1.msra.mxu0 0.0
    %3941 = vmatprep.subr.mxu0 0.0
    %3942 = vmatpush1.msra.mxu0 0.0
    %3943 = vmatprep.subr.mxu0 0.0
    %3944 = vmatpush1.msra.mxu0 0.0
    %3945 = vmatprep.subr.mxu0 0.0
    %3946 = vmatpush1.msra.mxu0 0.0
    %3947 = vmatprep.subr.mxu0 0.0
    %3948 = vmatpush1.msra.mxu0 0.0
    %3949 = vmatprep.subr.mxu0 0.0
    %3950 = vmatpush1.msra.mxu0 0.0
    %3951 = vmatprep.subr.mxu0 0.0
    %3952 = vmatpush1.msra.mxu0 0.0
    %3953 = vmatprep.subr.mxu0 0.0
    %3954 = vmatpush1.msra.mxu0 0.0
    %3955 = vmatprep.subr.mxu0 0.0
    %3956 = vmatpush1.msra.mxu0 0.0
    %3957 = vmatprep.subr.mxu0 0.0
    %3958 = vmatpush1.msra.mxu0 0.0
    %3959 = vmatprep.subr.mxu0 0.0
    %3960 = vmatpush1.msra.mxu0 0.0
    %3961 = vmatprep.subr.mxu0 0.0
    %3962 = vmatpush1.msra.mxu0 0.0
    %3963 = vmatprep.subr.mxu0 0.0
    %3964 = vmatpush1.msra.mxu0 0.0
    %3965 = vmatprep.subr.mxu0 0.0
    %3966 = vmatpush1.msra.mxu0 0.0
    %3967 = vmatprep.subr.mxu0 0.0
    %3968 = vmatpush1.msra.mxu0 0.0
    %3969 = vmatprep.subr.mxu0 0.0
    %3970 = vmatpush1.msra.mxu0 0.0
    %3971 = vmatprep.subr.mxu0 0.0
    %3972 = vmatpush1.msra.mxu0 0.0
    %3973 = vmatprep.subr.mxu0 0.0
    %3974 = vmatpush1.msra.mxu0 0.0
    %3975 = vmatprep.subr.mxu0 0.0
    %3976 = vmatpush1.msra.mxu0 0.0
    %3977 = vmatprep.subr.mxu0 0.0
    %3978 = vmatpush1.msra.mxu0 0.0
    %3979 = vmatprep.subr.mxu0 0.0
    %3980 = vmatpush1.msra.mxu0 0.0
    %3981 = vmatprep.subr.mxu0 0.0
    %3982 = vmatpush1.msra.mxu0 0.0
    %3983 = vmatprep.subr.mxu0 0.0
    %3984 = vmatpush1.msra.mxu0 0.0
    %3985 = vmatprep.subr.mxu0 0.0
    %3986 = vmatpush1.msra.mxu0 0.0
    %3987 = vmatprep.mubr.f32.mxu0 0.0
    %v3988 = vand.u32 %v1039, 4294901760
    %3989 = vmatmul.mubr.f32.gmra.mrb[0].mxu0 %v3988
    %v3990 = vpop.f32.mrb[0].mxu0
    %v3991 = vadd.f32 %v3905, %v3990
    %v3992 = vpop.f32.mrb[0].mxu0
    %3993 = vdwg.mxu0
    %3994 = vmatprep.subr.mxu0 0.0
    %v3995 = vand.u32 %v3826, 4294901760
    %v3996 = vsub.f32 %v3826, %v3995
    %3997 = vmatpush1.msra.mxu0 %v3996
    %3998 = vmatprep.subr.mxu0 0.0
    %v3999 = vand.u32 %v3823, 4294901760
    %v4000 = vsub.f32 %v3823, %v3999
    %4001 = vmatpush1.msra.mxu0 %v4000
    %4002 = vmatprep.subr.mxu0 0.0
    %v4003 = vand.u32 %v3829, 4294901760
    %v4004 = vsub.f32 %v3829, %v4003
    %4005 = vmatpush1.msra.mxu0 %v4004
    %4006 = vmatprep.subr.mxu0 0.0
    %4007 = vmatpush1.msra.mxu0 0.0
    %4008 = vmatprep.subr.mxu0 0.0
    %4009 = vmatpush1.msra.mxu0 0.0
    %4010 = vmatprep.subr.mxu0 0.0
    %4011 = vmatpush1.msra.mxu0 0.0
    %4012 = vmatprep.subr.mxu0 0.0
    %4013 = vmatpush1.msra.mxu0 0.0
    %4014 = vmatprep.subr.mxu0 0.0
    %4015 = vmatpush1.msra.mxu0 0.0
    %4016 = vmatprep.subr.mxu0 0.0
    %4017 = vmatpush1.msra.mxu0 0.0
    %4018 = vmatprep.subr.mxu0 0.0
    %4019 = vmatpush1.msra.mxu0 0.0
    %4020 = vmatprep.subr.mxu0 0.0
    %4021 = vmatpush1.msra.mxu0 0.0
    %4022 = vmatprep.subr.mxu0 0.0
    %4023 = vmatpush1.msra.mxu0 0.0
    %4024 = vmatprep.subr.mxu0 0.0
    %4025 = vmatpush1.msra.mxu0 0.0
    %4026 = vmatprep.subr.mxu0 0.0
    %4027 = vmatpush1.msra.mxu0 0.0
    %4028 = vmatprep.subr.mxu0 0.0
    %4029 = vmatpush1.msra.mxu0 0.0
    %4030 = vmatprep.subr.mxu0 0.0
    %4031 = vmatpush1.msra.mxu0 0.0
    %4032 = vmatprep.subr.mxu0 0.0
    %4033 = vmatpush1.msra.mxu0 0.0
    %4034 = vmatprep.subr.mxu0 0.0
    %4035 = vmatpush1.msra.mxu0 0.0
    %4036 = vmatprep.subr.mxu0 0.0
    %4037 = vmatpush1.msra.mxu0 0.0
    %4038 = vmatprep.subr.mxu0 0.0
    %4039 = vmatpush1.msra.mxu0 0.0
    %4040 = vmatprep.subr.mxu0 0.0
    %4041 = vmatpush1.msra.mxu0 0.0
    %4042 = vmatprep.subr.mxu0 0.0
    %4043 = vmatpush1.msra.mxu0 0.0
    %4044 = vmatprep.subr.mxu0 0.0
    %4045 = vmatpush1.msra.mxu0 0.0
    %4046 = vmatprep.subr.mxu0 0.0
    %4047 = vmatpush1.msra.mxu0 0.0
    %4048 = vmatprep.subr.mxu0 0.0
    %4049 = vmatpush1.msra.mxu0 0.0
    %4050 = vmatprep.subr.mxu0 0.0
    %4051 = vmatpush1.msra.mxu0 0.0
    %4052 = vmatprep.subr.mxu0 0.0
    %4053 = vmatpush1.msra.mxu0 0.0
    %4054 = vmatprep.subr.mxu0 0.0
    %4055 = vmatpush1.msra.mxu0 0.0
    %4056 = vmatprep.subr.mxu0 0.0
    %4057 = vmatpush1.msra.mxu0 0.0
    %4058 = vmatprep.subr.mxu0 0.0
    %4059 = vmatpush1.msra.mxu0 0.0
    %4060 = vmatprep.subr.mxu0 0.0
    %4061 = vmatpush1.msra.mxu0 0.0
    %4062 = vmatprep.subr.mxu0 0.0
    %4063 = vmatpush1.msra.mxu0 0.0
    %4064 = vmatprep.mubr.f32.mxu0 0.0
    %v4065 = vand.u32 %v1039, 4294901760
    %v4066 = vsub.f32 %v1039, %v4065
    %4067 = vmatmul.mubr.f32.gmra.mrb[0].mxu0 %v4066
    %v4068 = vpop.f32.mrb[0].mxu0
    %v4069 = vadd.f32 %v3991, %v4068
    %v4070 = vpop.f32.mrb[0].mxu0
    %4071 = vdwg.mxu0
    %4072 = vmatprep.subr.mxu0 0.0
    %v4073 = vand.u32 %v3826, 4294901760
    %4074 = vmatpush1.msra.mxu0 %v4073
    %4075 = vmatprep.subr.mxu0 0.0
    %v4076 = vand.u32 %v3823, 4294901760
    %4077 = vmatpush1.msra.mxu0 %v4076
    %4078 = vmatprep.subr.mxu0 0.0
    %v4079 = vand.u32 %v3829, 4294901760
    %4080 = vmatpush1.msra.mxu0 %v4079
    %4081 = vmatprep.subr.mxu0 0.0
    %4082 = vmatpush1.msra.mxu0 0.0
    %4083 = vmatprep.subr.mxu0 0.0
    %4084 = vmatpush1.msra.mxu0 0.0
    %4085 = vmatprep.subr.mxu0 0.0
    %4086 = vmatpush1.msra.mxu0 0.0
    %4087 = vmatprep.subr.mxu0 0.0
    %4088 = vmatpush1.msra.mxu0 0.0
    %4089 = vmatprep.subr.mxu0 0.0
    %4090 = vmatpush1.msra.mxu0 0.0
    %4091 = vmatprep.subr.mxu0 0.0
    %4092 = vmatpush1.msra.mxu0 0.0
    %4093 = vmatprep.subr.mxu0 0.0
    %4094 = vmatpush1.msra.mxu0 0.0
    %4095 = vmatprep.subr.mxu0 0.0
    %4096 = vmatpush1.msra.mxu0 0.0
    %4097 = vmatprep.subr.mxu0 0.0
    %4098 = vmatpush1.msra.mxu0 0.0
    %4099 = vmatprep.subr.mxu0 0.0
    %4100 = vmatpush1.msra.mxu0 0.0
    %4101 = vmatprep.subr.mxu0 0.0
    %4102 = vmatpush1.msra.mxu0 0.0
    %4103 = vmatprep.subr.mxu0 0.0
    %4104 = vmatpush1.msra.mxu0 0.0
    %4105 = vmatprep.subr.mxu0 0.0
    %4106 = vmatpush1.msra.mxu0 0.0
    %4107 = vmatprep.subr.mxu0 0.0
    %4108 = vmatpush1.msra.mxu0 0.0
    %4109 = vmatprep.subr.mxu0 0.0
    %4110 = vmatpush1.msra.mxu0 0.0
    %4111 = vmatprep.subr.mxu0 0.0
    %4112 = vmatpush1.msra.mxu0 0.0
    %4113 = vmatprep.subr.mxu0 0.0
    %4114 = vmatpush1.msra.mxu0 0.0
    %4115 = vmatprep.subr.mxu0 0.0
    %4116 = vmatpush1.msra.mxu0 0.0
    %4117 = vmatprep.subr.mxu0 0.0
    %4118 = vmatpush1.msra.mxu0 0.0
    %4119 = vmatprep.subr.mxu0 0.0
    %4120 = vmatpush1.msra.mxu0 0.0
    %4121 = vmatprep.subr.mxu0 0.0
    %4122 = vmatpush1.msra.mxu0 0.0
    %4123 = vmatprep.subr.mxu0 0.0
    %4124 = vmatpush1.msra.mxu0 0.0
    %4125 = vmatprep.subr.mxu0 0.0
    %4126 = vmatpush1.msra.mxu0 0.0
    %4127 = vmatprep.subr.mxu0 0.0
    %4128 = vmatpush1.msra.mxu0 0.0
    %4129 = vmatprep.subr.mxu0 0.0
    %4130 = vmatpush1.msra.mxu0 0.0
    %4131 = vmatprep.subr.mxu0 0.0
    %4132 = vmatpush1.msra.mxu0 0.0
    %4133 = vmatprep.subr.mxu0 0.0
    %4134 = vmatpush1.msra.mxu0 0.0
    %4135 = vmatprep.subr.mxu0 0.0
    %4136 = vmatpush1.msra.mxu0 0.0
    %4137 = vmatprep.subr.mxu0 0.0
    %4138 = vmatpush1.msra.mxu0 0.0
    %4139 = vmatprep.mubr.f32.mxu0 0.0
    %v4140 = vand.u32 %v1039, 4294901760
    %v4141 = vsub.f32 %v1039, %v4140
    %v4142 = vand.u32 %v4141, 4294901760
    %4143 = vmatmul.mubr.f32.gmra.mrb[0].mxu0 %v4142
    %v4144 = vpop.f32.mrb[0].mxu0
    %v4145 = vadd.f32 %v4069, %v4144
    %v4146 = vpop.f32.mrb[0].mxu0
    %4147 = vdwg.mxu0
    %4148 = vmatprep.subr.mxu0 0.0
    %v4149 = vand.u32 %v3826, 4294901760
    %v4150 = vsub.f32 %v3826, %v4149
    %v4151 = vand.u32 %v4150, 4294901760
    %4152 = vmatpush1.msra.mxu0 %v4151
    %4153 = vmatprep.subr.mxu0 0.0
    %v4154 = vand.u32 %v3823, 4294901760
    %v4155 = vsub.f32 %v3823, %v4154
    %v4156 = vand.u32 %v4155, 4294901760
    %4157 = vmatpush1.msra.mxu0 %v4156
    %4158 = vmatprep.subr.mxu0 0.0
    %v4159 = vand.u32 %v3829, 4294901760
    %v4160 = vsub.f32 %v3829, %v4159
    %v4161 = vand.u32 %v4160, 4294901760
    %4162 = vmatpush1.msra.mxu0 %v4161
    %4163 = vmatprep.subr.mxu0 0.0
    %4164 = vmatpush1.msra.mxu0 0.0
    %4165 = vmatprep.subr.mxu0 0.0
    %4166 = vmatpush1.msra.mxu0 0.0
    %4167 = vmatprep.subr.mxu0 0.0
    %4168 = vmatpush1.msra.mxu0 0.0
    %4169 = vmatprep.subr.mxu0 0.0
    %4170 = vmatpush1.msra.mxu0 0.0
    %4171 = vmatprep.subr.mxu0 0.0
    %4172 = vmatpush1.msra.mxu0 0.0
    %4173 = vmatprep.subr.mxu0 0.0
    %4174 = vmatpush1.msra.mxu0 0.0
    %4175 = vmatprep.subr.mxu0 0.0
    %4176 = vmatpush1.msra.mxu0 0.0
    %4177 = vmatprep.subr.mxu0 0.0
    %4178 = vmatpush1.msra.mxu0 0.0
    %4179 = vmatprep.subr.mxu0 0.0
    %4180 = vmatpush1.msra.mxu0 0.0
    %4181 = vmatprep.subr.mxu0 0.0
    %4182 = vmatpush1.msra.mxu0 0.0
    %4183 = vmatprep.subr.mxu0 0.0
    %4184 = vmatpush1.msra.mxu0 0.0
    %4185 = vmatprep.subr.mxu0 0.0
    %4186 = vmatpush1.msra.mxu0 0.0
    %4187 = vmatprep.subr.mxu0 0.0
    %4188 = vmatpush1.msra.mxu0 0.0
    %4189 = vmatprep.subr.mxu0 0.0
    %4190 = vmatpush1.msra.mxu0 0.0
    %4191 = vmatprep.subr.mxu0 0.0
    %4192 = vmatpush1.msra.mxu0 0.0
    %4193 = vmatprep.subr.mxu0 0.0
    %4194 = vmatpush1.msra.mxu0 0.0
    %4195 = vmatprep.subr.mxu0 0.0
    %4196 = vmatpush1.msra.mxu0 0.0
    %4197 = vmatprep.subr.mxu0 0.0
    %4198 = vmatpush1.msra.mxu0 0.0
    %4199 = vmatprep.subr.mxu0 0.0
    %4200 = vmatpush1.msra.mxu0 0.0
    %4201 = vmatprep.subr.mxu0 0.0
    %4202 = vmatpush1.msra.mxu0 0.0
    %4203 = vmatprep.subr.mxu0 0.0
    %4204 = vmatpush1.msra.mxu0 0.0
    %4205 = vmatprep.subr.mxu0 0.0
    %4206 = vmatpush1.msra.mxu0 0.0
    %4207 = vmatprep.subr.mxu0 0.0
    %4208 = vmatpush1.msra.mxu0 0.0
    %4209 = vmatprep.subr.mxu0 0.0
    %4210 = vmatpush1.msra.mxu0 0.0
    %4211 = vmatprep.subr.mxu0 0.0
    %4212 = vmatpush1.msra.mxu0 0.0
    %4213 = vmatprep.subr.mxu0 0.0
    %4214 = vmatpush1.msra.mxu0 0.0
    %4215 = vmatprep.subr.mxu0 0.0
    %4216 = vmatpush1.msra.mxu0 0.0
    %4217 = vmatprep.subr.mxu0 0.0
    %4218 = vmatpush1.msra.mxu0 0.0
    %4219 = vmatprep.subr.mxu0 0.0
    %4220 = vmatpush1.msra.mxu0 0.0
    %4221 = vmatprep.mubr.f32.mxu0 0.0
    %v4222 = vand.u32 %v1039, 4294901760
    %4223 = vmatmul.mubr.f32.gmra.mrb[0].mxu0 %v4222
    %v4224 = vpop.f32.mrb[0].mxu0
    %v4225 = vadd.f32 %v4145, %v4224
    %v4226 = vpop.f32.mrb[0].mxu0
    %4227 = vdwg.mxu0
    %4228 = vmatprep.subr.mxu0 0.0
    %v4229 = vand.u32 %v3826, 4294901760
    %4230 = vmatpush1.msra.mxu0 %v4229
    %4231 = vmatprep.subr.mxu0 0.0
    %v4232 = vand.u32 %v3823, 4294901760
    %4233 = vmatpush1.msra.mxu0 %v4232
    %4234 = vmatprep.subr.mxu0 0.0
    %v4235 = vand.u32 %v3829, 4294901760
    %4236 = vmatpush1.msra.mxu0 %v4235
    %4237 = vmatprep.subr.mxu0 0.0
    %4238 = vmatpush1.msra.mxu0 0.0
    %4239 = vmatprep.subr.mxu0 0.0
    %4240 = vmatpush1.msra.mxu0 0.0
    %4241 = vmatprep.subr.mxu0 0.0
    %4242 = vmatpush1.msra.mxu0 0.0
    %4243 = vmatprep.subr.mxu0 0.0
    %4244 = vmatpush1.msra.mxu0 0.0
    %4245 = vmatprep.subr.mxu0 0.0
    %4246 = vmatpush1.msra.mxu0 0.0
    %4247 = vmatprep.subr.mxu0 0.0
    %4248 = vmatpush1.msra.mxu0 0.0
    %4249 = vmatprep.subr.mxu0 0.0
    %4250 = vmatpush1.msra.mxu0 0.0
    %4251 = vmatprep.subr.mxu0 0.0
    %4252 = vmatpush1.msra.mxu0 0.0
    %4253 = vmatprep.subr.mxu0 0.0
    %4254 = vmatpush1.msra.mxu0 0.0
    %4255 = vmatprep.subr.mxu0 0.0
    %4256 = vmatpush1.msra.mxu0 0.0
    %4257 = vmatprep.subr.mxu0 0.0
    %4258 = vmatpush1.msra.mxu0 0.0
    %4259 = vmatprep.subr.mxu0 0.0
    %4260 = vmatpush1.msra.mxu0 0.0
    %4261 = vmatprep.subr.mxu0 0.0
    %4262 = vmatpush1.msra.mxu0 0.0
    %4263 = vmatprep.subr.mxu0 0.0
    %4264 = vmatpush1.msra.mxu0 0.0
    %4265 = vmatprep.subr.mxu0 0.0
    %4266 = vmatpush1.msra.mxu0 0.0
    %4267 = vmatprep.subr.mxu0 0.0
    %4268 = vmatpush1.msra.mxu0 0.0
    %4269 = vmatprep.subr.mxu0 0.0
    %4270 = vmatpush1.msra.mxu0 0.0
    %4271 = vmatprep.subr.mxu0 0.0
    %4272 = vmatpush1.msra.mxu0 0.0
    %4273 = vmatprep.subr.mxu0 0.0
    %4274 = vmatpush1.msra.mxu0 0.0
    %4275 = vmatprep.subr.mxu0 0.0
    %4276 = vmatpush1.msra.mxu0 0.0
    %4277 = vmatprep.subr.mxu0 0.0
    %4278 = vmatpush1.msra.mxu0 0.0
    %4279 = vmatprep.subr.mxu0 0.0
    %4280 = vmatpush1.msra.mxu0 0.0
    %4281 = vmatprep.subr.mxu0 0.0
    %4282 = vmatpush1.msra.mxu0 0.0
    %4283 = vmatprep.subr.mxu0 0.0
    %4284 = vmatpush1.msra.mxu0 0.0
    %4285 = vmatprep.subr.mxu0 0.0
    %4286 = vmatpush1.msra.mxu0 0.0
    %4287 = vmatprep.subr.mxu0 0.0
    %4288 = vmatpush1.msra.mxu0 0.0
    %4289 = vmatprep.subr.mxu0 0.0
    %4290 = vmatpush1.msra.mxu0 0.0
    %4291 = vmatprep.subr.mxu0 0.0
    %4292 = vmatpush1.msra.mxu0 0.0
    %4293 = vmatprep.subr.mxu0 0.0
    %4294 = vmatpush1.msra.mxu0 0.0
    %4295 = vmatprep.mubr.f32.mxu0 0.0
    %v4296 = vand.u32 %v1039, 4294901760
    %4297 = vmatmul.mubr.f32.gmra.mrb[0].mxu0 %v4296
    %v4298 = vpop.f32.mrb[0].mxu0
    %v4299 = vadd.f32 %v4225, %v4298
    %v4300 = vpop.f32.mrb[0].mxu0
    %4301 = vdwg.mxu0
    %4302 = vadd.xlane.f32.xlu0 %v4299
    %v4303 = vpop.xlane.xlu0 %4302
    %v4304 = vadd.f32 %v3374, %v4303
    %v4305 = vmul.f32 %v4304, 0.001953125
    %v4306 = vsub.f32 %v1510, %v4305
    %v4307 = vmul.f32 %v4306, %v4306
    %4308 = vadd.xlane.f32.xlu0 %v4307
    %v4309 = vpop.xlane.xlu0 %4308
    %v4310 = vsub.f32 %v2439, %v4305
    %v4311 = vmul.f32 %v4310, %v4310
    %4312 = vadd.xlane.f32.xlu0 %v4311
    %v4313 = vpop.xlane.xlu0 %4312
    %v4314 = vadd.f32 %v4309, %v4313
    %v4315 = vsub.f32 %v3369, %v4305
    %v4316 = vmul.f32 %v4315, %v4315
    %4317 = vadd.xlane.f32.xlu0 %v4316
    %v4318 = vpop.xlane.xlu0 %4317
    %v4319 = vadd.f32 %v4314, %v4318
    %v4320 = vsub.f32 %v4299, %v4305
    %v4321 = vmul.f32 %v4320, %v4320
    %4322 = vadd.xlane.f32.xlu0 %v4321
    %v4323 = vpop.xlane.xlu0 %4322
    %v4324 = vadd.f32 %v4319, %v4323
    %v4325 = vmul.f32 %v4324, 0.001953125
    %v4326 = vadd.f32 %v4325, 1e-05
    %v4327 = vrsqrt.pop %v4326
    %v4328 = vmul.f32 %v4306, %v4327
    %4330 = vset.pattern.permute.xlu0 0
    %4331 = vperm.xlu0 %4330, %v547
    %v4332 = vpop.permute.xlu0 %4331
    %v4334 = vmul.f32 %v4332, %v4328
    %4336 = vset.pattern.permute.xlu0 0
    %4337 = vperm.xlu0 %4336, %v553
    %v4338 = vpop.permute.xlu0 %4337
    %v4340 = vadd.f32 %v4334, %v4338
    %v4341 = vmax.f32 %v4340, 0.0
    %v4342 = vadd.f32 %v1012, %v4341
    %4343 = vst [vmem:[#allocation2] sm:$0xff] %v4342
    %v4344 = vmul.f32 %v4310, %v4327
    %4345 = vset.pattern.permute.xlu0 1
    %4346 = vperm.xlu0 %4345, %v547
    %v4347 = vpop.permute.xlu0 %4346
    %v4349 = vmul.f32 %v4347, %v4344
    %4350 = vset.pattern.permute.xlu0 1
    %4351 = vperm.xlu0 %4350, %v553
    %v4352 = vpop.permute.xlu0 %4351
    %v4354 = vadd.f32 %v4349, %v4352
    %v4355 = vmax.f32 %v4354, 0.0
    %v4356 = vadd.f32 %v1963, %v4355
    %s4357 = scalar_lea.vmem [#allocation2], 8
    %4358 = vst [vmem:[%s4357] sm:$0xff] %v4356
    %v4359 = vmul.f32 %v4315, %v4327
    %4360 = vset.pattern.permute.xlu0 2
    %4361 = vperm.xlu0 %4360, %v547
    %v4362 = vpop.permute.xlu0 %4361
    %v4364 = vmul.f32 %v4362, %v4359
    %4365 = vset.pattern.permute.xlu0 2
    %4366 = vperm.xlu0 %4365, %v553
    %v4367 = vpop.permute.xlu0 %4366
    %v4369 = vadd.f32 %v4364, %v4367
    %v4370 = vmax.f32 %v4369, 0.0
    %v4371 = vadd.f32 %v2893, %v4370
    %s4372 = scalar_lea.vmem [#allocation2], 16
    %4373 = vst [vmem:[%s4372] sm:$0xff] %v4371
    %v4374 = vmul.f32 %v4320, %v4327
    %4375 = vset.pattern.permute.xlu0 3
    %4376 = vperm.xlu0 %4375, %v547
    %v4377 = vpop.permute.xlu0 %4376
    %v4379 = vmul.f32 %v4377, %v4374
    %4380 = vset.pattern.permute.xlu0 3
    %4381 = vperm.xlu0 %4380, %v553
    %v4382 = vpop.permute.xlu0 %4381
    %v4384 = vadd.f32 %v4379, %v4382
    %v4385 = vmax.f32 %v4384, 0.0
    %v4386 = vadd.f32 %v3823, %v4385
    %s4387 = scalar_lea.vmem [#allocation2], 24
    %4388 = vst [vmem:[%s4387] sm:$0xff] %v4386
    // Predicated region
    $region22: #{tpu_custom_call.1} parent=1 // pred_check
      _
    $region23: #{tpu_custom_call.1} parent=1 // pred_check_branch
      %4390 = sbr.rel (0) target = $region25
    $region24: #{tpu_custom_call.1} parent=1 // pred_region
      %s4392 = ssub.s32 512, 512
      %4393 = vsyncadd [#allocation3], %s4392
      %s4394 = sshll.u32 [#allocation2], 4
      %s4395 = int_to_ptr.vmem [resolvable:$true] %s4394
      %4400 = dma.vmem_to_hbm [thread:$0]  %s4395, 512, %s5, [#allocation3], 128, 128, 8
    $region25: #{tpu_custom_call.1} parent=1 // pred_fallthru
      _
    // Predicated region
    $region26: #{tpu_custom_call.1} parent=1 // pred_check
      _
    $region27: #{tpu_custom_call.1} parent=1 // pred_check_branch
      %4402 = sbr.rel (0) target = $region29
    $region28: #{tpu_custom_call.1} parent=1 // pred_region
      %4403 = dma.done [#allocation3], 512
    $region29: #{tpu_custom_call.1} parent=1 // pred_fallthru
      _
    %4404 = vsyncpa [#allocation3], 1

</llo_original>
